<compile_context>
chip_gen: v7x
topology: tpu7x:2x2x1
jax: 0.10.0
libtpu: 0.0.40
codegen_flags: <defaults>
</compile_context>

<pallas_src>
import math
from functools import partial

import jax
import jax.numpy as jnp
from jax import lax
from jax.experimental import pallas as pl
from jax.experimental.pallas import tpu as pltpu


# ------------------------------- helpers --------------------------------------
def _layernorm(x, g, b, eps=1e-5):
    mu = jnp.mean(x, axis=-1, keepdims=True)
    var = jnp.mean((x - mu) ** 2, axis=-1, keepdims=True)
    return (x - mu) * lax.rsqrt(var + eps) * g + b


def positional_embedding(hidden_dim, length, min_timescale=1.0, max_timescale=10000.0):
    num_ts = hidden_dim // 2
    log_inc = math.log(float(max_timescale) / float(min_timescale)) / (float(num_ts) - 1.0)
    position = jnp.arange(length, dtype=jnp.float32)
    inv_ts = jnp.exp(jnp.arange(num_ts, dtype=jnp.float32) * -log_inc) * min_timescale
    scaled = position[:, None] * inv_ts[None, :]
    return jnp.concatenate([jnp.sin(scaled), jnp.cos(scaled)], axis=1)  # (length, H)


# ------------------------------- fused kernel ----------------------------------
def fused_kernel(x_ref, mask_ref,
                 ln1g_ref, ln1b_ref, wqkv_ref, wo_ref, bo_ref,
                 ln2g_ref, ln2b_ref, w1_ref, b1_ref, w2_ref, b2_ref,
                 wdec_ref, wv1_ref, bv1_ref, lnvg_ref, lnvb_ref, wv2t_ref, bv2_ref,
                 logits_ref, values_ref, *, num_heads, depth, vocab_size):
    """Full transformer stack + LM/value heads, batch folded into sublanes."""
    x = x_ref[...]                                  # (BT, H)
    BT, H = x.shape
    hd = H // num_heads
    scale = float(hd) ** -0.5
    mask = mask_ref[...][None]                      # (1, BT, BT) block-diag causal

    # Static depth unroll (depth is small here).
    # TODO(synk): switch to lax.fori_loop over a depth-indexed weight stack when depth grows.
    for d in range(depth):
        # ---- masked multi-head self-attention sublayer (pre-LN) ----
        res = x
        xn = _layernorm(x, ln1g_ref[d], ln1b_ref[d])

        # Single fused QKV matmul: (BT,H) @ (H,3H).
        qkv = jnp.dot(xn, wqkv_ref[d], preferred_element_type=jnp.float32)   # (BT, 3H)
        # Split per head into a head-major stack (3*nh, BT, hd): tiny lane slices.
        qkv_hm = jnp.stack(
            [qkv[:, i * hd:(i + 1) * hd] for i in range(3 * num_heads)], axis=0)
        qh = qkv_hm[:num_heads]                     # (nh, BT, hd)
        kh = qkv_hm[num_heads:2 * num_heads]
        vh = qkv_hm[2 * num_heads:]

        s = lax.dot_general(
            qh, kh, dimension_numbers=(((2,), (2,)), ((0,), (0,))),
            preferred_element_type=jnp.float32) * scale + mask             # (nh, BT, BT)
        s = s - jnp.max(s, axis=-1, keepdims=True)
        p = jnp.exp(s)
        p = p * pl.reciprocal(jnp.sum(p, axis=-1, keepdims=True), approx=True)

        ctx = lax.dot_general(
            p, vh, dimension_numbers=(((2,), (1,)), ((0,), (0,))),
            preferred_element_type=jnp.float32)                            # (nh, BT, hd)

        # Fused output projection: concat heads along lanes -> one K=H matmul.
        ctx_cat = jnp.concatenate([ctx[h] for h in range(num_heads)], axis=1)  # (BT, H)
        attn = jnp.dot(ctx_cat, wo_ref[d],
                       preferred_element_type=jnp.float32) + bo_ref[d]     # (BT, H)
        x = attn + res

        # ---- feed-forward sublayer (pre-LN) ----
        res = x
        xn = _layernorm(x, ln2g_ref[d], ln2b_ref[d])
        h1 = jnp.maximum(
            jnp.dot(xn, w1_ref[d], preferred_element_type=jnp.float32) + b1_ref[d], 0.0)
        x = jnp.dot(h1, w2_ref[d], preferred_element_type=jnp.float32) + b2_ref[d] + res

    # ---- LM head: softmax over (lane-padded) vocab, exact divide ----
    z = jnp.dot(x, wdec_ref[...], preferred_element_type=jnp.float32)      # (BT, Vp)
    col = lax.broadcasted_iota(jnp.int32, z.shape, 1)
    z = jnp.where(col < vocab_size, z, jnp.float32(-1e9))                  # mask pad cols
    z = z - jnp.max(z, axis=-1, keepdims=True)
    e = jnp.exp(z)
    logits_ref[...] = e / jnp.sum(e, axis=-1, keepdims=True)

    # ---- value head: linear -> relu -> LN -> linear -> tanh (lane-dense (1,BT)) ----
    hv = jnp.maximum(
        jnp.dot(x, wv1_ref[...], preferred_element_type=jnp.float32) + bv1_ref[...], 0.0)
    hv = _layernorm(hv, lnvg_ref[...], lnvb_ref[...])
    val = lax.dot_general(
        wv2t_ref[...], hv, dimension_numbers=(((1,), (1,)), ((), ())),
        preferred_element_type=jnp.float32) + bv2_ref[...]                 # (1, BT)
    values_ref[...] = jnp.tanh(val)


# ------------------------------ wrapper -----------------------------------------
def run_model(x, block_params, head_params, vocab_size, num_heads, depth):
    B, T, H = x.shape
    BT = B * T
    x2d = x.reshape(BT, H)

    # Block-diagonal causal mask: -1e9 where the key is in another batch row or in
    # the future.  Constant for (B, T); built once here (plain XLA) so the kernel
    # does no in-kernel integer division.
    r = jnp.arange(BT, dtype=jnp.int32)
    same_batch = (r[:, None] // T) == (r[None, :] // T)
    causal = r[None, :] <= r[:, None]
    mask = jnp.where(same_batch & causal, 0.0, -1e9).astype(jnp.float32)   # (BT, BT)

    # Pad vocab to a multiple of 128 for lane-dense LM-head matmul + logits store.
    Vp = ((vocab_size + 127) // 128) * 128
    wdec = head_params[0]
    if Vp != vocab_size:
        wdec = jnp.pad(wdec, ((0, 0), (0, Vp - vocab_size)))
    head_params = [wdec] + list(head_params[1:])

    all_inputs = [x2d, mask] + list(block_params) + list(head_params)
    vmem = pl.BlockSpec(memory_space=pltpu.MemorySpace.VMEM)

    logits_p, values = pl.pallas_call(
        partial(fused_kernel, num_heads=num_heads, depth=depth, vocab_size=vocab_size),
        out_shape=(jax.ShapeDtypeStruct((BT, Vp), jnp.float32),
                   jax.ShapeDtypeStruct((1, BT), jnp.float32)),
        in_specs=[vmem] * len(all_inputs),
        out_specs=(vmem, vmem),
    )(*all_inputs)

    logits = logits_p[:, :vocab_size].reshape(B, T, vocab_size)
    values = values.reshape(B, T)
    return logits, values


# ------------------------------ parameter setup ----------------------------------
def init_params(key, H, V, depth, num_heads):
    def lin(k, shape, scale=0.02):
        return jax.random.normal(k, shape, jnp.float32) * scale

    keys = jax.random.split(key, depth + 2)
    params = {"emb": lin(keys[0], (V, H))}

    ln1g, ln1b, wqkv, wo, bo, ln2g, ln2b, w1, b1, w2, b2 = ([] for _ in range(11))
    for d in range(depth):
        ks = jax.random.split(keys[1 + d], 6)
        wq, wk, wv = lin(ks[0], (H, H)), lin(ks[1], (H, H)), lin(ks[2], (H, H))
        wqkv.append(jnp.concatenate([wq, wk, wv], axis=1))      # (H, 3H) (in,out)
        wo.append(lin(ks[3], (H, H)))                           # (H, H)  (in,out)
        bo.append(jnp.zeros((1, H), jnp.float32))
        ln1g.append(jnp.ones((1, H), jnp.float32))
        ln1b.append(jnp.zeros((1, H), jnp.float32))
        ln2g.append(jnp.ones((1, H), jnp.float32))
        ln2b.append(jnp.zeros((1, H), jnp.float32))
        w1.append(lin(ks[4], (H, 2 * H)))
        b1.append(jnp.zeros((1, 2 * H), jnp.float32))
        w2.append(lin(ks[5], (2 * H, H)))
        b2.append(jnp.zeros((1, H), jnp.float32))

    params["blocks"] = [jnp.stack(t) for t in
                        (ln1g, ln1b, wqkv, wo, bo, ln2g, ln2b, w1, b1, w2, b2)]

    kh = jax.random.split(keys[1 + depth], 3)
    params["head"] = [
        lin(kh[0], (H, V)),                        # decoder weight (in,out), no bias
        lin(kh[1], (H, H)),                        # linear_v1 (in,out)
        jnp.zeros((1, H), jnp.float32),            # linear_v1 bias
        jnp.ones((1, H), jnp.float32),             # ln_v gamma
        jnp.zeros((1, H), jnp.float32),            # ln_v beta
        lin(kh[2], (1, H)),                        # linear_v2 weight (out,in) = (1,H)
        jnp.zeros((1, 1), jnp.float32),            # linear_v2 bias
    ]
    # TODO(synk): linear_d1/linear_d2/ln_d exist on the PyTorch Model but are never
    # applied in its forward(); they are intentionally omitted.
    return params


def model_forward(inp, params, num_heads, depth):
    V, H = params["emb"].shape
    B, T = inp.shape
    x = params["emb"][inp]                              # embedding lookup (glue)
    x = x + positional_embedding(H, T)[None, :, :]      # sinusoidal signal[:T]
    return run_model(x, params["blocks"], params["head"], V, num_heads, depth)


# ------------------------------------ main ---------------------------------------
if __name__ == "__main__":
    B, T, H, NUM_HEADS, VOCAB, DEPTH = 2, 8, 32, 4, 64, 2

    key = jax.random.PRNGKey(0)
    k_params, k_inp = jax.random.split(key)
    params = init_params(k_params, H, VOCAB, DEPTH, NUM_HEADS)
    inp = jax.random.randint(k_inp, (B, T), 0, VOCAB, dtype=jnp.int32)

    logits, values = model_forward(inp, params, NUM_HEADS, DEPTH)
    jax.block_until_ready((logits, values))

    assert logits.shape == (B, T, VOCAB)
    assert values.shape == (B, T)
    assert bool(jnp.all(jnp.isfinite(logits))) and bool(jnp.all(jnp.isfinite(values)))
    print("KERNEL_OK")
</pallas_src>

<mosaic_0001>
module attributes {stable_mosaic.version = 11 : i64} {
  func.func @fused_kernel(%arg0: memref<16x32xf32, #tpu.memory_space<vmem>>, %arg1: memref<16x16xf32, #tpu.memory_space<vmem>>, %arg2: memref<2x1x32xf32, #tpu.memory_space<vmem>>, %arg3: memref<2x1x32xf32, #tpu.memory_space<vmem>>, %arg4: memref<2x32x96xf32, #tpu.memory_space<vmem>>, %arg5: memref<2x32x32xf32, #tpu.memory_space<vmem>>, %arg6: memref<2x1x32xf32, #tpu.memory_space<vmem>>, %arg7: memref<2x1x32xf32, #tpu.memory_space<vmem>>, %arg8: memref<2x1x32xf32, #tpu.memory_space<vmem>>, %arg9: memref<2x32x64xf32, #tpu.memory_space<vmem>>, %arg10: memref<2x1x64xf32, #tpu.memory_space<vmem>>, %arg11: memref<2x64x32xf32, #tpu.memory_space<vmem>>, %arg12: memref<2x1x32xf32, #tpu.memory_space<vmem>>, %arg13: memref<32x128xf32, #tpu.memory_space<vmem>>, %arg14: memref<32x32xf32, #tpu.memory_space<vmem>>, %arg15: memref<1x32xf32, #tpu.memory_space<vmem>>, %arg16: memref<1x32xf32, #tpu.memory_space<vmem>>, %arg17: memref<1x32xf32, #tpu.memory_space<vmem>>, %arg18: memref<1x32xf32, #tpu.memory_space<vmem>>, %arg19: memref<1x1xf32, #tpu.memory_space<vmem>>, %arg20: memref<16x128xf32, #tpu.memory_space<vmem>>, %arg21: memref<1x16xf32, #tpu.memory_space<vmem>>) attributes {dimension_semantics = [], scalar_prefetch = 0 : i64, scratch_operands = 0 : i64, tpu.core_type = #tpu.core_type<tc>} {
    %c0 = arith.constant 0 : index
    %c0_0 = arith.constant 0 : index
    %0 = vector.load %arg0[%c0, %c0_0] : memref<16x32xf32, #tpu.memory_space<vmem>>, vector<16x32xf32>
    %c0_1 = arith.constant 0 : index
    %c0_2 = arith.constant 0 : index
    %1 = vector.load %arg1[%c0_1, %c0_2] : memref<16x16xf32, #tpu.memory_space<vmem>>, vector<16x16xf32>
    %2 = vector.shape_cast %1 : vector<16x16xf32> to vector<1x16x16xf32>
    %c0_3 = arith.constant 0 : index
    %c0_4 = arith.constant 0 : index
    %c0_5 = arith.constant 0 : index
    %3 = vector.load %arg2[%c0_3, %c0_4, %c0_5] : memref<2x1x32xf32, #tpu.memory_space<vmem>>, vector<1x1x32xf32>
    %4 = vector.shape_cast %3 : vector<1x1x32xf32> to vector<1x32xf32>
    %c0_6 = arith.constant 0 : index
    %c0_7 = arith.constant 0 : index
    %c0_8 = arith.constant 0 : index
    %5 = vector.load %arg3[%c0_6, %c0_7, %c0_8] : memref<2x1x32xf32, #tpu.memory_space<vmem>>, vector<1x1x32xf32>
    %6 = vector.shape_cast %5 : vector<1x1x32xf32> to vector<1x32xf32>
    %cst = arith.constant dense<0.000000e+00> : vector<16xf32>
    %7 = vector.multi_reduction <add>, %0, %cst [1] : vector<16x32xf32> to vector<16xf32>
    %8 = vector.shape_cast %7 : vector<16xf32> to vector<16x1xf32>
    %cst_9 = arith.constant 3.200000e+01 : f32
    %9 = vector.broadcast %cst_9 : f32 to vector<16x1xf32>
    %10 = arith.divf %8, %9 : vector<16x1xf32>
    %11 = vector.broadcast %10 : vector<16x1xf32> to vector<16x32xf32>
    %12 = arith.subf %0, %11 : vector<16x32xf32>
    %13 = arith.mulf %12, %12 : vector<16x32xf32>
    %cst_10 = arith.constant dense<0.000000e+00> : vector<16xf32>
    %14 = vector.multi_reduction <add>, %13, %cst_10 [1] : vector<16x32xf32> to vector<16xf32>
    %15 = vector.shape_cast %14 : vector<16xf32> to vector<16x1xf32>
    %cst_11 = arith.constant 3.200000e+01 : f32
    %16 = vector.broadcast %cst_11 : f32 to vector<16x1xf32>
    %17 = arith.divf %15, %16 : vector<16x1xf32>
    %18 = vector.broadcast %10 : vector<16x1xf32> to vector<16x32xf32>
    %19 = arith.subf %0, %18 : vector<16x32xf32>
    %cst_12 = arith.constant 9.99999974E-6 : f32
    %20 = vector.broadcast %cst_12 : f32 to vector<16x1xf32>
    %21 = arith.addf %17, %20 : vector<16x1xf32>
    %22 = math.rsqrt %21 : vector<16x1xf32>
    %23 = vector.broadcast %22 : vector<16x1xf32> to vector<16x32xf32>
    %24 = arith.mulf %19, %23 : vector<16x32xf32>
    %25 = vector.broadcast %4 : vector<1x32xf32> to vector<16x32xf32>
    %26 = arith.mulf %24, %25 : vector<16x32xf32>
    %27 = vector.broadcast %6 : vector<1x32xf32> to vector<16x32xf32>
    %28 = arith.addf %26, %27 : vector<16x32xf32>
    %c0_13 = arith.constant 0 : index
    %c0_14 = arith.constant 0 : index
    %c0_15 = arith.constant 0 : index
    %29 = vector.load %arg4[%c0_13, %c0_14, %c0_15] : memref<2x32x96xf32, #tpu.memory_space<vmem>>, vector<1x32x96xf32>
    %30 = vector.shape_cast %29 : vector<1x32x96xf32> to vector<32x96xf32>
    %cst_16 = arith.constant dense<0.000000e+00> : vector<16x96xf32>
    %31 = tpu.matmul %28, %30, %cst_16 {dimension_numbers = #tpu.dot_dimension_numbers<[1], [0], [0], [1], [0, 0, 1, 1], [], []>} : vector<16x32xf32>, vector<32x96xf32>, vector<16x96xf32> -> vector<16x96xf32>
    %32 = vector.extract_strided_slice %31 {offsets = [0, 0], sizes = [16, 8], strides = [1, 1]} : vector<16x96xf32> to vector<16x8xf32>
    %33 = vector.extract_strided_slice %31 {offsets = [0, 8], sizes = [16, 8], strides = [1, 1]} : vector<16x96xf32> to vector<16x8xf32>
    %34 = vector.extract_strided_slice %31 {offsets = [0, 16], sizes = [16, 8], strides = [1, 1]} : vector<16x96xf32> to vector<16x8xf32>
    %35 = vector.extract_strided_slice %31 {offsets = [0, 24], sizes = [16, 8], strides = [1, 1]} : vector<16x96xf32> to vector<16x8xf32>
    %36 = vector.extract_strided_slice %31 {offsets = [0, 32], sizes = [16, 8], strides = [1, 1]} : vector<16x96xf32> to vector<16x8xf32>
    %37 = vector.extract_strided_slice %31 {offsets = [0, 40], sizes = [16, 8], strides = [1, 1]} : vector<16x96xf32> to vector<16x8xf32>
    %38 = vector.extract_strided_slice %31 {offsets = [0, 48], sizes = [16, 8], strides = [1, 1]} : vector<16x96xf32> to vector<16x8xf32>
    %39 = vector.extract_strided_slice %31 {offsets = [0, 56], sizes = [16, 8], strides = [1, 1]} : vector<16x96xf32> to vector<16x8xf32>
    %40 = vector.extract_strided_slice %31 {offsets = [0, 64], sizes = [16, 8], strides = [1, 1]} : vector<16x96xf32> to vector<16x8xf32>
    %41 = vector.extract_strided_slice %31 {offsets = [0, 72], sizes = [16, 8], strides = [1, 1]} : vector<16x96xf32> to vector<16x8xf32>
    %42 = vector.extract_strided_slice %31 {offsets = [0, 80], sizes = [16, 8], strides = [1, 1]} : vector<16x96xf32> to vector<16x8xf32>
    %43 = vector.extract_strided_slice %31 {offsets = [0, 88], sizes = [16, 8], strides = [1, 1]} : vector<16x96xf32> to vector<16x8xf32>
    %44 = vector.shape_cast %32 : vector<16x8xf32> to vector<1x16x8xf32>
    %45 = vector.shape_cast %33 : vector<16x8xf32> to vector<1x16x8xf32>
    %46 = vector.shape_cast %34 : vector<16x8xf32> to vector<1x16x8xf32>
    %47 = vector.shape_cast %35 : vector<16x8xf32> to vector<1x16x8xf32>
    %48 = vector.shape_cast %36 : vector<16x8xf32> to vector<1x16x8xf32>
    %49 = vector.shape_cast %37 : vector<16x8xf32> to vector<1x16x8xf32>
    %50 = vector.shape_cast %38 : vector<16x8xf32> to vector<1x16x8xf32>
    %51 = vector.shape_cast %39 : vector<16x8xf32> to vector<1x16x8xf32>
    %52 = vector.shape_cast %40 : vector<16x8xf32> to vector<1x16x8xf32>
    %53 = vector.shape_cast %41 : vector<16x8xf32> to vector<1x16x8xf32>
    %54 = vector.shape_cast %42 : vector<16x8xf32> to vector<1x16x8xf32>
    %55 = vector.shape_cast %43 : vector<16x8xf32> to vector<1x16x8xf32>
    %56 = tpu.concatenate %44, %45, %46, %47, %48, %49, %50, %51, %52, %53, %54, %55 in 0 : vector<1x16x8xf32>, vector<1x16x8xf32>, vector<1x16x8xf32>, vector<1x16x8xf32>, vector<1x16x8xf32>, vector<1x16x8xf32>, vector<1x16x8xf32>, vector<1x16x8xf32>, vector<1x16x8xf32>, vector<1x16x8xf32>, vector<1x16x8xf32>, vector<1x16x8xf32> -> vector<12x16x8xf32>
    %57 = vector.extract_strided_slice %56 {offsets = [0, 0, 0], sizes = [4, 16, 8], strides = [1, 1, 1]} : vector<12x16x8xf32> to vector<4x16x8xf32>
    %58 = vector.extract_strided_slice %56 {offsets = [4, 0, 0], sizes = [4, 16, 8], strides = [1, 1, 1]} : vector<12x16x8xf32> to vector<4x16x8xf32>
    %59 = vector.extract_strided_slice %56 {offsets = [8, 0, 0], sizes = [4, 16, 8], strides = [1, 1, 1]} : vector<12x16x8xf32> to vector<4x16x8xf32>
    %cst_17 = arith.constant dense<0.000000e+00> : vector<4x16x16xf32>
    %60 = tpu.matmul %57, %58, %cst_17 {dimension_numbers = #tpu.dot_dimension_numbers<[2], [2], [1], [1], [0, 0, 0, 1, 1, 1], [0], [0]>} : vector<4x16x8xf32>, vector<4x16x8xf32>, vector<4x16x16xf32> -> vector<4x16x16xf32>
    %cst_18 = arith.constant 0.353553385 : f32
    %61 = vector.broadcast %cst_18 : f32 to vector<4x16x16xf32>
    %62 = arith.mulf %60, %61 : vector<4x16x16xf32>
    %63 = vector.broadcast %2 : vector<1x16x16xf32> to vector<4x16x16xf32>
    %64 = arith.addf %62, %63 : vector<4x16x16xf32>
    %cst_19 = arith.constant dense<0xFF800000> : vector<4x16xf32>
    %65 = vector.multi_reduction <maximumf>, %64, %cst_19 [2] : vector<4x16x16xf32> to vector<4x16xf32>
    %66 = vector.shape_cast %65 : vector<4x16xf32> to vector<4x16x1xf32>
    %67 = vector.broadcast %66 : vector<4x16x1xf32> to vector<4x16x16xf32>
    %68 = arith.subf %64, %67 : vector<4x16x16xf32>
    %69 = math.exp %68 : vector<4x16x16xf32>
    %cst_20 = arith.constant dense<0.000000e+00> : vector<4x16xf32>
    %70 = vector.multi_reduction <add>, %69, %cst_20 [2] : vector<4x16x16xf32> to vector<4x16xf32>
    %71 = vector.shape_cast %70 : vector<4x16xf32> to vector<4x16x1xf32>
    %72 = tpu.reciprocal %71 {approx = true} : vector<4x16x1xf32> -> vector<4x16x1xf32>
    %73 = vector.broadcast %72 : vector<4x16x1xf32> to vector<4x16x16xf32>
    %74 = arith.mulf %69, %73 : vector<4x16x16xf32>
    %cst_21 = arith.constant dense<0.000000e+00> : vector<4x16x8xf32>
    %75 = tpu.matmul %74, %59, %cst_21 {dimension_numbers = #tpu.dot_dimension_numbers<[2], [1], [1], [2], [0, 0, 0, 1, 1, 2], [0], [0]>} : vector<4x16x16xf32>, vector<4x16x8xf32>, vector<4x16x8xf32> -> vector<4x16x8xf32>
    %76 = vector.extract_strided_slice %75 {offsets = [0, 0, 0], sizes = [1, 16, 8], strides = [1, 1, 1]} : vector<4x16x8xf32> to vector<1x16x8xf32>
    %77 = vector.shape_cast %76 : vector<1x16x8xf32> to vector<16x8xf32>
    %78 = vector.extract_strided_slice %75 {offsets = [1, 0, 0], sizes = [1, 16, 8], strides = [1, 1, 1]} : vector<4x16x8xf32> to vector<1x16x8xf32>
    %79 = vector.shape_cast %78 : vector<1x16x8xf32> to vector<16x8xf32>
    %80 = vector.extract_strided_slice %75 {offsets = [2, 0, 0], sizes = [1, 16, 8], strides = [1, 1, 1]} : vector<4x16x8xf32> to vector<1x16x8xf32>
    %81 = vector.shape_cast %80 : vector<1x16x8xf32> to vector<16x8xf32>
    %82 = vector.extract_strided_slice %75 {offsets = [3, 0, 0], sizes = [1, 16, 8], strides = [1, 1, 1]} : vector<4x16x8xf32> to vector<1x16x8xf32>
    %83 = vector.shape_cast %82 : vector<1x16x8xf32> to vector<16x8xf32>
    %84 = tpu.concatenate %77, %79, %81, %83 in 1 : vector<16x8xf32>, vector<16x8xf32>, vector<16x8xf32>, vector<16x8xf32> -> vector<16x32xf32>
    %c0_22 = arith.constant 0 : index
    %c0_23 = arith.constant 0 : index
    %c0_24 = arith.constant 0 : index
    %85 = vector.load %arg5[%c0_22, %c0_23, %c0_24] : memref<2x32x32xf32, #tpu.memory_space<vmem>>, vector<1x32x32xf32>
    %86 = vector.shape_cast %85 : vector<1x32x32xf32> to vector<32x32xf32>
    %cst_25 = arith.constant dense<0.000000e+00> : vector<16x32xf32>
    %87 = tpu.matmul %84, %86, %cst_25 {dimension_numbers = #tpu.dot_dimension_numbers<[1], [0], [0], [1], [0, 0, 1, 1], [], []>} : vector<16x32xf32>, vector<32x32xf32>, vector<16x32xf32> -> vector<16x32xf32>
    %c0_26 = arith.constant 0 : index
    %c0_27 = arith.constant 0 : index
    %c0_28 = arith.constant 0 : index
    %88 = vector.load %arg6[%c0_26, %c0_27, %c0_28] : memref<2x1x32xf32, #tpu.memory_space<vmem>>, vector<1x1x32xf32>
    %89 = vector.shape_cast %88 : vector<1x1x32xf32> to vector<1x32xf32>
    %90 = vector.broadcast %89 : vector<1x32xf32> to vector<16x32xf32>
    %91 = arith.addf %87, %90 : vector<16x32xf32>
    %92 = arith.addf %91, %0 : vector<16x32xf32>
    %c0_29 = arith.constant 0 : index
    %c0_30 = arith.constant 0 : index
    %c0_31 = arith.constant 0 : index
    %93 = vector.load %arg7[%c0_29, %c0_30, %c0_31] : memref<2x1x32xf32, #tpu.memory_space<vmem>>, vector<1x1x32xf32>
    %94 = vector.shape_cast %93 : vector<1x1x32xf32> to vector<1x32xf32>
    %c0_32 = arith.constant 0 : index
    %c0_33 = arith.constant 0 : index
    %c0_34 = arith.constant 0 : index
    %95 = vector.load %arg8[%c0_32, %c0_33, %c0_34] : memref<2x1x32xf32, #tpu.memory_space<vmem>>, vector<1x1x32xf32>
    %96 = vector.shape_cast %95 : vector<1x1x32xf32> to vector<1x32xf32>
    %cst_35 = arith.constant dense<0.000000e+00> : vector<16xf32>
    %97 = vector.multi_reduction <add>, %92, %cst_35 [1] : vector<16x32xf32> to vector<16xf32>
    %98 = vector.shape_cast %97 : vector<16xf32> to vector<16x1xf32>
    %cst_36 = arith.constant 3.200000e+01 : f32
    %99 = vector.broadcast %cst_36 : f32 to vector<16x1xf32>
    %100 = arith.divf %98, %99 : vector<16x1xf32>
    %101 = vector.broadcast %100 : vector<16x1xf32> to vector<16x32xf32>
    %102 = arith.subf %92, %101 : vector<16x32xf32>
    %103 = arith.mulf %102, %102 : vector<16x32xf32>
    %cst_37 = arith.constant dense<0.000000e+00> : vector<16xf32>
    %104 = vector.multi_reduction <add>, %103, %cst_37 [1] : vector<16x32xf32> to vector<16xf32>
    %105 = vector.shape_cast %104 : vector<16xf32> to vector<16x1xf32>
    %cst_38 = arith.constant 3.200000e+01 : f32
    %106 = vector.broadcast %cst_38 : f32 to vector<16x1xf32>
    %107 = arith.divf %105, %106 : vector<16x1xf32>
    %108 = vector.broadcast %100 : vector<16x1xf32> to vector<16x32xf32>
    %109 = arith.subf %92, %108 : vector<16x32xf32>
    %cst_39 = arith.constant 9.99999974E-6 : f32
    %110 = vector.broadcast %cst_39 : f32 to vector<16x1xf32>
    %111 = arith.addf %107, %110 : vector<16x1xf32>
    %112 = math.rsqrt %111 : vector<16x1xf32>
    %113 = vector.broadcast %112 : vector<16x1xf32> to vector<16x32xf32>
    %114 = arith.mulf %109, %113 : vector<16x32xf32>
    %115 = vector.broadcast %94 : vector<1x32xf32> to vector<16x32xf32>
    %116 = arith.mulf %114, %115 : vector<16x32xf32>
    %117 = vector.broadcast %96 : vector<1x32xf32> to vector<16x32xf32>
    %118 = arith.addf %116, %117 : vector<16x32xf32>
    %c0_40 = arith.constant 0 : index
    %c0_41 = arith.constant 0 : index
    %c0_42 = arith.constant 0 : index
    %119 = vector.load %arg9[%c0_40, %c0_41, %c0_42] : memref<2x32x64xf32, #tpu.memory_space<vmem>>, vector<1x32x64xf32>
    %120 = vector.shape_cast %119 : vector<1x32x64xf32> to vector<32x64xf32>
    %cst_43 = arith.constant dense<0.000000e+00> : vector<16x64xf32>
    %121 = tpu.matmul %118, %120, %cst_43 {dimension_numbers = #tpu.dot_dimension_numbers<[1], [0], [0], [1], [0, 0, 1, 1], [], []>} : vector<16x32xf32>, vector<32x64xf32>, vector<16x64xf32> -> vector<16x64xf32>
    %c0_44 = arith.constant 0 : index
    %c0_45 = arith.constant 0 : index
    %c0_46 = arith.constant 0 : index
    %122 = vector.load %arg10[%c0_44, %c0_45, %c0_46] : memref<2x1x64xf32, #tpu.memory_space<vmem>>, vector<1x1x64xf32>
    %123 = vector.shape_cast %122 : vector<1x1x64xf32> to vector<1x64xf32>
    %124 = vector.broadcast %123 : vector<1x64xf32> to vector<16x64xf32>
    %125 = arith.addf %121, %124 : vector<16x64xf32>
    %cst_47 = arith.constant 0.000000e+00 : f32
    %126 = vector.broadcast %cst_47 : f32 to vector<16x64xf32>
    %127 = arith.maximumf %125, %126 : vector<16x64xf32>
    %c0_48 = arith.constant 0 : index
    %c0_49 = arith.constant 0 : index
    %c0_50 = arith.constant 0 : index
    %128 = vector.load %arg11[%c0_48, %c0_49, %c0_50] : memref<2x64x32xf32, #tpu.memory_space<vmem>>, vector<1x64x32xf32>
    %129 = vector.shape_cast %128 : vector<1x64x32xf32> to vector<64x32xf32>
    %cst_51 = arith.constant dense<0.000000e+00> : vector<16x32xf32>
    %130 = tpu.matmul %127, %129, %cst_51 {dimension_numbers = #tpu.dot_dimension_numbers<[1], [0], [0], [1], [0, 0, 1, 1], [], []>} : vector<16x64xf32>, vector<64x32xf32>, vector<16x32xf32> -> vector<16x32xf32>
    %c0_52 = arith.constant 0 : index
    %c0_53 = arith.constant 0 : index
    %c0_54 = arith.constant 0 : index
    %131 = vector.load %arg12[%c0_52, %c0_53, %c0_54] : memref<2x1x32xf32, #tpu.memory_space<vmem>>, vector<1x1x32xf32>
    %132 = vector.shape_cast %131 : vector<1x1x32xf32> to vector<1x32xf32>
    %133 = vector.broadcast %132 : vector<1x32xf32> to vector<16x32xf32>
    %134 = arith.addf %130, %133 : vector<16x32xf32>
    %135 = arith.addf %134, %92 : vector<16x32xf32>
    %c1 = arith.constant 1 : index
    %c0_55 = arith.constant 0 : index
    %c0_56 = arith.constant 0 : index
    %136 = vector.load %arg2[%c1, %c0_55, %c0_56] : memref<2x1x32xf32, #tpu.memory_space<vmem>>, vector<1x1x32xf32>
    %137 = vector.shape_cast %136 : vector<1x1x32xf32> to vector<1x32xf32>
    %c1_57 = arith.constant 1 : index
    %c0_58 = arith.constant 0 : index
    %c0_59 = arith.constant 0 : index
    %138 = vector.load %arg3[%c1_57, %c0_58, %c0_59] : memref<2x1x32xf32, #tpu.memory_space<vmem>>, vector<1x1x32xf32>
    %139 = vector.shape_cast %138 : vector<1x1x32xf32> to vector<1x32xf32>
    %cst_60 = arith.constant dense<0.000000e+00> : vector<16xf32>
    %140 = vector.multi_reduction <add>, %135, %cst_60 [1] : vector<16x32xf32> to vector<16xf32>
    %141 = vector.shape_cast %140 : vector<16xf32> to vector<16x1xf32>
    %cst_61 = arith.constant 3.200000e+01 : f32
    %142 = vector.broadcast %cst_61 : f32 to vector<16x1xf32>
    %143 = arith.divf %141, %142 : vector<16x1xf32>
    %144 = vector.broadcast %143 : vector<16x1xf32> to vector<16x32xf32>
    %145 = arith.subf %135, %144 : vector<16x32xf32>
    %146 = arith.mulf %145, %145 : vector<16x32xf32>
    %cst_62 = arith.constant dense<0.000000e+00> : vector<16xf32>
    %147 = vector.multi_reduction <add>, %146, %cst_62 [1] : vector<16x32xf32> to vector<16xf32>
    %148 = vector.shape_cast %147 : vector<16xf32> to vector<16x1xf32>
    %cst_63 = arith.constant 3.200000e+01 : f32
    %149 = vector.broadcast %cst_63 : f32 to vector<16x1xf32>
    %150 = arith.divf %148, %149 : vector<16x1xf32>
    %151 = vector.broadcast %143 : vector<16x1xf32> to vector<16x32xf32>
    %152 = arith.subf %135, %151 : vector<16x32xf32>
    %cst_64 = arith.constant 9.99999974E-6 : f32
    %153 = vector.broadcast %cst_64 : f32 to vector<16x1xf32>
    %154 = arith.addf %150, %153 : vector<16x1xf32>
    %155 = math.rsqrt %154 : vector<16x1xf32>
    %156 = vector.broadcast %155 : vector<16x1xf32> to vector<16x32xf32>
    %157 = arith.mulf %152, %156 : vector<16x32xf32>
    %158 = vector.broadcast %137 : vector<1x32xf32> to vector<16x32xf32>
    %159 = arith.mulf %157, %158 : vector<16x32xf32>
    %160 = vector.broadcast %139 : vector<1x32xf32> to vector<16x32xf32>
    %161 = arith.addf %159, %160 : vector<16x32xf32>
    %c1_65 = arith.constant 1 : index
    %c0_66 = arith.constant 0 : index
    %c0_67 = arith.constant 0 : index
    %162 = vector.load %arg4[%c1_65, %c0_66, %c0_67] : memref<2x32x96xf32, #tpu.memory_space<vmem>>, vector<1x32x96xf32>
    %163 = vector.shape_cast %162 : vector<1x32x96xf32> to vector<32x96xf32>
    %cst_68 = arith.constant dense<0.000000e+00> : vector<16x96xf32>
    %164 = tpu.matmul %161, %163, %cst_68 {dimension_numbers = #tpu.dot_dimension_numbers<[1], [0], [0], [1], [0, 0, 1, 1], [], []>} : vector<16x32xf32>, vector<32x96xf32>, vector<16x96xf32> -> vector<16x96xf32>
    %165 = vector.extract_strided_slice %164 {offsets = [0, 0], sizes = [16, 8], strides = [1, 1]} : vector<16x96xf32> to vector<16x8xf32>
    %166 = vector.extract_strided_slice %164 {offsets = [0, 8], sizes = [16, 8], strides = [1, 1]} : vector<16x96xf32> to vector<16x8xf32>
    %167 = vector.extract_strided_slice %164 {offsets = [0, 16], sizes = [16, 8], strides = [1, 1]} : vector<16x96xf32> to vector<16x8xf32>
    %168 = vector.extract_strided_slice %164 {offsets = [0, 24], sizes = [16, 8], strides = [1, 1]} : vector<16x96xf32> to vector<16x8xf32>
    %169 = vector.extract_strided_slice %164 {offsets = [0, 32], sizes = [16, 8], strides = [1, 1]} : vector<16x96xf32> to vector<16x8xf32>
    %170 = vector.extract_strided_slice %164 {offsets = [0, 40], sizes = [16, 8], strides = [1, 1]} : vector<16x96xf32> to vector<16x8xf32>
    %171 = vector.extract_strided_slice %164 {offsets = [0, 48], sizes = [16, 8], strides = [1, 1]} : vector<16x96xf32> to vector<16x8xf32>
    %172 = vector.extract_strided_slice %164 {offsets = [0, 56], sizes = [16, 8], strides = [1, 1]} : vector<16x96xf32> to vector<16x8xf32>
    %173 = vector.extract_strided_slice %164 {offsets = [0, 64], sizes = [16, 8], strides = [1, 1]} : vector<16x96xf32> to vector<16x8xf32>
    %174 = vector.extract_strided_slice %164 {offsets = [0, 72], sizes = [16, 8], strides = [1, 1]} : vector<16x96xf32> to vector<16x8xf32>
    %175 = vector.extract_strided_slice %164 {offsets = [0, 80], sizes = [16, 8], strides = [1, 1]} : vector<16x96xf32> to vector<16x8xf32>
    %176 = vector.extract_strided_slice %164 {offsets = [0, 88], sizes = [16, 8], strides = [1, 1]} : vector<16x96xf32> to vector<16x8xf32>
    %177 = vector.shape_cast %165 : vector<16x8xf32> to vector<1x16x8xf32>
    %178 = vector.shape_cast %166 : vector<16x8xf32> to vector<1x16x8xf32>
    %179 = vector.shape_cast %167 : vector<16x8xf32> to vector<1x16x8xf32>
    %180 = vector.shape_cast %168 : vector<16x8xf32> to vector<1x16x8xf32>
    %181 = vector.shape_cast %169 : vector<16x8xf32> to vector<1x16x8xf32>
    %182 = vector.shape_cast %170 : vector<16x8xf32> to vector<1x16x8xf32>
    %183 = vector.shape_cast %171 : vector<16x8xf32> to vector<1x16x8xf32>
    %184 = vector.shape_cast %172 : vector<16x8xf32> to vector<1x16x8xf32>
    %185 = vector.shape_cast %173 : vector<16x8xf32> to vector<1x16x8xf32>
    %186 = vector.shape_cast %174 : vector<16x8xf32> to vector<1x16x8xf32>
    %187 = vector.shape_cast %175 : vector<16x8xf32> to vector<1x16x8xf32>
    %188 = vector.shape_cast %176 : vector<16x8xf32> to vector<1x16x8xf32>
    %189 = tpu.concatenate %177, %178, %179, %180, %181, %182, %183, %184, %185, %186, %187, %188 in 0 : vector<1x16x8xf32>, vector<1x16x8xf32>, vector<1x16x8xf32>, vector<1x16x8xf32>, vector<1x16x8xf32>, vector<1x16x8xf32>, vector<1x16x8xf32>, vector<1x16x8xf32>, vector<1x16x8xf32>, vector<1x16x8xf32>, vector<1x16x8xf32>, vector<1x16x8xf32> -> vector<12x16x8xf32>
    %190 = vector.extract_strided_slice %189 {offsets = [0, 0, 0], sizes = [4, 16, 8], strides = [1, 1, 1]} : vector<12x16x8xf32> to vector<4x16x8xf32>
    %191 = vector.extract_strided_slice %189 {offsets = [4, 0, 0], sizes = [4, 16, 8], strides = [1, 1, 1]} : vector<12x16x8xf32> to vector<4x16x8xf32>
    %192 = vector.extract_strided_slice %189 {offsets = [8, 0, 0], sizes = [4, 16, 8], strides = [1, 1, 1]} : vector<12x16x8xf32> to vector<4x16x8xf32>
    %cst_69 = arith.constant dense<0.000000e+00> : vector<4x16x16xf32>
    %193 = tpu.matmul %190, %191, %cst_69 {dimension_numbers = #tpu.dot_dimension_numbers<[2], [2], [1], [1], [0, 0, 0, 1, 1, 1], [0], [0]>} : vector<4x16x8xf32>, vector<4x16x8xf32>, vector<4x16x16xf32> -> vector<4x16x16xf32>
    %cst_70 = arith.constant 0.353553385 : f32
    %194 = vector.broadcast %cst_70 : f32 to vector<4x16x16xf32>
    %195 = arith.mulf %193, %194 : vector<4x16x16xf32>
    %196 = vector.broadcast %2 : vector<1x16x16xf32> to vector<4x16x16xf32>
    %197 = arith.addf %195, %196 : vector<4x16x16xf32>
    %cst_71 = arith.constant dense<0xFF800000> : vector<4x16xf32>
    %198 = vector.multi_reduction <maximumf>, %197, %cst_71 [2] : vector<4x16x16xf32> to vector<4x16xf32>
    %199 = vector.shape_cast %198 : vector<4x16xf32> to vector<4x16x1xf32>
    %200 = vector.broadcast %199 : vector<4x16x1xf32> to vector<4x16x16xf32>
    %201 = arith.subf %197, %200 : vector<4x16x16xf32>
    %202 = math.exp %201 : vector<4x16x16xf32>
    %cst_72 = arith.constant dense<0.000000e+00> : vector<4x16xf32>
    %203 = vector.multi_reduction <add>, %202, %cst_72 [2] : vector<4x16x16xf32> to vector<4x16xf32>
    %204 = vector.shape_cast %203 : vector<4x16xf32> to vector<4x16x1xf32>
    %205 = tpu.reciprocal %204 {approx = true} : vector<4x16x1xf32> -> vector<4x16x1xf32>
    %206 = vector.broadcast %205 : vector<4x16x1xf32> to vector<4x16x16xf32>
    %207 = arith.mulf %202, %206 : vector<4x16x16xf32>
    %cst_73 = arith.constant dense<0.000000e+00> : vector<4x16x8xf32>
    %208 = tpu.matmul %207, %192, %cst_73 {dimension_numbers = #tpu.dot_dimension_numbers<[2], [1], [1], [2], [0, 0, 0, 1, 1, 2], [0], [0]>} : vector<4x16x16xf32>, vector<4x16x8xf32>, vector<4x16x8xf32> -> vector<4x16x8xf32>
    %209 = vector.extract_strided_slice %208 {offsets = [0, 0, 0], sizes = [1, 16, 8], strides = [1, 1, 1]} : vector<4x16x8xf32> to vector<1x16x8xf32>
    %210 = vector.shape_cast %209 : vector<1x16x8xf32> to vector<16x8xf32>
    %211 = vector.extract_strided_slice %208 {offsets = [1, 0, 0], sizes = [1, 16, 8], strides = [1, 1, 1]} : vector<4x16x8xf32> to vector<1x16x8xf32>
    %212 = vector.shape_cast %211 : vector<1x16x8xf32> to vector<16x8xf32>
    %213 = vector.extract_strided_slice %208 {offsets = [2, 0, 0], sizes = [1, 16, 8], strides = [1, 1, 1]} : vector<4x16x8xf32> to vector<1x16x8xf32>
    %214 = vector.shape_cast %213 : vector<1x16x8xf32> to vector<16x8xf32>
    %215 = vector.extract_strided_slice %208 {offsets = [3, 0, 0], sizes = [1, 16, 8], strides = [1, 1, 1]} : vector<4x16x8xf32> to vector<1x16x8xf32>
    %216 = vector.shape_cast %215 : vector<1x16x8xf32> to vector<16x8xf32>
    %217 = tpu.concatenate %210, %212, %214, %216 in 1 : vector<16x8xf32>, vector<16x8xf32>, vector<16x8xf32>, vector<16x8xf32> -> vector<16x32xf32>
    %c1_74 = arith.constant 1 : index
    %c0_75 = arith.constant 0 : index
    %c0_76 = arith.constant 0 : index
    %218 = vector.load %arg5[%c1_74, %c0_75, %c0_76] : memref<2x32x32xf32, #tpu.memory_space<vmem>>, vector<1x32x32xf32>
    %219 = vector.shape_cast %218 : vector<1x32x32xf32> to vector<32x32xf32>
    %cst_77 = arith.constant dense<0.000000e+00> : vector<16x32xf32>
    %220 = tpu.matmul %217, %219, %cst_77 {dimension_numbers = #tpu.dot_dimension_numbers<[1], [0], [0], [1], [0, 0, 1, 1], [], []>} : vector<16x32xf32>, vector<32x32xf32>, vector<16x32xf32> -> vector<16x32xf32>
    %c1_78 = arith.constant 1 : index
    %c0_79 = arith.constant 0 : index
    %c0_80 = arith.constant 0 : index
    %221 = vector.load %arg6[%c1_78, %c0_79, %c0_80] : memref<2x1x32xf32, #tpu.memory_space<vmem>>, vector<1x1x32xf32>
    %222 = vector.shape_cast %221 : vector<1x1x32xf32> to vector<1x32xf32>
    %223 = vector.broadcast %222 : vector<1x32xf32> to vector<16x32xf32>
    %224 = arith.addf %220, %223 : vector<16x32xf32>
    %225 = arith.addf %224, %135 : vector<16x32xf32>
    %c1_81 = arith.constant 1 : index
    %c0_82 = arith.constant 0 : index
    %c0_83 = arith.constant 0 : index
    %226 = vector.load %arg7[%c1_81, %c0_82, %c0_83] : memref<2x1x32xf32, #tpu.memory_space<vmem>>, vector<1x1x32xf32>
    %227 = vector.shape_cast %226 : vector<1x1x32xf32> to vector<1x32xf32>
    %c1_84 = arith.constant 1 : index
    %c0_85 = arith.constant 0 : index
    %c0_86 = arith.constant 0 : index
    %228 = vector.load %arg8[%c1_84, %c0_85, %c0_86] : memref<2x1x32xf32, #tpu.memory_space<vmem>>, vector<1x1x32xf32>
    %229 = vector.shape_cast %228 : vector<1x1x32xf32> to vector<1x32xf32>
    %cst_87 = arith.constant dense<0.000000e+00> : vector<16xf32>
    %230 = vector.multi_reduction <add>, %225, %cst_87 [1] : vector<16x32xf32> to vector<16xf32>
    %231 = vector.shape_cast %230 : vector<16xf32> to vector<16x1xf32>
    %cst_88 = arith.constant 3.200000e+01 : f32
    %232 = vector.broadcast %cst_88 : f32 to vector<16x1xf32>
    %233 = arith.divf %231, %232 : vector<16x1xf32>
    %234 = vector.broadcast %233 : vector<16x1xf32> to vector<16x32xf32>
    %235 = arith.subf %225, %234 : vector<16x32xf32>
    %236 = arith.mulf %235, %235 : vector<16x32xf32>
    %cst_89 = arith.constant dense<0.000000e+00> : vector<16xf32>
    %237 = vector.multi_reduction <add>, %236, %cst_89 [1] : vector<16x32xf32> to vector<16xf32>
    %238 = vector.shape_cast %237 : vector<16xf32> to vector<16x1xf32>
    %cst_90 = arith.constant 3.200000e+01 : f32
    %239 = vector.broadcast %cst_90 : f32 to vector<16x1xf32>
    %240 = arith.divf %238, %239 : vector<16x1xf32>
    %241 = vector.broadcast %233 : vector<16x1xf32> to vector<16x32xf32>
    %242 = arith.subf %225, %241 : vector<16x32xf32>
    %cst_91 = arith.constant 9.99999974E-6 : f32
    %243 = vector.broadcast %cst_91 : f32 to vector<16x1xf32>
    %244 = arith.addf %240, %243 : vector<16x1xf32>
    %245 = math.rsqrt %244 : vector<16x1xf32>
    %246 = vector.broadcast %245 : vector<16x1xf32> to vector<16x32xf32>
    %247 = arith.mulf %242, %246 : vector<16x32xf32>
    %248 = vector.broadcast %227 : vector<1x32xf32> to vector<16x32xf32>
    %249 = arith.mulf %247, %248 : vector<16x32xf32>
    %250 = vector.broadcast %229 : vector<1x32xf32> to vector<16x32xf32>
    %251 = arith.addf %249, %250 : vector<16x32xf32>
    %c1_92 = arith.constant 1 : index
    %c0_93 = arith.constant 0 : index
    %c0_94 = arith.constant 0 : index
    %252 = vector.load %arg9[%c1_92, %c0_93, %c0_94] : memref<2x32x64xf32, #tpu.memory_space<vmem>>, vector<1x32x64xf32>
    %253 = vector.shape_cast %252 : vector<1x32x64xf32> to vector<32x64xf32>
    %cst_95 = arith.constant dense<0.000000e+00> : vector<16x64xf32>
    %254 = tpu.matmul %251, %253, %cst_95 {dimension_numbers = #tpu.dot_dimension_numbers<[1], [0], [0], [1], [0, 0, 1, 1], [], []>} : vector<16x32xf32>, vector<32x64xf32>, vector<16x64xf32> -> vector<16x64xf32>
    %c1_96 = arith.constant 1 : index
    %c0_97 = arith.constant 0 : index
    %c0_98 = arith.constant 0 : index
    %255 = vector.load %arg10[%c1_96, %c0_97, %c0_98] : memref<2x1x64xf32, #tpu.memory_space<vmem>>, vector<1x1x64xf32>
    %256 = vector.shape_cast %255 : vector<1x1x64xf32> to vector<1x64xf32>
    %257 = vector.broadcast %256 : vector<1x64xf32> to vector<16x64xf32>
    %258 = arith.addf %254, %257 : vector<16x64xf32>
    %cst_99 = arith.constant 0.000000e+00 : f32
    %259 = vector.broadcast %cst_99 : f32 to vector<16x64xf32>
    %260 = arith.maximumf %258, %259 : vector<16x64xf32>
    %c1_100 = arith.constant 1 : index
    %c0_101 = arith.constant 0 : index
    %c0_102 = arith.constant 0 : index
    %261 = vector.load %arg11[%c1_100, %c0_101, %c0_102] : memref<2x64x32xf32, #tpu.memory_space<vmem>>, vector<1x64x32xf32>
    %262 = vector.shape_cast %261 : vector<1x64x32xf32> to vector<64x32xf32>
    %cst_103 = arith.constant dense<0.000000e+00> : vector<16x32xf32>
    %263 = tpu.matmul %260, %262, %cst_103 {dimension_numbers = #tpu.dot_dimension_numbers<[1], [0], [0], [1], [0, 0, 1, 1], [], []>} : vector<16x64xf32>, vector<64x32xf32>, vector<16x32xf32> -> vector<16x32xf32>
    %c1_104 = arith.constant 1 : index
    %c0_105 = arith.constant 0 : index
    %c0_106 = arith.constant 0 : index
    %264 = vector.load %arg12[%c1_104, %c0_105, %c0_106] : memref<2x1x32xf32, #tpu.memory_space<vmem>>, vector<1x1x32xf32>
    %265 = vector.shape_cast %264 : vector<1x1x32xf32> to vector<1x32xf32>
    %266 = vector.broadcast %265 : vector<1x32xf32> to vector<16x32xf32>
    %267 = arith.addf %263, %266 : vector<16x32xf32>
    %268 = arith.addf %267, %225 : vector<16x32xf32>
    %c0_107 = arith.constant 0 : index
    %c0_108 = arith.constant 0 : index
    %269 = vector.load %arg13[%c0_107, %c0_108] : memref<32x128xf32, #tpu.memory_space<vmem>>, vector<32x128xf32>
    %cst_109 = arith.constant dense<0.000000e+00> : vector<16x128xf32>
    %270 = tpu.matmul %268, %269, %cst_109 {dimension_numbers = #tpu.dot_dimension_numbers<[1], [0], [0], [1], [0, 0, 1, 1], [], []>} : vector<16x32xf32>, vector<32x128xf32>, vector<16x128xf32> -> vector<16x128xf32>
    %271 = tpu.iota {dimensions = array<i32: 1>} : vector<16x128xi32>
    %c64_i32 = arith.constant 64 : i32
    %272 = vector.broadcast %c64_i32 : i32 to vector<16x128xi32>
    %273 = arith.cmpi slt, %271, %272 : vector<16x128xi32>
    %cst_110 = arith.constant -1.000000e+09 : f32
    %274 = vector.broadcast %cst_110 : f32 to vector<16x128xf32>
    %275 = arith.select %273, %270, %274 : vector<16x128xi1>, vector<16x128xf32>
    %cst_111 = arith.constant dense<0xFF800000> : vector<16xf32>
    %276 = vector.multi_reduction <maximumf>, %275, %cst_111 [1] : vector<16x128xf32> to vector<16xf32>
    %277 = vector.shape_cast %276 : vector<16xf32> to vector<16x1xf32>
    %278 = vector.broadcast %277 : vector<16x1xf32> to vector<16x128xf32>
    %279 = arith.subf %275, %278 : vector<16x128xf32>
    %280 = math.exp %279 : vector<16x128xf32>
    %cst_112 = arith.constant dense<0.000000e+00> : vector<16xf32>
    %281 = vector.multi_reduction <add>, %280, %cst_112 [1] : vector<16x128xf32> to vector<16xf32>
    %282 = vector.shape_cast %281 : vector<16xf32> to vector<16x1xf32>
    %283 = vector.broadcast %282 : vector<16x1xf32> to vector<16x128xf32>
    %284 = arith.divf %280, %283 : vector<16x128xf32>
    %c0_113 = arith.constant 0 : index
    %c0_114 = arith.constant 0 : index
    %285 = vector.load %arg20[%c0_113, %c0_114] : memref<16x128xf32, #tpu.memory_space<vmem>>, vector<16x128xf32>
    tpu.vector_store %arg20[%c0_113, %c0_114], %284 {strides = array<i32>} : memref<16x128xf32, #tpu.memory_space<vmem>>, vector<16x128xf32>,
    %c0_115 = arith.constant 0 : index
    %c0_116 = arith.constant 0 : index
    %286 = vector.load %arg14[%c0_115, %c0_116] : memref<32x32xf32, #tpu.memory_space<vmem>>, vector<32x32xf32>
    %cst_117 = arith.constant dense<0.000000e+00> : vector<16x32xf32>
    %287 = tpu.matmul %268, %286, %cst_117 {dimension_numbers = #tpu.dot_dimension_numbers<[1], [0], [0], [1], [0, 0, 1, 1], [], []>} : vector<16x32xf32>, vector<32x32xf32>, vector<16x32xf32> -> vector<16x32xf32>
    %c0_118 = arith.constant 0 : index
    %c0_119 = arith.constant 0 : index
    %288 = vector.load %arg15[%c0_118, %c0_119] : memref<1x32xf32, #tpu.memory_space<vmem>>, vector<1x32xf32>
    %289 = vector.broadcast %288 : vector<1x32xf32> to vector<16x32xf32>
    %290 = arith.addf %287, %289 : vector<16x32xf32>
    %cst_120 = arith.constant 0.000000e+00 : f32
    %291 = vector.broadcast %cst_120 : f32 to vector<16x32xf32>
    %292 = arith.maximumf %290, %291 : vector<16x32xf32>
    %c0_121 = arith.constant 0 : index
    %c0_122 = arith.constant 0 : index
    %293 = vector.load %arg16[%c0_121, %c0_122] : memref<1x32xf32, #tpu.memory_space<vmem>>, vector<1x32xf32>
    %c0_123 = arith.constant 0 : index
    %c0_124 = arith.constant 0 : index
    %294 = vector.load %arg17[%c0_123, %c0_124] : memref<1x32xf32, #tpu.memory_space<vmem>>, vector<1x32xf32>
    %cst_125 = arith.constant dense<0.000000e+00> : vector<16xf32>
    %295 = vector.multi_reduction <add>, %292, %cst_125 [1] : vector<16x32xf32> to vector<16xf32>
    %296 = vector.shape_cast %295 : vector<16xf32> to vector<16x1xf32>
    %cst_126 = arith.constant 3.200000e+01 : f32
    %297 = vector.broadcast %cst_126 : f32 to vector<16x1xf32>
    %298 = arith.divf %296, %297 : vector<16x1xf32>
    %299 = vector.broadcast %298 : vector<16x1xf32> to vector<16x32xf32>
    %300 = arith.subf %292, %299 : vector<16x32xf32>
    %301 = arith.mulf %300, %300 : vector<16x32xf32>
    %cst_127 = arith.constant dense<0.000000e+00> : vector<16xf32>
    %302 = vector.multi_reduction <add>, %301, %cst_127 [1] : vector<16x32xf32> to vector<16xf32>
    %303 = vector.shape_cast %302 : vector<16xf32> to vector<16x1xf32>
    %cst_128 = arith.constant 3.200000e+01 : f32
    %304 = vector.broadcast %cst_128 : f32 to vector<16x1xf32>
    %305 = arith.divf %303, %304 : vector<16x1xf32>
    %306 = vector.broadcast %298 : vector<16x1xf32> to vector<16x32xf32>
    %307 = arith.subf %292, %306 : vector<16x32xf32>
    %cst_129 = arith.constant 9.99999974E-6 : f32
    %308 = vector.broadcast %cst_129 : f32 to vector<16x1xf32>
    %309 = arith.addf %305, %308 : vector<16x1xf32>
    %310 = math.rsqrt %309 : vector<16x1xf32>
    %311 = vector.broadcast %310 : vector<16x1xf32> to vector<16x32xf32>
    %312 = arith.mulf %307, %311 : vector<16x32xf32>
    %313 = vector.broadcast %293 : vector<1x32xf32> to vector<16x32xf32>
    %314 = arith.mulf %312, %313 : vector<16x32xf32>
    %315 = vector.broadcast %294 : vector<1x32xf32> to vector<16x32xf32>
    %316 = arith.addf %314, %315 : vector<16x32xf32>
    %c0_130 = arith.constant 0 : index
    %c0_131 = arith.constant 0 : index
    %317 = vector.load %arg18[%c0_130, %c0_131] : memref<1x32xf32, #tpu.memory_space<vmem>>, vector<1x32xf32>
    %cst_132 = arith.constant dense<0.000000e+00> : vector<1x16xf32>
    %318 = tpu.matmul %317, %316, %cst_132 {dimension_numbers = #tpu.dot_dimension_numbers<[1], [1], [0], [0], [0, 0, 1, 0], [], []>} : vector<1x32xf32>, vector<16x32xf32>, vector<1x16xf32> -> vector<1x16xf32>
    %c0_133 = arith.constant 0 : index
    %c0_134 = arith.constant 0 : index
    %319 = vector.load %arg19[%c0_133, %c0_134] : memref<1x1xf32, #tpu.memory_space<vmem>>, vector<1x1xf32>
    %320 = vector.broadcast %319 : vector<1x1xf32> to vector<1x16xf32>
    %321 = arith.addf %318, %320 : vector<1x16xf32>
    %322 = math.tanh %321 : vector<1x16xf32>
    %c0_135 = arith.constant 0 : index
    %c0_136 = arith.constant 0 : index
    %323 = vector.load %arg21[%c0_135, %c0_136] : memref<1x16xf32, #tpu.memory_space<vmem>>, vector<1x16xf32>
    tpu.vector_store %arg21[%c0_135, %c0_136], %322 {strides = array<i32>} : memref<1x16xf32, #tpu.memory_space<vmem>>, vector<1x16xf32>,
    return
  }
}

</mosaic_0001>

<llo_original>
// kernel: tpu_custom_call.1
$region0: #{tpu_custom_call.1}
  #allocation0 [shape = 'u32[]', space=smem, size = 0x4, offset = 0x4, fixed_abs, tag = 'smem constant byte address 0x4 - core index']
  #allocation1 [shape = 'u32[144,128]{1,0:T(1,128)}', space=vmem, size = 0x12000, scoped, tag = 'internal scratch']
  #allocation2 [shape = 'f32[1,1]{1,0:T(1,128)S(1)}', space=vmem, size = 0x200, scoped, tag = 'scoped memory for tpu_custom_call.1']
  %s0 = inlined_call_operand.hbm [shape: f32[16,32], index: 0, kind: input, shape index: {}]
  %s1 = inlined_call_operand.hbm [shape: f32[16,16], index: 1, kind: input, shape index: {}]
  %s2 = inlined_call_operand.vmem [shape: f32[2,1,32], index: 2, kind: input, shape index: {}]
  %s3 = inlined_call_operand.hbm [shape: f32[2,1,32], index: 3, kind: input, shape index: {}]
  %s4 = inlined_call_operand.vmem [shape: f32[2,32,96], index: 4, kind: input, shape index: {}]
  %s5 = inlined_call_operand.vmem [shape: f32[2,32,32], index: 5, kind: input, shape index: {}]
  %s6 = inlined_call_operand.hbm [shape: f32[2,1,32], index: 6, kind: input, shape index: {}]
  %s7 = inlined_call_operand.hbm [shape: f32[2,1,32], index: 7, kind: input, shape index: {}]
  %s8 = inlined_call_operand.hbm [shape: f32[2,1,32], index: 8, kind: input, shape index: {}]
  %s9 = inlined_call_operand.vmem [shape: f32[2,32,64], index: 9, kind: input, shape index: {}]
  %s10 = inlined_call_operand.vmem [shape: f32[2,1,64], index: 10, kind: input, shape index: {}]
  %s11 = inlined_call_operand.vmem [shape: f32[2,64,32], index: 11, kind: input, shape index: {}]
  %s12 = inlined_call_operand.vmem [shape: f32[2,1,32], index: 12, kind: input, shape index: {}]
  %s13 = inlined_call_operand.vmem [shape: f32[32,128], index: 13, kind: input, shape index: {}]
  %s14 = inlined_call_operand.hbm [shape: f32[32,32], index: 14, kind: input, shape index: {}]
  %s15 = inlined_call_operand.vmem [shape: f32[1,32], index: 15, kind: input, shape index: {}]
  %s16 = inlined_call_operand.vmem [shape: f32[1,32], index: 16, kind: input, shape index: {}]
  %s17 = inlined_call_operand.vmem [shape: f32[1,32], index: 17, kind: input, shape index: {}]
  %s18 = inlined_call_operand.vmem [shape: f32[1,32], index: 18, kind: input, shape index: {}]
  %s19 = inlined_call_operand.<no memory space> [shape: f32[1,1], index: 19, kind: input, shape index: {}]
  %s20 = inlined_call_operand.hbm [shape: f32[16,128], index: 20, kind: output, shape index: {0}]
  %s21 = inlined_call_operand.hbm [shape: f32[1,16], index: 21, kind: output, shape index: {1}]
  %22 = xla_tuple %s20, %s21
  %s23 = sld [smem:[#allocation0]]
  $region126: #{tpu_custom_call.1} parent=0
    _
  %s25 = ssub.s32 1, %s23
  %s26 = scalar_select 0, %s25, %s23
  %v27 = vstv %s19
  %28 = vst [vmem:[#allocation2] sm:$0x1] %v27
  $region1: #{tpu_custom_call.1} parent=0
    #allocation3 [shape = 'u8[8192]{0}', space=vmem, size = 0x2000, scoped, tag = 'input window, operand 0, single buffered']
    #allocation4 [shape = 's32[1]{0}', space=sflag, size = 0x4, scoped, tag = 'scoped memory for tpu_custom_call.1']
    #allocation5 [shape = 's32[1]{0}', space=sflag, size = 0x4, scoped, tag = 'scoped memory for tpu_custom_call.1']
    #allocation6 [shape = 'u8[8192]{0}', space=vmem, size = 0x2000, scoped, tag = 'input window, operand 1, single buffered']
    #allocation7 [shape = 's32[1]{0}', space=sflag, size = 0x4, scoped, tag = 'scoped memory for tpu_custom_call.1']
    #allocation8 [shape = 'u8[1024]{0}', space=vmem, size = 0x400, scoped, tag = 'input window, operand 3, single buffered']
    #allocation9 [shape = 'u8[1024]{0}', space=vmem, size = 0x400, scoped, tag = 'input window, operand 6, single buffered']
    #allocation10 [shape = 's32[1]{0}', space=sflag, size = 0x4, scoped, tag = 'scoped memory for tpu_custom_call.1']
    #allocation11 [shape = 'u8[1024]{0}', space=vmem, size = 0x400, scoped, tag = 'input window, operand 7, single buffered']
    #allocation12 [shape = 'u8[1024]{0}', space=vmem, size = 0x400, scoped, tag = 'input window, operand 8, single buffered']
    #allocation13 [shape = 's32[1]{0}', space=sflag, size = 0x4, scoped, tag = 'scoped memory for tpu_custom_call.1']
    #allocation14 [shape = 'u8[16384]{0}', space=vmem, size = 0x4000, scoped, tag = 'input window, operand 14, single buffered']
    #allocation15 [shape = 'u8[8192]{0}', space=vmem, size = 0x2000, scoped, tag = 'output window, operand 0, single buffered']
    #allocation16 [shape = 'u8[512]{0}', space=vmem, size = 0x400, scoped, tag = 'output window, operand 1, single buffered']
    #allocation17 [shape = 's32[1]{0}', space=sflag, size = 0x4, scoped, tag = 'scoped memory for tpu_custom_call.1']
    %29 = vsyncpa [#allocation4], 0
    %30 = vsyncpa [#allocation7], 0
    %31 = vsyncpa [#allocation10], 0
    %32 = vsyncpa [#allocation13], 0
    %33 = vsyncpa [#allocation5], 0
    %34 = vsyncpa [#allocation17], 0
    // Predicated region
    $region2: #{tpu_custom_call.1} parent=1 // pred_check
      _
    $region3: #{tpu_custom_call.1} parent=1 // pred_check_branch
      %36 = sbr.rel (0) target = $region5
    $region4: #{tpu_custom_call.1} parent=1 // pred_region
      %s38 = ssub.s32 256, 256
      %39 = vsyncadd [#allocation4], %s38
      %s40 = sshll.u32 [#allocation3], 4
      %s41 = int_to_ptr.vmem [resolvable:$true] %s40
      %46 = dma.hbm_to_vmem [thread:$0]  %s0, 256, %s41, [#allocation4], 128, 128, 8
    $region5: #{tpu_custom_call.1} parent=1 // pred_fallthru
      _
    // Predicated region
    $region6: #{tpu_custom_call.1} parent=1 // pred_check
      _
    $region7: #{tpu_custom_call.1} parent=1 // pred_check_branch
      %48 = sbr.rel (0) target = $region9
    $region8: #{tpu_custom_call.1} parent=1 // pred_region
      %s50 = ssub.s32 256, 256
      %51 = vsyncadd [#allocation7], %s50
      %s52 = sshll.u32 [#allocation6], 4
      %s53 = int_to_ptr.vmem [resolvable:$true] %s52
      %58 = dma.hbm_to_vmem [thread:$0]  %s1, 256, %s53, [#allocation7], 128, 128, 8
    $region9: #{tpu_custom_call.1} parent=1 // pred_fallthru
      _
    // Predicated region
    $region10: #{tpu_custom_call.1} parent=1 // pred_check
      _
    $region11: #{tpu_custom_call.1} parent=1 // pred_check_branch
      %60 = sbr.rel (0) target = $region13
    $region12: #{tpu_custom_call.1} parent=1 // pred_region
      _
    $region13: #{tpu_custom_call.1} parent=1 // pred_fallthru
      _
    // Predicated region
    $region14: #{tpu_custom_call.1} parent=1 // pred_check
      _
    $region15: #{tpu_custom_call.1} parent=1 // pred_check_branch
      %62 = sbr.rel (0) target = $region17
    $region16: #{tpu_custom_call.1} parent=1 // pred_region
      %s64 = ssub.s32 32, 32
      %65 = vsyncadd [#allocation7], %s64
      %s66 = sshll.u32 [#allocation8], 4
      %s67 = int_to_ptr.vmem [resolvable:$true] %s66
      %72 = dma.hbm_to_vmem [thread:$0]  %s3, 32, %s67, [#allocation7], 16, 16, 1
    $region17: #{tpu_custom_call.1} parent=1 // pred_fallthru
      _
    // Predicated region
    $region18: #{tpu_custom_call.1} parent=1 // pred_check
      _
    $region19: #{tpu_custom_call.1} parent=1 // pred_check_branch
      %74 = sbr.rel (0) target = $region21
    $region20: #{tpu_custom_call.1} parent=1 // pred_region
      _
    $region21: #{tpu_custom_call.1} parent=1 // pred_fallthru
      _
    // Predicated region
    $region22: #{tpu_custom_call.1} parent=1 // pred_check
      _
    $region23: #{tpu_custom_call.1} parent=1 // pred_check_branch
      %76 = sbr.rel (0) target = $region25
    $region24: #{tpu_custom_call.1} parent=1 // pred_region
      _
    $region25: #{tpu_custom_call.1} parent=1 // pred_fallthru
      _
    // Predicated region
    $region26: #{tpu_custom_call.1} parent=1 // pred_check
      _
    $region27: #{tpu_custom_call.1} parent=1 // pred_check_branch
      %78 = sbr.rel (0) target = $region29
    $region28: #{tpu_custom_call.1} parent=1 // pred_region
      %s80 = ssub.s32 32, 32
      %81 = vsyncadd [#allocation10], %s80
      %s82 = sshll.u32 [#allocation9], 4
      %s83 = int_to_ptr.vmem [resolvable:$true] %s82
      %88 = dma.hbm_to_vmem [thread:$0]  %s6, 32, %s83, [#allocation10], 16, 16, 1
    $region29: #{tpu_custom_call.1} parent=1 // pred_fallthru
      _
    // Predicated region
    $region30: #{tpu_custom_call.1} parent=1 // pred_check
      _
    $region31: #{tpu_custom_call.1} parent=1 // pred_check_branch
      %90 = sbr.rel (0) target = $region33
    $region32: #{tpu_custom_call.1} parent=1 // pred_region
      %s92 = ssub.s32 32, 32
      %93 = vsyncadd [#allocation10], %s92
      %s94 = sshll.u32 [#allocation11], 4
      %s95 = int_to_ptr.vmem [resolvable:$true] %s94
      %100 = dma.hbm_to_vmem [thread:$0]  %s7, 32, %s95, [#allocation10], 16, 16, 1
    $region33: #{tpu_custom_call.1} parent=1 // pred_fallthru
      _
    // Predicated region
    $region34: #{tpu_custom_call.1} parent=1 // pred_check
      _
    $region35: #{tpu_custom_call.1} parent=1 // pred_check_branch
      %102 = sbr.rel (0) target = $region37
    $region36: #{tpu_custom_call.1} parent=1 // pred_region
      %s104 = ssub.s32 32, 32
      %105 = vsyncadd [#allocation13], %s104
      %s106 = sshll.u32 [#allocation12], 4
      %s107 = int_to_ptr.vmem [resolvable:$true] %s106
      %112 = dma.hbm_to_vmem [thread:$0]  %s8, 32, %s107, [#allocation13], 16, 16, 1
    $region37: #{tpu_custom_call.1} parent=1 // pred_fallthru
      _
    // Predicated region
    $region38: #{tpu_custom_call.1} parent=1 // pred_check
      _
    $region39: #{tpu_custom_call.1} parent=1 // pred_check_branch
      %114 = sbr.rel (0) target = $region41
    $region40: #{tpu_custom_call.1} parent=1 // pred_region
      _
    $region41: #{tpu_custom_call.1} parent=1 // pred_fallthru
      _
    // Predicated region
    $region42: #{tpu_custom_call.1} parent=1 // pred_check
      _
    $region43: #{tpu_custom_call.1} parent=1 // pred_check_branch
      %116 = sbr.rel (0) target = $region45
    $region44: #{tpu_custom_call.1} parent=1 // pred_region
      _
    $region45: #{tpu_custom_call.1} parent=1 // pred_fallthru
      _
    // Predicated region
    $region46: #{tpu_custom_call.1} parent=1 // pred_check
      _
    $region47: #{tpu_custom_call.1} parent=1 // pred_check_branch
      %118 = sbr.rel (0) target = $region49
    $region48: #{tpu_custom_call.1} parent=1 // pred_region
      _
    $region49: #{tpu_custom_call.1} parent=1 // pred_fallthru
      _
    // Predicated region
    $region50: #{tpu_custom_call.1} parent=1 // pred_check
      _
    $region51: #{tpu_custom_call.1} parent=1 // pred_check_branch
      %120 = sbr.rel (0) target = $region53
    $region52: #{tpu_custom_call.1} parent=1 // pred_region
      _
    $region53: #{tpu_custom_call.1} parent=1 // pred_fallthru
      _
    // Predicated region
    $region54: #{tpu_custom_call.1} parent=1 // pred_check
      _
    $region55: #{tpu_custom_call.1} parent=1 // pred_check_branch
      %122 = sbr.rel (0) target = $region57
    $region56: #{tpu_custom_call.1} parent=1 // pred_region
      _
    $region57: #{tpu_custom_call.1} parent=1 // pred_fallthru
      _
    // Predicated region
    $region58: #{tpu_custom_call.1} parent=1 // pred_check
      _
    $region59: #{tpu_custom_call.1} parent=1 // pred_check_branch
      %124 = sbr.rel (0) target = $region61
    $region60: #{tpu_custom_call.1} parent=1 // pred_region
      %s126 = ssub.s32 512, 512
      %127 = vsyncadd [#allocation13], %s126
      %s128 = sshll.u32 [#allocation14], 4
      %s129 = int_to_ptr.vmem [resolvable:$true] %s128
      %134 = dma.hbm_to_vmem [thread:$0]  %s14, 512, %s129, [#allocation13], 128, 128, 8
    $region61: #{tpu_custom_call.1} parent=1 // pred_fallthru
      _
    // Predicated region
    $region62: #{tpu_custom_call.1} parent=1 // pred_check
      _
    $region63: #{tpu_custom_call.1} parent=1 // pred_check_branch
      %136 = sbr.rel (0) target = $region65
    $region64: #{tpu_custom_call.1} parent=1 // pred_region
      _
    $region65: #{tpu_custom_call.1} parent=1 // pred_fallthru
      _
    // Predicated region
    $region66: #{tpu_custom_call.1} parent=1 // pred_check
      _
    $region67: #{tpu_custom_call.1} parent=1 // pred_check_branch
      %138 = sbr.rel (0) target = $region69
    $region68: #{tpu_custom_call.1} parent=1 // pred_region
      _
    $region69: #{tpu_custom_call.1} parent=1 // pred_fallthru
      _
    // Predicated region
    $region70: #{tpu_custom_call.1} parent=1 // pred_check
      _
    $region71: #{tpu_custom_call.1} parent=1 // pred_check_branch
      %140 = sbr.rel (0) target = $region73
    $region72: #{tpu_custom_call.1} parent=1 // pred_region
      _
    $region73: #{tpu_custom_call.1} parent=1 // pred_fallthru
      _
    // Predicated region
    $region74: #{tpu_custom_call.1} parent=1 // pred_check
      _
    $region75: #{tpu_custom_call.1} parent=1 // pred_check_branch
      %142 = sbr.rel (0) target = $region77
    $region76: #{tpu_custom_call.1} parent=1 // pred_region
      _
    $region77: #{tpu_custom_call.1} parent=1 // pred_fallthru
      _
    // Predicated region
    $region78: #{tpu_custom_call.1} parent=1 // pred_check
      _
    $region79: #{tpu_custom_call.1} parent=1 // pred_check_branch
      %144 = sbr.rel (0) target = $region81
    $region80: #{tpu_custom_call.1} parent=1 // pred_region
      _
    $region81: #{tpu_custom_call.1} parent=1 // pred_fallthru
      _
    // Predicated region
    $region82: #{tpu_custom_call.1} parent=1 // pred_check
      _
    $region83: #{tpu_custom_call.1} parent=1 // pred_check_branch
      %146 = sbr.rel (0) target = $region85
    $region84: #{tpu_custom_call.1} parent=1 // pred_region
      %147 = dma.done [#allocation4], 256
    $region85: #{tpu_custom_call.1} parent=1 // pred_fallthru
      _
    // Predicated region
    $region86: #{tpu_custom_call.1} parent=1 // pred_check
      _
    $region87: #{tpu_custom_call.1} parent=1 // pred_check_branch
      %149 = sbr.rel (0) target = $region89
    $region88: #{tpu_custom_call.1} parent=1 // pred_region
      %150 = dma.done [#allocation7], 256
    $region89: #{tpu_custom_call.1} parent=1 // pred_fallthru
      _
    // Predicated region
    $region90: #{tpu_custom_call.1} parent=1 // pred_check
      _
    $region91: #{tpu_custom_call.1} parent=1 // pred_check_branch
      %152 = sbr.rel (0) target = $region93
    $region92: #{tpu_custom_call.1} parent=1 // pred_region
      %153 = dma.done [#allocation7], 32
    $region93: #{tpu_custom_call.1} parent=1 // pred_fallthru
      _
    // Predicated region
    $region94: #{tpu_custom_call.1} parent=1 // pred_check
      _
    $region95: #{tpu_custom_call.1} parent=1 // pred_check_branch
      %155 = sbr.rel (0) target = $region97
    $region96: #{tpu_custom_call.1} parent=1 // pred_region
      %156 = dma.done [#allocation10], 32
    $region97: #{tpu_custom_call.1} parent=1 // pred_fallthru
      _
    // Predicated region
    $region98: #{tpu_custom_call.1} parent=1 // pred_check
      _
    $region99: #{tpu_custom_call.1} parent=1 // pred_check_branch
      %158 = sbr.rel (0) target = $region101
    $region100: #{tpu_custom_call.1} parent=1 // pred_region
      %159 = dma.done [#allocation10], 32
    $region101: #{tpu_custom_call.1} parent=1 // pred_fallthru
      _
    // Predicated region
    $region102: #{tpu_custom_call.1} parent=1 // pred_check
      _
    $region103: #{tpu_custom_call.1} parent=1 // pred_check_branch
      %161 = sbr.rel (0) target = $region105
    $region104: #{tpu_custom_call.1} parent=1 // pred_region
      %162 = dma.done [#allocation13], 32
    $region105: #{tpu_custom_call.1} parent=1 // pred_fallthru
      _
    // Predicated region
    $region106: #{tpu_custom_call.1} parent=1 // pred_check
      _
    $region107: #{tpu_custom_call.1} parent=1 // pred_check_branch
      %164 = sbr.rel (0) target = $region109
    $region108: #{tpu_custom_call.1} parent=1 // pred_region
      %165 = dma.done [#allocation13], 512
    $region109: #{tpu_custom_call.1} parent=1 // pred_fallthru
      _
    %v166 = vld [vmem:[#allocation3] sm:$0xff]
    %v167 = vld [vmem:[#allocation3 + $0x8] sm:$0xff]
    %v168 = vld [vmem:[#allocation6] sm:$0xff]
    %v169 = vld [vmem:[#allocation6 + $0x8] sm:$0xff]
    %v170 = vld [vmem:[%s2] sm:$0x1]
    %v171 = vld [vmem:[#allocation8] sm:$0x1]
    %vm172 = vcmask 261120
    %v173 = vsel %vm172, %v166, 0.0
    %174 = vadd.xlane.f32.xlu0 %v173
    %v175 = vpop.xlane.xlu0 %174
    %v176 = vsel %vm172, %v167, 0.0
    %177 = vadd.xlane.f32.xlu0 %v176
    %v178 = vpop.xlane.xlu0 %177
    %v179 = vrcp.pop 32.0
    %v180 = vmul.f32 %v175, %v179
    %v181 = vmul.f32 %v178, %v179
    %v182 = vsub.f32 %v166, %v180
    %v183 = vsub.f32 %v167, %v181
    %v184 = vmul.f32 %v182, %v182
    %v185 = vmul.f32 %v183, %v183
    %v186 = vsel %vm172, %v184, 0.0
    %187 = vadd.xlane.f32.xlu0 %v186
    %v188 = vpop.xlane.xlu0 %187
    %v189 = vsel %vm172, %v185, 0.0
    %190 = vadd.xlane.f32.xlu0 %v189
    %v191 = vpop.xlane.xlu0 %190
    %v192 = vmul.f32 %v188, %v179
    %v193 = vmul.f32 %v191, %v179
    %v194 = vadd.f32 %v192, 1e-05
    %v195 = vadd.f32 %v193, 1e-05
    %v196 = vrsqrt.pop %v194
    %v197 = vrsqrt.pop %v195
    %v198 = vmul.f32 %v182, %v196
    %v199 = vmul.f32 %v183, %v197
    %v201 = vlaneseq
    %v202 = vshrl.u32 %v201, 7
    %v203 = vsub.s32 0, %v202
    %v204 = vrot.slane %v170, %v203
    %v206 = vmul.f32 %v198, %v204
    %v207 = vmul.f32 %v199, %v204
    %v209 = vlaneseq
    %v210 = vshrl.u32 %v209, 7
    %v211 = vsub.s32 0, %v210
    %v212 = vrot.slane %v171, %v211
    %v214 = vadd.f32 %v206, %v212
    %v215 = vadd.f32 %v207, %v212
    %v216 = vld [vmem:[%s4] sm:$0xff]
    %v217 = vld [vmem:[%s4 + $0x8] sm:$0xff]
    %v218 = vld [vmem:[%s4 + $0x10] sm:$0xff]
    %v219 = vld [vmem:[%s4 + $0x18] sm:$0xff]
    %v221 = vsel %vm172, %v214, 0
    %v224 = vsel %vm172, %v215, 0
    %226 = vmatprep.subr.mxu0 0.0
    %227 = vmatpush1.msra.mxu0 %v216
    %228 = vmatprep.subr.mxu0 0.0
    %229 = vmatpush1.msra.mxu0 %v217
    %230 = vmatprep.subr.mxu0 0.0
    %231 = vmatpush1.msra.mxu0 %v218
    %232 = vmatprep.subr.mxu0 0.0
    %233 = vmatpush1.msra.mxu0 %v219
    %234 = vmatprep.subr.mxu0 0.0
    %235 = vmatpush1.msra.mxu0 0.0
    %236 = vmatprep.subr.mxu0 0.0
    %237 = vmatpush1.msra.mxu0 0.0
    %238 = vmatprep.subr.mxu0 0.0
    %239 = vmatpush1.msra.mxu0 0.0
    %240 = vmatprep.subr.mxu0 0.0
    %241 = vmatpush1.msra.mxu0 0.0
    %242 = vmatprep.subr.mxu0 0.0
    %243 = vmatpush1.msra.mxu0 0.0
    %244 = vmatprep.subr.mxu0 0.0
    %245 = vmatpush1.msra.mxu0 0.0
    %246 = vmatprep.subr.mxu0 0.0
    %247 = vmatpush1.msra.mxu0 0.0
    %248 = vmatprep.subr.mxu0 0.0
    %249 = vmatpush1.msra.mxu0 0.0
    %250 = vmatprep.subr.mxu0 0.0
    %251 = vmatpush1.msra.mxu0 0.0
    %252 = vmatprep.subr.mxu0 0.0
    %253 = vmatpush1.msra.mxu0 0.0
    %254 = vmatprep.subr.mxu0 0.0
    %255 = vmatpush1.msra.mxu0 0.0
    %256 = vmatprep.subr.mxu0 0.0
    %257 = vmatpush1.msra.mxu0 0.0
    %258 = vmatprep.subr.mxu0 0.0
    %259 = vmatpush1.msra.mxu0 0.0
    %260 = vmatprep.subr.mxu0 0.0
    %261 = vmatpush1.msra.mxu0 0.0
    %262 = vmatprep.subr.mxu0 0.0
    %263 = vmatpush1.msra.mxu0 0.0
    %264 = vmatprep.subr.mxu0 0.0
    %265 = vmatpush1.msra.mxu0 0.0
    %266 = vmatprep.subr.mxu0 0.0
    %267 = vmatpush1.msra.mxu0 0.0
    %268 = vmatprep.subr.mxu0 0.0
    %269 = vmatpush1.msra.mxu0 0.0
    %270 = vmatprep.subr.mxu0 0.0
    %271 = vmatpush1.msra.mxu0 0.0
    %272 = vmatprep.subr.mxu0 0.0
    %273 = vmatpush1.msra.mxu0 0.0
    %274 = vmatprep.subr.mxu0 0.0
    %275 = vmatpush1.msra.mxu0 0.0
    %276 = vmatprep.subr.mxu0 0.0
    %277 = vmatpush1.msra.mxu0 0.0
    %278 = vmatprep.subr.mxu0 0.0
    %279 = vmatpush1.msra.mxu0 0.0
    %280 = vmatprep.subr.mxu0 0.0
    %281 = vmatpush1.msra.mxu0 0.0
    %282 = vmatprep.subr.mxu0 0.0
    %283 = vmatpush1.msra.mxu0 0.0
    %284 = vmatprep.subr.mxu0 0.0
    %285 = vmatpush1.msra.mxu0 0.0
    %286 = vmatprep.subr.mxu0 0.0
    %287 = vmatpush1.msra.mxu0 0.0
    %288 = vmatprep.subr.mxu0 0.0
    %289 = vmatpush1.msra.mxu0 0.0
    %290 = vmatprep.mubr.f32.mxu0 0.0
    %291 = vmatmul.mubr.f32.gmra.mrb[0].mxu0 %v221
    %v292 = vpop.f32.mrb[0].mxu0
    %v293 = vadd.f32 0.0, %v292
    %v294 = vpop.f32.mrb[0].mxu0
    %295 = vmatprep.mubr.f32.mxu0 0.0
    %296 = vmatmul.mubr.f32.gmra.mrb[0].mxu0 %v224
    %v297 = vpop.f32.mrb[0].mxu0
    %v298 = vadd.f32 0.0, %v297
    %v299 = vpop.f32.mrb[0].mxu0
    %300 = vdwg.mxu0
    %303 = vrot.lane.b32.xlu0 %v293, 120
    %v304 = vpop.permute.xlu0 %303
    %305 = vrot.lane.b32.xlu0 %v298, 120
    %v306 = vpop.permute.xlu0 %305
    %307 = vrot.lane.b32.xlu0 %v293, 112
    %v308 = vpop.permute.xlu0 %307
    %309 = vrot.lane.b32.xlu0 %v298, 112
    %v310 = vpop.permute.xlu0 %309
    %311 = vrot.lane.b32.xlu0 %v293, 104
    %v312 = vpop.permute.xlu0 %311
    %313 = vrot.lane.b32.xlu0 %v298, 104
    %v314 = vpop.permute.xlu0 %313
    %315 = vrot.lane.b32.xlu0 %v293, 96
    %v316 = vpop.permute.xlu0 %315
    %317 = vrot.lane.b32.xlu0 %v298, 96
    %v318 = vpop.permute.xlu0 %317
    %319 = vrot.lane.b32.xlu0 %v293, 88
    %v320 = vpop.permute.xlu0 %319
    %321 = vrot.lane.b32.xlu0 %v298, 88
    %v322 = vpop.permute.xlu0 %321
    %323 = vrot.lane.b32.xlu0 %v293, 80
    %v324 = vpop.permute.xlu0 %323
    %325 = vrot.lane.b32.xlu0 %v298, 80
    %v326 = vpop.permute.xlu0 %325
    %327 = vrot.lane.b32.xlu0 %v293, 72
    %v328 = vpop.permute.xlu0 %327
    %329 = vrot.lane.b32.xlu0 %v298, 72
    %v330 = vpop.permute.xlu0 %329
    %331 = vrot.lane.b32.xlu0 %v293, 64
    %v332 = vpop.permute.xlu0 %331
    %333 = vrot.lane.b32.xlu0 %v298, 64
    %v334 = vpop.permute.xlu0 %333
    %337 = vrot.lane.b32.xlu0 %v293, 56
    %v338 = vpop.permute.xlu0 %337
    %339 = vrot.lane.b32.xlu0 %v298, 56
    %v340 = vpop.permute.xlu0 %339
    %343 = vrot.lane.b32.xlu0 %v293, 48
    %v344 = vpop.permute.xlu0 %343
    %345 = vrot.lane.b32.xlu0 %v298, 48
    %v346 = vpop.permute.xlu0 %345
    %349 = vrot.lane.b32.xlu0 %v293, 40
    %v350 = vpop.permute.xlu0 %349
    %351 = vrot.lane.b32.xlu0 %v298, 40
    %v352 = vpop.permute.xlu0 %351
    %vm355 = vcmask 64512
    %v356 = vsel %vm355, %v293, 0
    %v358 = vsel %vm355, %v298, 0
    %v360 = vsel %vm355, %v316, 0
    %v362 = vsel %vm355, %v318, 0
    %364 = vmatprep.subr.mxu0 0.0
    %365 = vmatpush1.xpose.msra.mxu0 %v360
    %366 = vmatprep.subr.mxu0 0.0
    %367 = vmatpush1.xpose.msra.mxu0 %v362
    %368 = vmatprep.subr.mxu0 0.0
    %369 = vmatpush1.xpose.msra.mxu0 0.0
    %370 = vmatprep.subr.mxu0 0.0
    %371 = vmatpush1.xpose.msra.mxu0 0.0
    %372 = vmatprep.subr.mxu0 0.0
    %373 = vmatpush1.xpose.msra.mxu0 0.0
    %374 = vmatprep.subr.mxu0 0.0
    %375 = vmatpush1.xpose.msra.mxu0 0.0
    %376 = vmatprep.subr.mxu0 0.0
    %377 = vmatpush1.xpose.msra.mxu0 0.0
    %378 = vmatprep.subr.mxu0 0.0
    %379 = vmatpush1.xpose.msra.mxu0 0.0
    %380 = vmatprep.subr.mxu0 0.0
    %381 = vmatpush1.xpose.msra.mxu0 0.0
    %382 = vmatprep.subr.mxu0 0.0
    %383 = vmatpush1.xpose.msra.mxu0 0.0
    %384 = vmatprep.subr.mxu0 0.0
    %385 = vmatpush1.xpose.msra.mxu0 0.0
    %386 = vmatprep.subr.mxu0 0.0
    %387 = vmatpush1.xpose.msra.mxu0 0.0
    %388 = vmatprep.subr.mxu0 0.0
    %389 = vmatpush1.xpose.msra.mxu0 0.0
    %390 = vmatprep.subr.mxu0 0.0
    %391 = vmatpush1.xpose.msra.mxu0 0.0
    %392 = vmatprep.subr.mxu0 0.0
    %393 = vmatpush1.xpose.msra.mxu0 0.0
    %394 = vmatprep.subr.mxu0 0.0
    %395 = vmatpush1.xpose.msra.mxu0 0.0
    %396 = vmatprep.subr.mxu0 0.0
    %397 = vmatpush1.xpose.msra.mxu0 0.0
    %398 = vmatprep.subr.mxu0 0.0
    %399 = vmatpush1.xpose.msra.mxu0 0.0
    %400 = vmatprep.subr.mxu0 0.0
    %401 = vmatpush1.xpose.msra.mxu0 0.0
    %402 = vmatprep.subr.mxu0 0.0
    %403 = vmatpush1.xpose.msra.mxu0 0.0
    %404 = vmatprep.subr.mxu0 0.0
    %405 = vmatpush1.xpose.msra.mxu0 0.0
    %406 = vmatprep.subr.mxu0 0.0
    %407 = vmatpush1.xpose.msra.mxu0 0.0
    %408 = vmatprep.subr.mxu0 0.0
    %409 = vmatpush1.xpose.msra.mxu0 0.0
    %410 = vmatprep.subr.mxu0 0.0
    %411 = vmatpush1.xpose.msra.mxu0 0.0
    %412 = vmatprep.subr.mxu0 0.0
    %413 = vmatpush1.xpose.msra.mxu0 0.0
    %414 = vmatprep.subr.mxu0 0.0
    %415 = vmatpush1.xpose.msra.mxu0 0.0
    %416 = vmatprep.subr.mxu0 0.0
    %417 = vmatpush1.xpose.msra.mxu0 0.0
    %418 = vmatprep.subr.mxu0 0.0
    %419 = vmatpush1.xpose.msra.mxu0 0.0
    %420 = vmatprep.subr.mxu0 0.0
    %421 = vmatpush1.xpose.msra.mxu0 0.0
    %422 = vmatprep.subr.mxu0 0.0
    %423 = vmatpush1.xpose.msra.mxu0 0.0
    %424 = vmatprep.subr.mxu0 0.0
    %425 = vmatpush1.xpose.msra.mxu0 0.0
    %426 = vmatprep.subr.mxu0 0.0
    %427 = vmatpush1.xpose.msra.mxu0 0.0
    %428 = vmatprep.mubr.f32.mxu0 0.0
    %429 = vmatmul.mubr.f32.gmra.mrb[0].mxu0 %v356
    %v430 = vpop.f32.mrb[0].mxu0
    %v431 = vadd.f32 0.0, %v430
    %v432 = vpop.f32.mrb[0].mxu0
    %433 = vmatprep.mubr.f32.mxu0 0.0
    %434 = vmatmul.mubr.f32.gmra.mrb[0].mxu0 %v358
    %v435 = vpop.f32.mrb[0].mxu0
    %v436 = vadd.f32 0.0, %v435
    %v437 = vpop.f32.mrb[0].mxu0
    %438 = vdwg.mxu0
    %v439 = vsel %vm355, %v304, 0
    %v441 = vsel %vm355, %v306, 0
    %v443 = vsel %vm355, %v320, 0
    %v445 = vsel %vm355, %v322, 0
    %447 = vmatprep.subr.mxu0 0.0
    %448 = vmatpush1.xpose.msra.mxu0 %v443
    %449 = vmatprep.subr.mxu0 0.0
    %450 = vmatpush1.xpose.msra.mxu0 %v445
    %451 = vmatprep.subr.mxu0 0.0
    %452 = vmatpush1.xpose.msra.mxu0 0.0
    %453 = vmatprep.subr.mxu0 0.0
    %454 = vmatpush1.xpose.msra.mxu0 0.0
    %455 = vmatprep.subr.mxu0 0.0
    %456 = vmatpush1.xpose.msra.mxu0 0.0
    %457 = vmatprep.subr.mxu0 0.0
    %458 = vmatpush1.xpose.msra.mxu0 0.0
    %459 = vmatprep.subr.mxu0 0.0
    %460 = vmatpush1.xpose.msra.mxu0 0.0
    %461 = vmatprep.subr.mxu0 0.0
    %462 = vmatpush1.xpose.msra.mxu0 0.0
    %463 = vmatprep.subr.mxu0 0.0
    %464 = vmatpush1.xpose.msra.mxu0 0.0
    %465 = vmatprep.subr.mxu0 0.0
    %466 = vmatpush1.xpose.msra.mxu0 0.0
    %467 = vmatprep.subr.mxu0 0.0
    %468 = vmatpush1.xpose.msra.mxu0 0.0
    %469 = vmatprep.subr.mxu0 0.0
    %470 = vmatpush1.xpose.msra.mxu0 0.0
    %471 = vmatprep.subr.mxu0 0.0
    %472 = vmatpush1.xpose.msra.mxu0 0.0
    %473 = vmatprep.subr.mxu0 0.0
    %474 = vmatpush1.xpose.msra.mxu0 0.0
    %475 = vmatprep.subr.mxu0 0.0
    %476 = vmatpush1.xpose.msra.mxu0 0.0
    %477 = vmatprep.subr.mxu0 0.0
    %478 = vmatpush1.xpose.msra.mxu0 0.0
    %479 = vmatprep.subr.mxu0 0.0
    %480 = vmatpush1.xpose.msra.mxu0 0.0
    %481 = vmatprep.subr.mxu0 0.0
    %482 = vmatpush1.xpose.msra.mxu0 0.0
    %483 = vmatprep.subr.mxu0 0.0
    %484 = vmatpush1.xpose.msra.mxu0 0.0
    %485 = vmatprep.subr.mxu0 0.0
    %486 = vmatpush1.xpose.msra.mxu0 0.0
    %487 = vmatprep.subr.mxu0 0.0
    %488 = vmatpush1.xpose.msra.mxu0 0.0
    %489 = vmatprep.subr.mxu0 0.0
    %490 = vmatpush1.xpose.msra.mxu0 0.0
    %491 = vmatprep.subr.mxu0 0.0
    %492 = vmatpush1.xpose.msra.mxu0 0.0
    %493 = vmatprep.subr.mxu0 0.0
    %494 = vmatpush1.xpose.msra.mxu0 0.0
    %495 = vmatprep.subr.mxu0 0.0
    %496 = vmatpush1.xpose.msra.mxu0 0.0
    %497 = vmatprep.subr.mxu0 0.0
    %498 = vmatpush1.xpose.msra.mxu0 0.0
    %499 = vmatprep.subr.mxu0 0.0
    %500 = vmatpush1.xpose.msra.mxu0 0.0
    %501 = vmatprep.subr.mxu0 0.0
    %502 = vmatpush1.xpose.msra.mxu0 0.0
    %503 = vmatprep.subr.mxu0 0.0
    %504 = vmatpush1.xpose.msra.mxu0 0.0
    %505 = vmatprep.subr.mxu0 0.0
    %506 = vmatpush1.xpose.msra.mxu0 0.0
    %507 = vmatprep.subr.mxu0 0.0
    %508 = vmatpush1.xpose.msra.mxu0 0.0
    %509 = vmatprep.subr.mxu0 0.0
    %510 = vmatpush1.xpose.msra.mxu0 0.0
    %511 = vmatprep.mubr.f32.mxu0 0.0
    %512 = vmatmul.mubr.f32.gmra.mrb[0].mxu0 %v439
    %v513 = vpop.f32.mrb[0].mxu0
    %v514 = vadd.f32 0.0, %v513
    %v515 = vpop.f32.mrb[0].mxu0
    %516 = vmatprep.mubr.f32.mxu0 0.0
    %517 = vmatmul.mubr.f32.gmra.mrb[0].mxu0 %v441
    %v518 = vpop.f32.mrb[0].mxu0
    %v519 = vadd.f32 0.0, %v518
    %v520 = vpop.f32.mrb[0].mxu0
    %521 = vdwg.mxu0
    %v522 = vsel %vm355, %v308, 0
    %v524 = vsel %vm355, %v310, 0
    %v526 = vsel %vm355, %v324, 0
    %v528 = vsel %vm355, %v326, 0
    %530 = vmatprep.subr.mxu0 0.0
    %531 = vmatpush1.xpose.msra.mxu0 %v526
    %532 = vmatprep.subr.mxu0 0.0
    %533 = vmatpush1.xpose.msra.mxu0 %v528
    %534 = vmatprep.subr.mxu0 0.0
    %535 = vmatpush1.xpose.msra.mxu0 0.0
    %536 = vmatprep.subr.mxu0 0.0
    %537 = vmatpush1.xpose.msra.mxu0 0.0
    %538 = vmatprep.subr.mxu0 0.0
    %539 = vmatpush1.xpose.msra.mxu0 0.0
    %540 = vmatprep.subr.mxu0 0.0
    %541 = vmatpush1.xpose.msra.mxu0 0.0
    %542 = vmatprep.subr.mxu0 0.0
    %543 = vmatpush1.xpose.msra.mxu0 0.0
    %544 = vmatprep.subr.mxu0 0.0
    %545 = vmatpush1.xpose.msra.mxu0 0.0
    %546 = vmatprep.subr.mxu0 0.0
    %547 = vmatpush1.xpose.msra.mxu0 0.0
    %548 = vmatprep.subr.mxu0 0.0
    %549 = vmatpush1.xpose.msra.mxu0 0.0
    %550 = vmatprep.subr.mxu0 0.0
    %551 = vmatpush1.xpose.msra.mxu0 0.0
    %552 = vmatprep.subr.mxu0 0.0
    %553 = vmatpush1.xpose.msra.mxu0 0.0
    %554 = vmatprep.subr.mxu0 0.0
    %555 = vmatpush1.xpose.msra.mxu0 0.0
    %556 = vmatprep.subr.mxu0 0.0
    %557 = vmatpush1.xpose.msra.mxu0 0.0
    %558 = vmatprep.subr.mxu0 0.0
    %559 = vmatpush1.xpose.msra.mxu0 0.0
    %560 = vmatprep.subr.mxu0 0.0
    %561 = vmatpush1.xpose.msra.mxu0 0.0
    %562 = vmatprep.subr.mxu0 0.0
    %563 = vmatpush1.xpose.msra.mxu0 0.0
    %564 = vmatprep.subr.mxu0 0.0
    %565 = vmatpush1.xpose.msra.mxu0 0.0
    %566 = vmatprep.subr.mxu0 0.0
    %567 = vmatpush1.xpose.msra.mxu0 0.0
    %568 = vmatprep.subr.mxu0 0.0
    %569 = vmatpush1.xpose.msra.mxu0 0.0
    %570 = vmatprep.subr.mxu0 0.0
    %571 = vmatpush1.xpose.msra.mxu0 0.0
    %572 = vmatprep.subr.mxu0 0.0
    %573 = vmatpush1.xpose.msra.mxu0 0.0
    %574 = vmatprep.subr.mxu0 0.0
    %575 = vmatpush1.xpose.msra.mxu0 0.0
    %576 = vmatprep.subr.mxu0 0.0
    %577 = vmatpush1.xpose.msra.mxu0 0.0
    %578 = vmatprep.subr.mxu0 0.0
    %579 = vmatpush1.xpose.msra.mxu0 0.0
    %580 = vmatprep.subr.mxu0 0.0
    %581 = vmatpush1.xpose.msra.mxu0 0.0
    %582 = vmatprep.subr.mxu0 0.0
    %583 = vmatpush1.xpose.msra.mxu0 0.0
    %584 = vmatprep.subr.mxu0 0.0
    %585 = vmatpush1.xpose.msra.mxu0 0.0
    %586 = vmatprep.subr.mxu0 0.0
    %587 = vmatpush1.xpose.msra.mxu0 0.0
    %588 = vmatprep.subr.mxu0 0.0
    %589 = vmatpush1.xpose.msra.mxu0 0.0
    %590 = vmatprep.subr.mxu0 0.0
    %591 = vmatpush1.xpose.msra.mxu0 0.0
    %592 = vmatprep.subr.mxu0 0.0
    %593 = vmatpush1.xpose.msra.mxu0 0.0
    %594 = vmatprep.mubr.f32.mxu0 0.0
    %595 = vmatmul.mubr.f32.gmra.mrb[0].mxu0 %v522
    %v596 = vpop.f32.mrb[0].mxu0
    %v597 = vadd.f32 0.0, %v596
    %v598 = vpop.f32.mrb[0].mxu0
    %599 = vmatprep.mubr.f32.mxu0 0.0
    %600 = vmatmul.mubr.f32.gmra.mrb[0].mxu0 %v524
    %v601 = vpop.f32.mrb[0].mxu0
    %v602 = vadd.f32 0.0, %v601
    %v603 = vpop.f32.mrb[0].mxu0
    %604 = vdwg.mxu0
    %v605 = vsel %vm355, %v312, 0
    %v607 = vsel %vm355, %v314, 0
    %v609 = vsel %vm355, %v328, 0
    %v611 = vsel %vm355, %v330, 0
    %613 = vmatprep.subr.mxu0 0.0
    %614 = vmatpush1.xpose.msra.mxu0 %v609
    %615 = vmatprep.subr.mxu0 0.0
    %616 = vmatpush1.xpose.msra.mxu0 %v611
    %617 = vmatprep.subr.mxu0 0.0
    %618 = vmatpush1.xpose.msra.mxu0 0.0
    %619 = vmatprep.subr.mxu0 0.0
    %620 = vmatpush1.xpose.msra.mxu0 0.0
    %621 = vmatprep.subr.mxu0 0.0
    %622 = vmatpush1.xpose.msra.mxu0 0.0
    %623 = vmatprep.subr.mxu0 0.0
    %624 = vmatpush1.xpose.msra.mxu0 0.0
    %625 = vmatprep.subr.mxu0 0.0
    %626 = vmatpush1.xpose.msra.mxu0 0.0
    %627 = vmatprep.subr.mxu0 0.0
    %628 = vmatpush1.xpose.msra.mxu0 0.0
    %629 = vmatprep.subr.mxu0 0.0
    %630 = vmatpush1.xpose.msra.mxu0 0.0
    %631 = vmatprep.subr.mxu0 0.0
    %632 = vmatpush1.xpose.msra.mxu0 0.0
    %633 = vmatprep.subr.mxu0 0.0
    %634 = vmatpush1.xpose.msra.mxu0 0.0
    %635 = vmatprep.subr.mxu0 0.0
    %636 = vmatpush1.xpose.msra.mxu0 0.0
    %637 = vmatprep.subr.mxu0 0.0
    %638 = vmatpush1.xpose.msra.mxu0 0.0
    %639 = vmatprep.subr.mxu0 0.0
    %640 = vmatpush1.xpose.msra.mxu0 0.0
    %641 = vmatprep.subr.mxu0 0.0
    %642 = vmatpush1.xpose.msra.mxu0 0.0
    %643 = vmatprep.subr.mxu0 0.0
    %644 = vmatpush1.xpose.msra.mxu0 0.0
    %645 = vmatprep.subr.mxu0 0.0
    %646 = vmatpush1.xpose.msra.mxu0 0.0
    %647 = vmatprep.subr.mxu0 0.0
    %648 = vmatpush1.xpose.msra.mxu0 0.0
    %649 = vmatprep.subr.mxu0 0.0
    %650 = vmatpush1.xpose.msra.mxu0 0.0
    %651 = vmatprep.subr.mxu0 0.0
    %652 = vmatpush1.xpose.msra.mxu0 0.0
    %653 = vmatprep.subr.mxu0 0.0
    %654 = vmatpush1.xpose.msra.mxu0 0.0
    %655 = vmatprep.subr.mxu0 0.0
    %656 = vmatpush1.xpose.msra.mxu0 0.0
    %657 = vmatprep.subr.mxu0 0.0
    %658 = vmatpush1.xpose.msra.mxu0 0.0
    %659 = vmatprep.subr.mxu0 0.0
    %660 = vmatpush1.xpose.msra.mxu0 0.0
    %661 = vmatprep.subr.mxu0 0.0
    %662 = vmatpush1.xpose.msra.mxu0 0.0
    %663 = vmatprep.subr.mxu0 0.0
    %664 = vmatpush1.xpose.msra.mxu0 0.0
    %665 = vmatprep.subr.mxu0 0.0
    %666 = vmatpush1.xpose.msra.mxu0 0.0
    %667 = vmatprep.subr.mxu0 0.0
    %668 = vmatpush1.xpose.msra.mxu0 0.0
    %669 = vmatprep.subr.mxu0 0.0
    %670 = vmatpush1.xpose.msra.mxu0 0.0
    %671 = vmatprep.subr.mxu0 0.0
    %672 = vmatpush1.xpose.msra.mxu0 0.0
    %673 = vmatprep.subr.mxu0 0.0
    %674 = vmatpush1.xpose.msra.mxu0 0.0
    %675 = vmatprep.subr.mxu0 0.0
    %676 = vmatpush1.xpose.msra.mxu0 0.0
    %677 = vmatprep.mubr.f32.mxu0 0.0
    %678 = vmatmul.mubr.f32.gmra.mrb[0].mxu0 %v605
    %v679 = vpop.f32.mrb[0].mxu0
    %v680 = vadd.f32 0.0, %v679
    %v681 = vpop.f32.mrb[0].mxu0
    %682 = vmatprep.mubr.f32.mxu0 0.0
    %683 = vmatmul.mubr.f32.gmra.mrb[0].mxu0 %v607
    %v684 = vpop.f32.mrb[0].mxu0
    %v685 = vadd.f32 0.0, %v684
    %v686 = vpop.f32.mrb[0].mxu0
    %687 = vdwg.mxu0
    %v688 = vmul.f32 %v431, 0.35355338
    %v689 = vmul.f32 %v436, 0.35355338
    %v690 = vmul.f32 %v514, 0.35355338
    %v691 = vmul.f32 %v519, 0.35355338
    %v692 = vmul.f32 %v597, 0.35355338
    %v693 = vmul.f32 %v602, 0.35355338
    %v694 = vmul.f32 %v680, 0.35355338
    %v695 = vmul.f32 %v685, 0.35355338
    %v696 = vadd.f32 %v688, %v168
    %v697 = vadd.f32 %v689, %v169
    %v698 = vadd.f32 %v690, %v168
    %v699 = vadd.f32 %v691, %v169
    %v700 = vadd.f32 %v692, %v168
    %v701 = vadd.f32 %v693, %v169
    %v702 = vadd.f32 %v694, %v168
    %v703 = vadd.f32 %v695, %v169
    %vm704 = vcmask 130048
    %v705 = vsel %vm704, %v696, -inf
    %706 = vmax.xlane.f32.xlu0 %v705
    %v707 = vpop.xlane.xlu0 %706
    %v708 = vsel %vm704, %v697, -inf
    %709 = vmax.xlane.f32.xlu0 %v708
    %v710 = vpop.xlane.xlu0 %709
    %v711 = vsel %vm704, %v698, -inf
    %712 = vmax.xlane.f32.xlu0 %v711
    %v713 = vpop.xlane.xlu0 %712
    %v714 = vsel %vm704, %v699, -inf
    %715 = vmax.xlane.f32.xlu0 %v714
    %v716 = vpop.xlane.xlu0 %715
    %v717 = vsel %vm704, %v700, -inf
    %718 = vmax.xlane.f32.xlu0 %v717
    %v719 = vpop.xlane.xlu0 %718
    %v720 = vsel %vm704, %v701, -inf
    %721 = vmax.xlane.f32.xlu0 %v720
    %v722 = vpop.xlane.xlu0 %721
    %v723 = vsel %vm704, %v702, -inf
    %724 = vmax.xlane.f32.xlu0 %v723
    %v725 = vpop.xlane.xlu0 %724
    %v726 = vsel %vm704, %v703, -inf
    %727 = vmax.xlane.f32.xlu0 %v726
    %v728 = vpop.xlane.xlu0 %727
    %v729 = vsub.f32 %v696, %v707
    %v730 = vsub.f32 %v697, %v710
    %v731 = vsub.f32 %v698, %v713
    %v732 = vsub.f32 %v699, %v716
    %v733 = vsub.f32 %v700, %v719
    %v734 = vsub.f32 %v701, %v722
    %v735 = vsub.f32 %v702, %v725
    %v736 = vsub.f32 %v703, %v728
    %v737 = vmul.f32 %v729, 1.442695
    %v738 = vpow.pop %v737
    %v739 = vmul.f32 %v730, 1.442695
    %v740 = vpow.pop %v739
    %v741 = vmul.f32 %v731, 1.442695
    %v742 = vpow.pop %v741
    %v743 = vmul.f32 %v732, 1.442695
    %v744 = vpow.pop %v743
    %v745 = vmul.f32 %v733, 1.442695
    %v746 = vpow.pop %v745
    %v747 = vmul.f32 %v734, 1.442695
    %v748 = vpow.pop %v747
    %v749 = vmul.f32 %v735, 1.442695
    %v750 = vpow.pop %v749
    %v751 = vmul.f32 %v736, 1.442695
    %v752 = vpow.pop %v751
    %v753 = vsel %vm704, %v738, 0.0
    %754 = vadd.xlane.f32.xlu0 %v753
    %v755 = vpop.xlane.xlu0 %754
    %v756 = vsel %vm704, %v740, 0.0
    %757 = vadd.xlane.f32.xlu0 %v756
    %v758 = vpop.xlane.xlu0 %757
    %v759 = vsel %vm704, %v742, 0.0
    %760 = vadd.xlane.f32.xlu0 %v759
    %v761 = vpop.xlane.xlu0 %760
    %v762 = vsel %vm704, %v744, 0.0
    %763 = vadd.xlane.f32.xlu0 %v762
    %v764 = vpop.xlane.xlu0 %763
    %v765 = vsel %vm704, %v746, 0.0
    %766 = vadd.xlane.f32.xlu0 %v765
    %v767 = vpop.xlane.xlu0 %766
    %v768 = vsel %vm704, %v748, 0.0
    %769 = vadd.xlane.f32.xlu0 %v768
    %v770 = vpop.xlane.xlu0 %769
    %v771 = vsel %vm704, %v750, 0.0
    %772 = vadd.xlane.f32.xlu0 %v771
    %v773 = vpop.xlane.xlu0 %772
    %v774 = vsel %vm704, %v752, 0.0
    %775 = vadd.xlane.f32.xlu0 %v774
    %v776 = vpop.xlane.xlu0 %775
    %v777 = vrcp.pop %v755
    %v778 = vrcp.pop %v758
    %v779 = vrcp.pop %v761
    %v780 = vrcp.pop %v764
    %v781 = vrcp.pop %v767
    %v782 = vrcp.pop %v770
    %v783 = vrcp.pop %v773
    %v784 = vrcp.pop %v776
    %v785 = vmul.f32 %v738, %v777
    %v786 = vmul.f32 %v740, %v778
    %v787 = vmul.f32 %v742, %v779
    %v788 = vmul.f32 %v744, %v780
    %v789 = vmul.f32 %v746, %v781
    %v790 = vmul.f32 %v748, %v782
    %v791 = vmul.f32 %v750, %v783
    %v792 = vmul.f32 %v752, %v784
    %v794 = vsel %vm704, %v785, 0
    %v797 = vsel %vm704, %v786, 0
    %799 = vmatprep.subr.mxu0 0.0
    %800 = vmatpush1.msra.mxu0 %v332
    %801 = vmatprep.subr.mxu0 0.0
    %802 = vmatpush1.msra.mxu0 %v334
    %803 = vmatprep.subr.mxu0 0.0
    %804 = vmatpush1.msra.mxu0 0.0
    %805 = vmatprep.subr.mxu0 0.0
    %806 = vmatpush1.msra.mxu0 0.0
    %807 = vmatprep.subr.mxu0 0.0
    %808 = vmatpush1.msra.mxu0 0.0
    %809 = vmatprep.subr.mxu0 0.0
    %810 = vmatpush1.msra.mxu0 0.0
    %811 = vmatprep.subr.mxu0 0.0
    %812 = vmatpush1.msra.mxu0 0.0
    %813 = vmatprep.subr.mxu0 0.0
    %814 = vmatpush1.msra.mxu0 0.0
    %815 = vmatprep.subr.mxu0 0.0
    %816 = vmatpush1.msra.mxu0 0.0
    %817 = vmatprep.subr.mxu0 0.0
    %818 = vmatpush1.msra.mxu0 0.0
    %819 = vmatprep.subr.mxu0 0.0
    %820 = vmatpush1.msra.mxu0 0.0
    %821 = vmatprep.subr.mxu0 0.0
    %822 = vmatpush1.msra.mxu0 0.0
    %823 = vmatprep.subr.mxu0 0.0
    %824 = vmatpush1.msra.mxu0 0.0
    %825 = vmatprep.subr.mxu0 0.0
    %826 = vmatpush1.msra.mxu0 0.0
    %827 = vmatprep.subr.mxu0 0.0
    %828 = vmatpush1.msra.mxu0 0.0
    %829 = vmatprep.subr.mxu0 0.0
    %830 = vmatpush1.msra.mxu0 0.0
    %831 = vmatprep.subr.mxu0 0.0
    %832 = vmatpush1.msra.mxu0 0.0
    %833 = vmatprep.subr.mxu0 0.0
    %834 = vmatpush1.msra.mxu0 0.0
    %835 = vmatprep.subr.mxu0 0.0
    %836 = vmatpush1.msra.mxu0 0.0
    %837 = vmatprep.subr.mxu0 0.0
    %838 = vmatpush1.msra.mxu0 0.0
    %839 = vmatprep.subr.mxu0 0.0
    %840 = vmatpush1.msra.mxu0 0.0
    %841 = vmatprep.subr.mxu0 0.0
    %842 = vmatpush1.msra.mxu0 0.0
    %843 = vmatprep.subr.mxu0 0.0
    %844 = vmatpush1.msra.mxu0 0.0
    %845 = vmatprep.subr.mxu0 0.0
    %846 = vmatpush1.msra.mxu0 0.0
    %847 = vmatprep.subr.mxu0 0.0
    %848 = vmatpush1.msra.mxu0 0.0
    %849 = vmatprep.subr.mxu0 0.0
    %850 = vmatpush1.msra.mxu0 0.0
    %851 = vmatprep.subr.mxu0 0.0
    %852 = vmatpush1.msra.mxu0 0.0
    %853 = vmatprep.subr.mxu0 0.0
    %854 = vmatpush1.msra.mxu0 0.0
    %855 = vmatprep.subr.mxu0 0.0
    %856 = vmatpush1.msra.mxu0 0.0
    %857 = vmatprep.subr.mxu0 0.0
    %858 = vmatpush1.msra.mxu0 0.0
    %859 = vmatprep.subr.mxu0 0.0
    %860 = vmatpush1.msra.mxu0 0.0
    %861 = vmatprep.subr.mxu0 0.0
    %862 = vmatpush1.msra.mxu0 0.0
    %863 = vmatprep.mubr.f32.mxu0 0.0
    %864 = vmatmul.mubr.f32.gmra.mrb[0].mxu0 %v794
    %v865 = vpop.f32.mrb[0].mxu0
    %v866 = vadd.f32 0.0, %v865
    %v867 = vpop.f32.mrb[0].mxu0
    %868 = vmatprep.mubr.f32.mxu0 0.0
    %869 = vmatmul.mubr.f32.gmra.mrb[0].mxu0 %v797
    %v870 = vpop.f32.mrb[0].mxu0
    %v871 = vadd.f32 0.0, %v870
    %v872 = vpop.f32.mrb[0].mxu0
    %873 = vdwg.mxu0
    %v875 = vsel %vm704, %v787, 0
    %v878 = vsel %vm704, %v788, 0
    %880 = vmatprep.subr.mxu0 0.0
    %881 = vmatpush1.msra.mxu0 %v338
    %882 = vmatprep.subr.mxu0 0.0
    %883 = vmatpush1.msra.mxu0 %v340
    %884 = vmatprep.subr.mxu0 0.0
    %885 = vmatpush1.msra.mxu0 0.0
    %886 = vmatprep.subr.mxu0 0.0
    %887 = vmatpush1.msra.mxu0 0.0
    %888 = vmatprep.subr.mxu0 0.0
    %889 = vmatpush1.msra.mxu0 0.0
    %890 = vmatprep.subr.mxu0 0.0
    %891 = vmatpush1.msra.mxu0 0.0
    %892 = vmatprep.subr.mxu0 0.0
    %893 = vmatpush1.msra.mxu0 0.0
    %894 = vmatprep.subr.mxu0 0.0
    %895 = vmatpush1.msra.mxu0 0.0
    %896 = vmatprep.subr.mxu0 0.0
    %897 = vmatpush1.msra.mxu0 0.0
    %898 = vmatprep.subr.mxu0 0.0
    %899 = vmatpush1.msra.mxu0 0.0
    %900 = vmatprep.subr.mxu0 0.0
    %901 = vmatpush1.msra.mxu0 0.0
    %902 = vmatprep.subr.mxu0 0.0
    %903 = vmatpush1.msra.mxu0 0.0
    %904 = vmatprep.subr.mxu0 0.0
    %905 = vmatpush1.msra.mxu0 0.0
    %906 = vmatprep.subr.mxu0 0.0
    %907 = vmatpush1.msra.mxu0 0.0
    %908 = vmatprep.subr.mxu0 0.0
    %909 = vmatpush1.msra.mxu0 0.0
    %910 = vmatprep.subr.mxu0 0.0
    %911 = vmatpush1.msra.mxu0 0.0
    %912 = vmatprep.subr.mxu0 0.0
    %913 = vmatpush1.msra.mxu0 0.0
    %914 = vmatprep.subr.mxu0 0.0
    %915 = vmatpush1.msra.mxu0 0.0
    %916 = vmatprep.subr.mxu0 0.0
    %917 = vmatpush1.msra.mxu0 0.0
    %918 = vmatprep.subr.mxu0 0.0
    %919 = vmatpush1.msra.mxu0 0.0
    %920 = vmatprep.subr.mxu0 0.0
    %921 = vmatpush1.msra.mxu0 0.0
    %922 = vmatprep.subr.mxu0 0.0
    %923 = vmatpush1.msra.mxu0 0.0
    %924 = vmatprep.subr.mxu0 0.0
    %925 = vmatpush1.msra.mxu0 0.0
    %926 = vmatprep.subr.mxu0 0.0
    %927 = vmatpush1.msra.mxu0 0.0
    %928 = vmatprep.subr.mxu0 0.0
    %929 = vmatpush1.msra.mxu0 0.0
    %930 = vmatprep.subr.mxu0 0.0
    %931 = vmatpush1.msra.mxu0 0.0
    %932 = vmatprep.subr.mxu0 0.0
    %933 = vmatpush1.msra.mxu0 0.0
    %934 = vmatprep.subr.mxu0 0.0
    %935 = vmatpush1.msra.mxu0 0.0
    %936 = vmatprep.subr.mxu0 0.0
    %937 = vmatpush1.msra.mxu0 0.0
    %938 = vmatprep.subr.mxu0 0.0
    %939 = vmatpush1.msra.mxu0 0.0
    %940 = vmatprep.subr.mxu0 0.0
    %941 = vmatpush1.msra.mxu0 0.0
    %942 = vmatprep.subr.mxu0 0.0
    %943 = vmatpush1.msra.mxu0 0.0
    %944 = vmatprep.mubr.f32.mxu0 0.0
    %945 = vmatmul.mubr.f32.gmra.mrb[0].mxu0 %v875
    %v946 = vpop.f32.mrb[0].mxu0
    %v947 = vadd.f32 0.0, %v946
    %v948 = vpop.f32.mrb[0].mxu0
    %949 = vmatprep.mubr.f32.mxu0 0.0
    %950 = vmatmul.mubr.f32.gmra.mrb[0].mxu0 %v878
    %v951 = vpop.f32.mrb[0].mxu0
    %v952 = vadd.f32 0.0, %v951
    %v953 = vpop.f32.mrb[0].mxu0
    %954 = vdwg.mxu0
    %v956 = vsel %vm704, %v789, 0
    %v959 = vsel %vm704, %v790, 0
    %961 = vmatprep.subr.mxu0 0.0
    %962 = vmatpush1.msra.mxu0 %v344
    %963 = vmatprep.subr.mxu0 0.0
    %964 = vmatpush1.msra.mxu0 %v346
    %965 = vmatprep.subr.mxu0 0.0
    %966 = vmatpush1.msra.mxu0 0.0
    %967 = vmatprep.subr.mxu0 0.0
    %968 = vmatpush1.msra.mxu0 0.0
    %969 = vmatprep.subr.mxu0 0.0
    %970 = vmatpush1.msra.mxu0 0.0
    %971 = vmatprep.subr.mxu0 0.0
    %972 = vmatpush1.msra.mxu0 0.0
    %973 = vmatprep.subr.mxu0 0.0
    %974 = vmatpush1.msra.mxu0 0.0
    %975 = vmatprep.subr.mxu0 0.0
    %976 = vmatpush1.msra.mxu0 0.0
    %977 = vmatprep.subr.mxu0 0.0
    %978 = vmatpush1.msra.mxu0 0.0
    %979 = vmatprep.subr.mxu0 0.0
    %980 = vmatpush1.msra.mxu0 0.0
    %981 = vmatprep.subr.mxu0 0.0
    %982 = vmatpush1.msra.mxu0 0.0
    %983 = vmatprep.subr.mxu0 0.0
    %984 = vmatpush1.msra.mxu0 0.0
    %985 = vmatprep.subr.mxu0 0.0
    %986 = vmatpush1.msra.mxu0 0.0
    %987 = vmatprep.subr.mxu0 0.0
    %988 = vmatpush1.msra.mxu0 0.0
    %989 = vmatprep.subr.mxu0 0.0
    %990 = vmatpush1.msra.mxu0 0.0
    %991 = vmatprep.subr.mxu0 0.0
    %992 = vmatpush1.msra.mxu0 0.0
    %993 = vmatprep.subr.mxu0 0.0
    %994 = vmatpush1.msra.mxu0 0.0
    %995 = vmatprep.subr.mxu0 0.0
    %996 = vmatpush1.msra.mxu0 0.0
    %997 = vmatprep.subr.mxu0 0.0
    %998 = vmatpush1.msra.mxu0 0.0
    %999 = vmatprep.subr.mxu0 0.0
    %1000 = vmatpush1.msra.mxu0 0.0
    %1001 = vmatprep.subr.mxu0 0.0
    %1002 = vmatpush1.msra.mxu0 0.0
    %1003 = vmatprep.subr.mxu0 0.0
    %1004 = vmatpush1.msra.mxu0 0.0
    %1005 = vmatprep.subr.mxu0 0.0
    %1006 = vmatpush1.msra.mxu0 0.0
    %1007 = vmatprep.subr.mxu0 0.0
    %1008 = vmatpush1.msra.mxu0 0.0
    %1009 = vmatprep.subr.mxu0 0.0
    %1010 = vmatpush1.msra.mxu0 0.0
    %1011 = vmatprep.subr.mxu0 0.0
    %1012 = vmatpush1.msra.mxu0 0.0
    %1013 = vmatprep.subr.mxu0 0.0
    %1014 = vmatpush1.msra.mxu0 0.0
    %1015 = vmatprep.subr.mxu0 0.0
    %1016 = vmatpush1.msra.mxu0 0.0
    %1017 = vmatprep.subr.mxu0 0.0
    %1018 = vmatpush1.msra.mxu0 0.0
    %1019 = vmatprep.subr.mxu0 0.0
    %1020 = vmatpush1.msra.mxu0 0.0
    %1021 = vmatprep.subr.mxu0 0.0
    %1022 = vmatpush1.msra.mxu0 0.0
    %1023 = vmatprep.subr.mxu0 0.0
    %1024 = vmatpush1.msra.mxu0 0.0
    %1025 = vmatprep.mubr.f32.mxu0 0.0
    %1026 = vmatmul.mubr.f32.gmra.mrb[0].mxu0 %v956
    %v1027 = vpop.f32.mrb[0].mxu0
    %v1028 = vadd.f32 0.0, %v1027
    %v1029 = vpop.f32.mrb[0].mxu0
    %1030 = vmatprep.mubr.f32.mxu0 0.0
    %1031 = vmatmul.mubr.f32.gmra.mrb[0].mxu0 %v959
    %v1032 = vpop.f32.mrb[0].mxu0
    %v1033 = vadd.f32 0.0, %v1032
    %v1034 = vpop.f32.mrb[0].mxu0
    %1035 = vdwg.mxu0
    %v1037 = vsel %vm704, %v791, 0
    %v1040 = vsel %vm704, %v792, 0
    %1042 = vmatprep.subr.mxu0 0.0
    %1043 = vmatpush1.msra.mxu0 %v350
    %1044 = vmatprep.subr.mxu0 0.0
    %1045 = vmatpush1.msra.mxu0 %v352
    %1046 = vmatprep.subr.mxu0 0.0
    %1047 = vmatpush1.msra.mxu0 0.0
    %1048 = vmatprep.subr.mxu0 0.0
    %1049 = vmatpush1.msra.mxu0 0.0
    %1050 = vmatprep.subr.mxu0 0.0
    %1051 = vmatpush1.msra.mxu0 0.0
    %1052 = vmatprep.subr.mxu0 0.0
    %1053 = vmatpush1.msra.mxu0 0.0
    %1054 = vmatprep.subr.mxu0 0.0
    %1055 = vmatpush1.msra.mxu0 0.0
    %1056 = vmatprep.subr.mxu0 0.0
    %1057 = vmatpush1.msra.mxu0 0.0
    %1058 = vmatprep.subr.mxu0 0.0
    %1059 = vmatpush1.msra.mxu0 0.0
    %1060 = vmatprep.subr.mxu0 0.0
    %1061 = vmatpush1.msra.mxu0 0.0
    %1062 = vmatprep.subr.mxu0 0.0
    %1063 = vmatpush1.msra.mxu0 0.0
    %1064 = vmatprep.subr.mxu0 0.0
    %1065 = vmatpush1.msra.mxu0 0.0
    %1066 = vmatprep.subr.mxu0 0.0
    %1067 = vmatpush1.msra.mxu0 0.0
    %1068 = vmatprep.subr.mxu0 0.0
    %1069 = vmatpush1.msra.mxu0 0.0
    %1070 = vmatprep.subr.mxu0 0.0
    %1071 = vmatpush1.msra.mxu0 0.0
    %1072 = vmatprep.subr.mxu0 0.0
    %1073 = vmatpush1.msra.mxu0 0.0
    %1074 = vmatprep.subr.mxu0 0.0
    %1075 = vmatpush1.msra.mxu0 0.0
    %1076 = vmatprep.subr.mxu0 0.0
    %1077 = vmatpush1.msra.mxu0 0.0
    %1078 = vmatprep.subr.mxu0 0.0
    %1079 = vmatpush1.msra.mxu0 0.0
    %1080 = vmatprep.subr.mxu0 0.0
    %1081 = vmatpush1.msra.mxu0 0.0
    %1082 = vmatprep.subr.mxu0 0.0
    %1083 = vmatpush1.msra.mxu0 0.0
    %1084 = vmatprep.subr.mxu0 0.0
    %1085 = vmatpush1.msra.mxu0 0.0
    %1086 = vmatprep.subr.mxu0 0.0
    %1087 = vmatpush1.msra.mxu0 0.0
    %1088 = vmatprep.subr.mxu0 0.0
    %1089 = vmatpush1.msra.mxu0 0.0
    %1090 = vmatprep.subr.mxu0 0.0
    %1091 = vmatpush1.msra.mxu0 0.0
    %1092 = vmatprep.subr.mxu0 0.0
    %1093 = vmatpush1.msra.mxu0 0.0
    %1094 = vmatprep.subr.mxu0 0.0
    %1095 = vmatpush1.msra.mxu0 0.0
    %1096 = vmatprep.subr.mxu0 0.0
    %1097 = vmatpush1.msra.mxu0 0.0
    %1098 = vmatprep.subr.mxu0 0.0
    %1099 = vmatpush1.msra.mxu0 0.0
    %1100 = vmatprep.subr.mxu0 0.0
    %1101 = vmatpush1.msra.mxu0 0.0
    %1102 = vmatprep.subr.mxu0 0.0
    %1103 = vmatpush1.msra.mxu0 0.0
    %1104 = vmatprep.subr.mxu0 0.0
    %1105 = vmatpush1.msra.mxu0 0.0
    %1106 = vmatprep.mubr.f32.mxu0 0.0
    %1107 = vmatmul.mubr.f32.gmra.mrb[0].mxu0 %v1037
    %v1108 = vpop.f32.mrb[0].mxu0
    %v1109 = vadd.f32 0.0, %v1108
    %v1110 = vpop.f32.mrb[0].mxu0
    %1111 = vmatprep.mubr.f32.mxu0 0.0
    %1112 = vmatmul.mubr.f32.gmra.mrb[0].mxu0 %v1040
    %v1113 = vpop.f32.mrb[0].mxu0
    %v1114 = vadd.f32 0.0, %v1113
    %v1115 = vpop.f32.mrb[0].mxu0
    %1116 = vdwg.mxu0
    %1119 = vrot.lane.b32.xlu0 %v947, 8
    %v1120 = vpop.permute.xlu0 %1119
    %1121 = vrot.lane.b32.xlu0 %v952, 8
    %v1122 = vpop.permute.xlu0 %1121
    %1127 = vrot.lane.b32.xlu0 %v1028, 16
    %v1128 = vpop.permute.xlu0 %1127
    %1129 = vrot.lane.b32.xlu0 %v1033, 16
    %v1130 = vpop.permute.xlu0 %1129
    %1135 = vrot.lane.b32.xlu0 %v1109, 24
    %v1136 = vpop.permute.xlu0 %1135
    %1137 = vrot.lane.b32.xlu0 %v1114, 24
    %v1138 = vpop.permute.xlu0 %1137
    %v1141 = vsel %vm355, %v866, %v1120
    %v1142 = vsel %vm355, %v871, %v1122
    %v1143 = vsel %vm704, %v1141, %v1128
    %v1144 = vsel %vm704, %v1142, %v1130
    %vm1145 = vcmask 195584
    %v1146 = vsel %vm1145, %v1143, %v1136
    %v1147 = vsel %vm1145, %v1144, %v1138
    %v1148 = vld [vmem:[%s5] sm:$0xff]
    %v1149 = vld [vmem:[%s5 + $0x8] sm:$0xff]
    %v1150 = vld [vmem:[%s5 + $0x10] sm:$0xff]
    %v1151 = vld [vmem:[%s5 + $0x18] sm:$0xff]
    %v1152 = vld [vmem:[#allocation9] sm:$0x1]
    %v1154 = vlaneseq
    %v1155 = vshrl.u32 %v1154, 7
    %v1156 = vsub.s32 0, %v1155
    %v1157 = vrot.slane %v1152, %v1156
    %v1160 = vsel %vm172, %v1146, 0
    %v1163 = vsel %vm172, %v1147, 0
    %1165 = vmatprep.subr.mxu0 0.0
    %1166 = vmatpush1.msra.mxu0 %v1148
    %1167 = vmatprep.subr.mxu0 0.0
    %1168 = vmatpush1.msra.mxu0 %v1149
    %1169 = vmatprep.subr.mxu0 0.0
    %1170 = vmatpush1.msra.mxu0 %v1150
    %1171 = vmatprep.subr.mxu0 0.0
    %1172 = vmatpush1.msra.mxu0 %v1151
    %1173 = vmatprep.subr.mxu0 0.0
    %1174 = vmatpush1.msra.mxu0 0.0
    %1175 = vmatprep.subr.mxu0 0.0
    %1176 = vmatpush1.msra.mxu0 0.0
    %1177 = vmatprep.subr.mxu0 0.0
    %1178 = vmatpush1.msra.mxu0 0.0
    %1179 = vmatprep.subr.mxu0 0.0
    %1180 = vmatpush1.msra.mxu0 0.0
    %1181 = vmatprep.subr.mxu0 0.0
    %1182 = vmatpush1.msra.mxu0 0.0
    %1183 = vmatprep.subr.mxu0 0.0
    %1184 = vmatpush1.msra.mxu0 0.0
    %1185 = vmatprep.subr.mxu0 0.0
    %1186 = vmatpush1.msra.mxu0 0.0
    %1187 = vmatprep.subr.mxu0 0.0
    %1188 = vmatpush1.msra.mxu0 0.0
    %1189 = vmatprep.subr.mxu0 0.0
    %1190 = vmatpush1.msra.mxu0 0.0
    %1191 = vmatprep.subr.mxu0 0.0
    %1192 = vmatpush1.msra.mxu0 0.0
    %1193 = vmatprep.subr.mxu0 0.0
    %1194 = vmatpush1.msra.mxu0 0.0
    %1195 = vmatprep.subr.mxu0 0.0
    %1196 = vmatpush1.msra.mxu0 0.0
    %1197 = vmatprep.subr.mxu0 0.0
    %1198 = vmatpush1.msra.mxu0 0.0
    %1199 = vmatprep.subr.mxu0 0.0
    %1200 = vmatpush1.msra.mxu0 0.0
    %1201 = vmatprep.subr.mxu0 0.0
    %1202 = vmatpush1.msra.mxu0 0.0
    %1203 = vmatprep.subr.mxu0 0.0
    %1204 = vmatpush1.msra.mxu0 0.0
    %1205 = vmatprep.subr.mxu0 0.0
    %1206 = vmatpush1.msra.mxu0 0.0
    %1207 = vmatprep.subr.mxu0 0.0
    %1208 = vmatpush1.msra.mxu0 0.0
    %1209 = vmatprep.subr.mxu0 0.0
    %1210 = vmatpush1.msra.mxu0 0.0
    %1211 = vmatprep.subr.mxu0 0.0
    %1212 = vmatpush1.msra.mxu0 0.0
    %1213 = vmatprep.subr.mxu0 0.0
    %1214 = vmatpush1.msra.mxu0 0.0
    %1215 = vmatprep.subr.mxu0 0.0
    %1216 = vmatpush1.msra.mxu0 0.0
    %1217 = vmatprep.subr.mxu0 0.0
    %1218 = vmatpush1.msra.mxu0 0.0
    %1219 = vmatprep.subr.mxu0 0.0
    %1220 = vmatpush1.msra.mxu0 0.0
    %1221 = vmatprep.subr.mxu0 0.0
    %1222 = vmatpush1.msra.mxu0 0.0
    %1223 = vmatprep.subr.mxu0 0.0
    %1224 = vmatpush1.msra.mxu0 0.0
    %1225 = vmatprep.subr.mxu0 0.0
    %1226 = vmatpush1.msra.mxu0 0.0
    %1227 = vmatprep.subr.mxu0 0.0
    %1228 = vmatpush1.msra.mxu0 0.0
    %1229 = vmatprep.mubr.f32.mxu0 0.0
    %1230 = vmatmul.mubr.f32.gmra.mrb[0].mxu0 %v1160
    %v1231 = vpop.f32.mrb[0].mxu0
    %v1232 = vadd.f32 %v1157, %v1231
    %v1233 = vpop.f32.mrb[0].mxu0
    %1234 = vmatprep.mubr.f32.mxu0 0.0
    %1235 = vmatmul.mubr.f32.gmra.mrb[0].mxu0 %v1163
    %v1236 = vpop.f32.mrb[0].mxu0
    %v1237 = vadd.f32 %v1157, %v1236
    %v1238 = vpop.f32.mrb[0].mxu0
    %1239 = vdwg.mxu0
    %v1240 = vadd.f32 %v1232, %v166
    %v1241 = vadd.f32 %v1237, %v167
    %v1242 = vld [vmem:[#allocation11] sm:$0x1]
    %v1243 = vld [vmem:[#allocation12] sm:$0x1]
    %v1244 = vsel %vm172, %v1240, 0.0
    %1245 = vadd.xlane.f32.xlu0 %v1244
    %v1246 = vpop.xlane.xlu0 %1245
    %v1247 = vsel %vm172, %v1241, 0.0
    %1248 = vadd.xlane.f32.xlu0 %v1247
    %v1249 = vpop.xlane.xlu0 %1248
    %v1250 = vmul.f32 %v1246, %v179
    %v1251 = vmul.f32 %v1249, %v179
    %v1252 = vsub.f32 %v1240, %v1250
    %v1253 = vsub.f32 %v1241, %v1251
    %v1254 = vmul.f32 %v1252, %v1252
    %v1255 = vmul.f32 %v1253, %v1253
    %v1256 = vsel %vm172, %v1254, 0.0
    %1257 = vadd.xlane.f32.xlu0 %v1256
    %v1258 = vpop.xlane.xlu0 %1257
    %v1259 = vsel %vm172, %v1255, 0.0
    %1260 = vadd.xlane.f32.xlu0 %v1259
    %v1261 = vpop.xlane.xlu0 %1260
    %v1262 = vmul.f32 %v1258, %v179
    %v1263 = vmul.f32 %v1261, %v179
    %v1264 = vadd.f32 %v1262, 1e-05
    %v1265 = vadd.f32 %v1263, 1e-05
    %v1266 = vrsqrt.pop %v1264
    %v1267 = vrsqrt.pop %v1265
    %v1268 = vmul.f32 %v1252, %v1266
    %v1269 = vmul.f32 %v1253, %v1267
    %v1271 = vlaneseq
    %v1272 = vshrl.u32 %v1271, 7
    %v1273 = vsub.s32 0, %v1272
    %v1274 = vrot.slane %v1242, %v1273
    %v1276 = vmul.f32 %v1268, %v1274
    %v1277 = vmul.f32 %v1269, %v1274
    %v1279 = vlaneseq
    %v1280 = vshrl.u32 %v1279, 7
    %v1281 = vsub.s32 0, %v1280
    %v1282 = vrot.slane %v1243, %v1281
    %v1284 = vadd.f32 %v1276, %v1282
    %v1285 = vadd.f32 %v1277, %v1282
    %v1286 = vld [vmem:[%s9] sm:$0xff]
    %v1287 = vld [vmem:[%s9 + $0x8] sm:$0xff]
    %v1288 = vld [vmem:[%s9 + $0x10] sm:$0xff]
    %v1289 = vld [vmem:[%s9 + $0x18] sm:$0xff]
    %v1290 = vld [vmem:[%s10] sm:$0x1]
    %v1292 = vlaneseq
    %v1293 = vshrl.u32 %v1292, 7
    %v1294 = vsub.s32 0, %v1293
    %v1295 = vrot.slane %v1290, %v1294
    %v1298 = vsel %vm172, %v1284, 0
    %v1301 = vsel %vm172, %v1285, 0
    %1303 = vmatprep.subr.mxu0 0.0
    %1304 = vmatpush1.msra.mxu0 %v1286
    %1305 = vmatprep.subr.mxu0 0.0
    %1306 = vmatpush1.msra.mxu0 %v1287
    %1307 = vmatprep.subr.mxu0 0.0
    %1308 = vmatpush1.msra.mxu0 %v1288
    %1309 = vmatprep.subr.mxu0 0.0
    %1310 = vmatpush1.msra.mxu0 %v1289
    %1311 = vmatprep.subr.mxu0 0.0
    %1312 = vmatpush1.msra.mxu0 0.0
    %1313 = vmatprep.subr.mxu0 0.0
    %1314 = vmatpush1.msra.mxu0 0.0
    %1315 = vmatprep.subr.mxu0 0.0
    %1316 = vmatpush1.msra.mxu0 0.0
    %1317 = vmatprep.subr.mxu0 0.0
    %1318 = vmatpush1.msra.mxu0 0.0
    %1319 = vmatprep.subr.mxu0 0.0
    %1320 = vmatpush1.msra.mxu0 0.0
    %1321 = vmatprep.subr.mxu0 0.0
    %1322 = vmatpush1.msra.mxu0 0.0
    %1323 = vmatprep.subr.mxu0 0.0
    %1324 = vmatpush1.msra.mxu0 0.0
    %1325 = vmatprep.subr.mxu0 0.0
    %1326 = vmatpush1.msra.mxu0 0.0
    %1327 = vmatprep.subr.mxu0 0.0
    %1328 = vmatpush1.msra.mxu0 0.0
    %1329 = vmatprep.subr.mxu0 0.0
    %1330 = vmatpush1.msra.mxu0 0.0
    %1331 = vmatprep.subr.mxu0 0.0
    %1332 = vmatpush1.msra.mxu0 0.0
    %1333 = vmatprep.subr.mxu0 0.0
    %1334 = vmatpush1.msra.mxu0 0.0
    %1335 = vmatprep.subr.mxu0 0.0
    %1336 = vmatpush1.msra.mxu0 0.0
    %1337 = vmatprep.subr.mxu0 0.0
    %1338 = vmatpush1.msra.mxu0 0.0
    %1339 = vmatprep.subr.mxu0 0.0
    %1340 = vmatpush1.msra.mxu0 0.0
    %1341 = vmatprep.subr.mxu0 0.0
    %1342 = vmatpush1.msra.mxu0 0.0
    %1343 = vmatprep.subr.mxu0 0.0
    %1344 = vmatpush1.msra.mxu0 0.0
    %1345 = vmatprep.subr.mxu0 0.0
    %1346 = vmatpush1.msra.mxu0 0.0
    %1347 = vmatprep.subr.mxu0 0.0
    %1348 = vmatpush1.msra.mxu0 0.0
    %1349 = vmatprep.subr.mxu0 0.0
    %1350 = vmatpush1.msra.mxu0 0.0
    %1351 = vmatprep.subr.mxu0 0.0
    %1352 = vmatpush1.msra.mxu0 0.0
    %1353 = vmatprep.subr.mxu0 0.0
    %1354 = vmatpush1.msra.mxu0 0.0
    %1355 = vmatprep.subr.mxu0 0.0
    %1356 = vmatpush1.msra.mxu0 0.0
    %1357 = vmatprep.subr.mxu0 0.0
    %1358 = vmatpush1.msra.mxu0 0.0
    %1359 = vmatprep.subr.mxu0 0.0
    %1360 = vmatpush1.msra.mxu0 0.0
    %1361 = vmatprep.subr.mxu0 0.0
    %1362 = vmatpush1.msra.mxu0 0.0
    %1363 = vmatprep.subr.mxu0 0.0
    %1364 = vmatpush1.msra.mxu0 0.0
    %1365 = vmatprep.subr.mxu0 0.0
    %1366 = vmatpush1.msra.mxu0 0.0
    %1367 = vmatprep.mubr.f32.mxu0 0.0
    %1368 = vmatmul.mubr.f32.gmra.mrb[0].mxu0 %v1298
    %v1369 = vpop.f32.mrb[0].mxu0
    %v1370 = vadd.f32 %v1295, %v1369
    %v1371 = vpop.f32.mrb[0].mxu0
    %1372 = vmatprep.mubr.f32.mxu0 0.0
    %1373 = vmatmul.mubr.f32.gmra.mrb[0].mxu0 %v1301
    %v1374 = vpop.f32.mrb[0].mxu0
    %v1375 = vadd.f32 %v1295, %v1374
    %v1376 = vpop.f32.mrb[0].mxu0
    %1377 = vdwg.mxu0
    %v1378 = vmax.f32 %v1370, 0.0
    %v1379 = vmax.f32 %v1375, 0.0
    %v1380 = vld [vmem:[%s11] sm:$0xff]
    %v1381 = vld [vmem:[%s11 + $0x8] sm:$0xff]
    %v1382 = vld [vmem:[%s11 + $0x10] sm:$0xff]
    %v1383 = vld [vmem:[%s11 + $0x18] sm:$0xff]
    %v1384 = vld [vmem:[%s11 + $0x20] sm:$0xff]
    %v1385 = vld [vmem:[%s11 + $0x28] sm:$0xff]
    %v1386 = vld [vmem:[%s11 + $0x30] sm:$0xff]
    %v1387 = vld [vmem:[%s11 + $0x38] sm:$0xff]
    %v1388 = vld [vmem:[%s12] sm:$0x1]
    %v1390 = vlaneseq
    %v1391 = vshrl.u32 %v1390, 7
    %v1392 = vsub.s32 0, %v1391
    %v1393 = vrot.slane %v1388, %v1392
    %vm1395 = vcmask 523264
    %v1397 = vsel %vm1395, %v1378, 0
    %v1400 = vsel %vm1395, %v1379, 0
    %1402 = vmatprep.subr.mxu0 0.0
    %1403 = vmatpush1.msra.mxu0 %v1380
    %1404 = vmatprep.subr.mxu0 0.0
    %1405 = vmatpush1.msra.mxu0 %v1381
    %1406 = vmatprep.subr.mxu0 0.0
    %1407 = vmatpush1.msra.mxu0 %v1382
    %1408 = vmatprep.subr.mxu0 0.0
    %1409 = vmatpush1.msra.mxu0 %v1383
    %1410 = vmatprep.subr.mxu0 0.0
    %1411 = vmatpush1.msra.mxu0 %v1384
    %1412 = vmatprep.subr.mxu0 0.0
    %1413 = vmatpush1.msra.mxu0 %v1385
    %1414 = vmatprep.subr.mxu0 0.0
    %1415 = vmatpush1.msra.mxu0 %v1386
    %1416 = vmatprep.subr.mxu0 0.0
    %1417 = vmatpush1.msra.mxu0 %v1387
    %1418 = vmatprep.subr.mxu0 0.0
    %1419 = vmatpush1.msra.mxu0 0.0
    %1420 = vmatprep.subr.mxu0 0.0
    %1421 = vmatpush1.msra.mxu0 0.0
    %1422 = vmatprep.subr.mxu0 0.0
    %1423 = vmatpush1.msra.mxu0 0.0
    %1424 = vmatprep.subr.mxu0 0.0
    %1425 = vmatpush1.msra.mxu0 0.0
    %1426 = vmatprep.subr.mxu0 0.0
    %1427 = vmatpush1.msra.mxu0 0.0
    %1428 = vmatprep.subr.mxu0 0.0
    %1429 = vmatpush1.msra.mxu0 0.0
    %1430 = vmatprep.subr.mxu0 0.0
    %1431 = vmatpush1.msra.mxu0 0.0
    %1432 = vmatprep.subr.mxu0 0.0
    %1433 = vmatpush1.msra.mxu0 0.0
    %1434 = vmatprep.subr.mxu0 0.0
    %1435 = vmatpush1.msra.mxu0 0.0
    %1436 = vmatprep.subr.mxu0 0.0
    %1437 = vmatpush1.msra.mxu0 0.0
    %1438 = vmatprep.subr.mxu0 0.0
    %1439 = vmatpush1.msra.mxu0 0.0
    %1440 = vmatprep.subr.mxu0 0.0
    %1441 = vmatpush1.msra.mxu0 0.0
    %1442 = vmatprep.subr.mxu0 0.0
    %1443 = vmatpush1.msra.mxu0 0.0
    %1444 = vmatprep.subr.mxu0 0.0
    %1445 = vmatpush1.msra.mxu0 0.0
    %1446 = vmatprep.subr.mxu0 0.0
    %1447 = vmatpush1.msra.mxu0 0.0
    %1448 = vmatprep.subr.mxu0 0.0
    %1449 = vmatpush1.msra.mxu0 0.0
    %1450 = vmatprep.subr.mxu0 0.0
    %1451 = vmatpush1.msra.mxu0 0.0
    %1452 = vmatprep.subr.mxu0 0.0
    %1453 = vmatpush1.msra.mxu0 0.0
    %1454 = vmatprep.subr.mxu0 0.0
    %1455 = vmatpush1.msra.mxu0 0.0
    %1456 = vmatprep.subr.mxu0 0.0
    %1457 = vmatpush1.msra.mxu0 0.0
    %1458 = vmatprep.subr.mxu0 0.0
    %1459 = vmatpush1.msra.mxu0 0.0
    %1460 = vmatprep.subr.mxu0 0.0
    %1461 = vmatpush1.msra.mxu0 0.0
    %1462 = vmatprep.subr.mxu0 0.0
    %1463 = vmatpush1.msra.mxu0 0.0
    %1464 = vmatprep.subr.mxu0 0.0
    %1465 = vmatpush1.msra.mxu0 0.0
    %1466 = vmatprep.mubr.f32.mxu0 0.0
    %1467 = vmatmul.mubr.f32.gmra.mrb[0].mxu0 %v1397
    %v1468 = vpop.f32.mrb[0].mxu0
    %v1469 = vadd.f32 %v1393, %v1468
    %v1470 = vpop.f32.mrb[0].mxu0
    %1471 = vmatprep.mubr.f32.mxu0 0.0
    %1472 = vmatmul.mubr.f32.gmra.mrb[0].mxu0 %v1400
    %v1473 = vpop.f32.mrb[0].mxu0
    %v1474 = vadd.f32 %v1393, %v1473
    %v1475 = vpop.f32.mrb[0].mxu0
    %1476 = vdwg.mxu0
    %v1477 = vadd.f32 %v1469, %v1240
    %v1478 = vadd.f32 %v1474, %v1241
    %s1479 = scalar_lea.vmem %s2, 1
    %v1480 = vld [vmem:[%s1479] sm:$0x1]
    %s1481 = scalar_lea.vmem [#allocation8], 1
    %v1482 = vld [vmem:[%s1481] sm:$0x1]
    %v1483 = vsel %vm172, %v1477, 0.0
    %1484 = vadd.xlane.f32.xlu0 %v1483
    %v1485 = vpop.xlane.xlu0 %1484
    %v1486 = vsel %vm172, %v1478, 0.0
    %1487 = vadd.xlane.f32.xlu0 %v1486
    %v1488 = vpop.xlane.xlu0 %1487
    %v1489 = vmul.f32 %v1485, %v179
    %v1490 = vmul.f32 %v1488, %v179
    %v1491 = vsub.f32 %v1477, %v1489
    %v1492 = vsub.f32 %v1478, %v1490
    %v1493 = vmul.f32 %v1491, %v1491
    %v1494 = vmul.f32 %v1492, %v1492
    %v1495 = vsel %vm172, %v1493, 0.0
    %1496 = vadd.xlane.f32.xlu0 %v1495
    %v1497 = vpop.xlane.xlu0 %1496
    %v1498 = vsel %vm172, %v1494, 0.0
    %1499 = vadd.xlane.f32.xlu0 %v1498
    %v1500 = vpop.xlane.xlu0 %1499
    %v1501 = vmul.f32 %v1497, %v179
    %v1502 = vmul.f32 %v1500, %v179
    %v1503 = vadd.f32 %v1501, 1e-05
    %v1504 = vadd.f32 %v1502, 1e-05
    %v1505 = vrsqrt.pop %v1503
    %v1506 = vrsqrt.pop %v1504
    %v1507 = vmul.f32 %v1491, %v1505
    %v1508 = vmul.f32 %v1492, %v1506
    %v1510 = vlaneseq
    %v1511 = vshrl.u32 %v1510, 7
    %v1512 = vsub.s32 0, %v1511
    %v1513 = vrot.slane %v1480, %v1512
    %v1515 = vmul.f32 %v1507, %v1513
    %v1516 = vmul.f32 %v1508, %v1513
    %v1518 = vlaneseq
    %v1519 = vshrl.u32 %v1518, 7
    %v1520 = vsub.s32 0, %v1519
    %v1521 = vrot.slane %v1482, %v1520
    %v1523 = vadd.f32 %v1515, %v1521
    %v1524 = vadd.f32 %v1516, %v1521
    %s1525 = scalar_lea.vmem %s4, 32
    %v1526 = vld [vmem:[%s1525] sm:$0xff]
    %v1527 = vld [vmem:[%s1525 + $0x8] sm:$0xff]
    %v1528 = vld [vmem:[%s1525 + $0x10] sm:$0xff]
    %v1529 = vld [vmem:[%s1525 + $0x18] sm:$0xff]
    %v1531 = vsel %vm172, %v1523, 0
    %v1534 = vsel %vm172, %v1524, 0
    %1536 = vmatprep.subr.mxu0 0.0
    %1537 = vmatpush1.msra.mxu0 %v1526
    %1538 = vmatprep.subr.mxu0 0.0
    %1539 = vmatpush1.msra.mxu0 %v1527
    %1540 = vmatprep.subr.mxu0 0.0
    %1541 = vmatpush1.msra.mxu0 %v1528
    %1542 = vmatprep.subr.mxu0 0.0
    %1543 = vmatpush1.msra.mxu0 %v1529
    %1544 = vmatprep.subr.mxu0 0.0
    %1545 = vmatpush1.msra.mxu0 0.0
    %1546 = vmatprep.subr.mxu0 0.0
    %1547 = vmatpush1.msra.mxu0 0.0
    %1548 = vmatprep.subr.mxu0 0.0
    %1549 = vmatpush1.msra.mxu0 0.0
    %1550 = vmatprep.subr.mxu0 0.0
    %1551 = vmatpush1.msra.mxu0 0.0
    %1552 = vmatprep.subr.mxu0 0.0
    %1553 = vmatpush1.msra.mxu0 0.0
    %1554 = vmatprep.subr.mxu0 0.0
    %1555 = vmatpush1.msra.mxu0 0.0
    %1556 = vmatprep.subr.mxu0 0.0
    %1557 = vmatpush1.msra.mxu0 0.0
    %1558 = vmatprep.subr.mxu0 0.0
    %1559 = vmatpush1.msra.mxu0 0.0
    %1560 = vmatprep.subr.mxu0 0.0
    %1561 = vmatpush1.msra.mxu0 0.0
    %1562 = vmatprep.subr.mxu0 0.0
    %1563 = vmatpush1.msra.mxu0 0.0
    %1564 = vmatprep.subr.mxu0 0.0
    %1565 = vmatpush1.msra.mxu0 0.0
    %1566 = vmatprep.subr.mxu0 0.0
    %1567 = vmatpush1.msra.mxu0 0.0
    %1568 = vmatprep.subr.mxu0 0.0
    %1569 = vmatpush1.msra.mxu0 0.0
    %1570 = vmatprep.subr.mxu0 0.0
    %1571 = vmatpush1.msra.mxu0 0.0
    %1572 = vmatprep.subr.mxu0 0.0
    %1573 = vmatpush1.msra.mxu0 0.0
    %1574 = vmatprep.subr.mxu0 0.0
    %1575 = vmatpush1.msra.mxu0 0.0
    %1576 = vmatprep.subr.mxu0 0.0
    %1577 = vmatpush1.msra.mxu0 0.0
    %1578 = vmatprep.subr.mxu0 0.0
    %1579 = vmatpush1.msra.mxu0 0.0
    %1580 = vmatprep.subr.mxu0 0.0
    %1581 = vmatpush1.msra.mxu0 0.0
    %1582 = vmatprep.subr.mxu0 0.0
    %1583 = vmatpush1.msra.mxu0 0.0
    %1584 = vmatprep.subr.mxu0 0.0
    %1585 = vmatpush1.msra.mxu0 0.0
    %1586 = vmatprep.subr.mxu0 0.0
    %1587 = vmatpush1.msra.mxu0 0.0
    %1588 = vmatprep.subr.mxu0 0.0
    %1589 = vmatpush1.msra.mxu0 0.0
    %1590 = vmatprep.subr.mxu0 0.0
    %1591 = vmatpush1.msra.mxu0 0.0
    %1592 = vmatprep.subr.mxu0 0.0
    %1593 = vmatpush1.msra.mxu0 0.0
    %1594 = vmatprep.subr.mxu0 0.0
    %1595 = vmatpush1.msra.mxu0 0.0
    %1596 = vmatprep.subr.mxu0 0.0
    %1597 = vmatpush1.msra.mxu0 0.0
    %1598 = vmatprep.subr.mxu0 0.0
    %1599 = vmatpush1.msra.mxu0 0.0
    %1600 = vmatprep.mubr.f32.mxu0 0.0
    %1601 = vmatmul.mubr.f32.gmra.mrb[0].mxu0 %v1531
    %v1602 = vpop.f32.mrb[0].mxu0
    %v1603 = vadd.f32 0.0, %v1602
    %v1604 = vpop.f32.mrb[0].mxu0
    %1605 = vmatprep.mubr.f32.mxu0 0.0
    %1606 = vmatmul.mubr.f32.gmra.mrb[0].mxu0 %v1534
    %v1607 = vpop.f32.mrb[0].mxu0
    %v1608 = vadd.f32 0.0, %v1607
    %v1609 = vpop.f32.mrb[0].mxu0
    %1610 = vdwg.mxu0
    %1613 = vrot.lane.b32.xlu0 %v1603, 120
    %v1614 = vpop.permute.xlu0 %1613
    %1615 = vrot.lane.b32.xlu0 %v1608, 120
    %v1616 = vpop.permute.xlu0 %1615
    %1617 = vrot.lane.b32.xlu0 %v1603, 112
    %v1618 = vpop.permute.xlu0 %1617
    %1619 = vrot.lane.b32.xlu0 %v1608, 112
    %v1620 = vpop.permute.xlu0 %1619
    %1621 = vrot.lane.b32.xlu0 %v1603, 104
    %v1622 = vpop.permute.xlu0 %1621
    %1623 = vrot.lane.b32.xlu0 %v1608, 104
    %v1624 = vpop.permute.xlu0 %1623
    %1625 = vrot.lane.b32.xlu0 %v1603, 96
    %v1626 = vpop.permute.xlu0 %1625
    %1627 = vrot.lane.b32.xlu0 %v1608, 96
    %v1628 = vpop.permute.xlu0 %1627
    %1629 = vrot.lane.b32.xlu0 %v1603, 88
    %v1630 = vpop.permute.xlu0 %1629
    %1631 = vrot.lane.b32.xlu0 %v1608, 88
    %v1632 = vpop.permute.xlu0 %1631
    %1633 = vrot.lane.b32.xlu0 %v1603, 80
    %v1634 = vpop.permute.xlu0 %1633
    %1635 = vrot.lane.b32.xlu0 %v1608, 80
    %v1636 = vpop.permute.xlu0 %1635
    %1637 = vrot.lane.b32.xlu0 %v1603, 72
    %v1638 = vpop.permute.xlu0 %1637
    %1639 = vrot.lane.b32.xlu0 %v1608, 72
    %v1640 = vpop.permute.xlu0 %1639
    %1641 = vrot.lane.b32.xlu0 %v1603, 64
    %v1642 = vpop.permute.xlu0 %1641
    %1643 = vrot.lane.b32.xlu0 %v1608, 64
    %v1644 = vpop.permute.xlu0 %1643
    %1647 = vrot.lane.b32.xlu0 %v1603, 56
    %v1648 = vpop.permute.xlu0 %1647
    %1649 = vrot.lane.b32.xlu0 %v1608, 56
    %v1650 = vpop.permute.xlu0 %1649
    %1653 = vrot.lane.b32.xlu0 %v1603, 48
    %v1654 = vpop.permute.xlu0 %1653
    %1655 = vrot.lane.b32.xlu0 %v1608, 48
    %v1656 = vpop.permute.xlu0 %1655
    %1659 = vrot.lane.b32.xlu0 %v1603, 40
    %v1660 = vpop.permute.xlu0 %1659
    %1661 = vrot.lane.b32.xlu0 %v1608, 40
    %v1662 = vpop.permute.xlu0 %1661
    %v1665 = vsel %vm355, %v1603, 0
    %v1667 = vsel %vm355, %v1608, 0
    %v1669 = vsel %vm355, %v1626, 0
    %v1671 = vsel %vm355, %v1628, 0
    %1673 = vmatprep.subr.mxu0 0.0
    %1674 = vmatpush1.xpose.msra.mxu0 %v1669
    %1675 = vmatprep.subr.mxu0 0.0
    %1676 = vmatpush1.xpose.msra.mxu0 %v1671
    %1677 = vmatprep.subr.mxu0 0.0
    %1678 = vmatpush1.xpose.msra.mxu0 0.0
    %1679 = vmatprep.subr.mxu0 0.0
    %1680 = vmatpush1.xpose.msra.mxu0 0.0
    %1681 = vmatprep.subr.mxu0 0.0
    %1682 = vmatpush1.xpose.msra.mxu0 0.0
    %1683 = vmatprep.subr.mxu0 0.0
    %1684 = vmatpush1.xpose.msra.mxu0 0.0
    %1685 = vmatprep.subr.mxu0 0.0
    %1686 = vmatpush1.xpose.msra.mxu0 0.0
    %1687 = vmatprep.subr.mxu0 0.0
    %1688 = vmatpush1.xpose.msra.mxu0 0.0
    %1689 = vmatprep.subr.mxu0 0.0
    %1690 = vmatpush1.xpose.msra.mxu0 0.0
    %1691 = vmatprep.subr.mxu0 0.0
    %1692 = vmatpush1.xpose.msra.mxu0 0.0
    %1693 = vmatprep.subr.mxu0 0.0
    %1694 = vmatpush1.xpose.msra.mxu0 0.0
    %1695 = vmatprep.subr.mxu0 0.0
    %1696 = vmatpush1.xpose.msra.mxu0 0.0
    %1697 = vmatprep.subr.mxu0 0.0
    %1698 = vmatpush1.xpose.msra.mxu0 0.0
    %1699 = vmatprep.subr.mxu0 0.0
    %1700 = vmatpush1.xpose.msra.mxu0 0.0
    %1701 = vmatprep.subr.mxu0 0.0
    %1702 = vmatpush1.xpose.msra.mxu0 0.0
    %1703 = vmatprep.subr.mxu0 0.0
    %1704 = vmatpush1.xpose.msra.mxu0 0.0
    %1705 = vmatprep.subr.mxu0 0.0
    %1706 = vmatpush1.xpose.msra.mxu0 0.0
    %1707 = vmatprep.subr.mxu0 0.0
    %1708 = vmatpush1.xpose.msra.mxu0 0.0
    %1709 = vmatprep.subr.mxu0 0.0
    %1710 = vmatpush1.xpose.msra.mxu0 0.0
    %1711 = vmatprep.subr.mxu0 0.0
    %1712 = vmatpush1.xpose.msra.mxu0 0.0
    %1713 = vmatprep.subr.mxu0 0.0
    %1714 = vmatpush1.xpose.msra.mxu0 0.0
    %1715 = vmatprep.subr.mxu0 0.0
    %1716 = vmatpush1.xpose.msra.mxu0 0.0
    %1717 = vmatprep.subr.mxu0 0.0
    %1718 = vmatpush1.xpose.msra.mxu0 0.0
    %1719 = vmatprep.subr.mxu0 0.0
    %1720 = vmatpush1.xpose.msra.mxu0 0.0
    %1721 = vmatprep.subr.mxu0 0.0
    %1722 = vmatpush1.xpose.msra.mxu0 0.0
    %1723 = vmatprep.subr.mxu0 0.0
    %1724 = vmatpush1.xpose.msra.mxu0 0.0
    %1725 = vmatprep.subr.mxu0 0.0
    %1726 = vmatpush1.xpose.msra.mxu0 0.0
    %1727 = vmatprep.subr.mxu0 0.0
    %1728 = vmatpush1.xpose.msra.mxu0 0.0
    %1729 = vmatprep.subr.mxu0 0.0
    %1730 = vmatpush1.xpose.msra.mxu0 0.0
    %1731 = vmatprep.subr.mxu0 0.0
    %1732 = vmatpush1.xpose.msra.mxu0 0.0
    %1733 = vmatprep.subr.mxu0 0.0
    %1734 = vmatpush1.xpose.msra.mxu0 0.0
    %1735 = vmatprep.subr.mxu0 0.0
    %1736 = vmatpush1.xpose.msra.mxu0 0.0
    %1737 = vmatprep.mubr.f32.mxu0 0.0
    %1738 = vmatmul.mubr.f32.gmra.mrb[0].mxu0 %v1665
    %v1739 = vpop.f32.mrb[0].mxu0
    %v1740 = vadd.f32 0.0, %v1739
    %v1741 = vpop.f32.mrb[0].mxu0
    %1742 = vmatprep.mubr.f32.mxu0 0.0
    %1743 = vmatmul.mubr.f32.gmra.mrb[0].mxu0 %v1667
    %v1744 = vpop.f32.mrb[0].mxu0
    %v1745 = vadd.f32 0.0, %v1744
    %v1746 = vpop.f32.mrb[0].mxu0
    %1747 = vdwg.mxu0
    %v1748 = vsel %vm355, %v1614, 0
    %v1750 = vsel %vm355, %v1616, 0
    %v1752 = vsel %vm355, %v1630, 0
    %v1754 = vsel %vm355, %v1632, 0
    %1756 = vmatprep.subr.mxu0 0.0
    %1757 = vmatpush1.xpose.msra.mxu0 %v1752
    %1758 = vmatprep.subr.mxu0 0.0
    %1759 = vmatpush1.xpose.msra.mxu0 %v1754
    %1760 = vmatprep.subr.mxu0 0.0
    %1761 = vmatpush1.xpose.msra.mxu0 0.0
    %1762 = vmatprep.subr.mxu0 0.0
    %1763 = vmatpush1.xpose.msra.mxu0 0.0
    %1764 = vmatprep.subr.mxu0 0.0
    %1765 = vmatpush1.xpose.msra.mxu0 0.0
    %1766 = vmatprep.subr.mxu0 0.0
    %1767 = vmatpush1.xpose.msra.mxu0 0.0
    %1768 = vmatprep.subr.mxu0 0.0
    %1769 = vmatpush1.xpose.msra.mxu0 0.0
    %1770 = vmatprep.subr.mxu0 0.0
    %1771 = vmatpush1.xpose.msra.mxu0 0.0
    %1772 = vmatprep.subr.mxu0 0.0
    %1773 = vmatpush1.xpose.msra.mxu0 0.0
    %1774 = vmatprep.subr.mxu0 0.0
    %1775 = vmatpush1.xpose.msra.mxu0 0.0
    %1776 = vmatprep.subr.mxu0 0.0
    %1777 = vmatpush1.xpose.msra.mxu0 0.0
    %1778 = vmatprep.subr.mxu0 0.0
    %1779 = vmatpush1.xpose.msra.mxu0 0.0
    %1780 = vmatprep.subr.mxu0 0.0
    %1781 = vmatpush1.xpose.msra.mxu0 0.0
    %1782 = vmatprep.subr.mxu0 0.0
    %1783 = vmatpush1.xpose.msra.mxu0 0.0
    %1784 = vmatprep.subr.mxu0 0.0
    %1785 = vmatpush1.xpose.msra.mxu0 0.0
    %1786 = vmatprep.subr.mxu0 0.0
    %1787 = vmatpush1.xpose.msra.mxu0 0.0
    %1788 = vmatprep.subr.mxu0 0.0
    %1789 = vmatpush1.xpose.msra.mxu0 0.0
    %1790 = vmatprep.subr.mxu0 0.0
    %1791 = vmatpush1.xpose.msra.mxu0 0.0
    %1792 = vmatprep.subr.mxu0 0.0
    %1793 = vmatpush1.xpose.msra.mxu0 0.0
    %1794 = vmatprep.subr.mxu0 0.0
    %1795 = vmatpush1.xpose.msra.mxu0 0.0
    %1796 = vmatprep.subr.mxu0 0.0
    %1797 = vmatpush1.xpose.msra.mxu0 0.0
    %1798 = vmatprep.subr.mxu0 0.0
    %1799 = vmatpush1.xpose.msra.mxu0 0.0
    %1800 = vmatprep.subr.mxu0 0.0
    %1801 = vmatpush1.xpose.msra.mxu0 0.0
    %1802 = vmatprep.subr.mxu0 0.0
    %1803 = vmatpush1.xpose.msra.mxu0 0.0
    %1804 = vmatprep.subr.mxu0 0.0
    %1805 = vmatpush1.xpose.msra.mxu0 0.0
    %1806 = vmatprep.subr.mxu0 0.0
    %1807 = vmatpush1.xpose.msra.mxu0 0.0
    %1808 = vmatprep.subr.mxu0 0.0
    %1809 = vmatpush1.xpose.msra.mxu0 0.0
    %1810 = vmatprep.subr.mxu0 0.0
    %1811 = vmatpush1.xpose.msra.mxu0 0.0
    %1812 = vmatprep.subr.mxu0 0.0
    %1813 = vmatpush1.xpose.msra.mxu0 0.0
    %1814 = vmatprep.subr.mxu0 0.0
    %1815 = vmatpush1.xpose.msra.mxu0 0.0
    %1816 = vmatprep.subr.mxu0 0.0
    %1817 = vmatpush1.xpose.msra.mxu0 0.0
    %1818 = vmatprep.subr.mxu0 0.0
    %1819 = vmatpush1.xpose.msra.mxu0 0.0
    %1820 = vmatprep.mubr.f32.mxu0 0.0
    %1821 = vmatmul.mubr.f32.gmra.mrb[0].mxu0 %v1748
    %v1822 = vpop.f32.mrb[0].mxu0
    %v1823 = vadd.f32 0.0, %v1822
    %v1824 = vpop.f32.mrb[0].mxu0
    %1825 = vmatprep.mubr.f32.mxu0 0.0
    %1826 = vmatmul.mubr.f32.gmra.mrb[0].mxu0 %v1750
    %v1827 = vpop.f32.mrb[0].mxu0
    %v1828 = vadd.f32 0.0, %v1827
    %v1829 = vpop.f32.mrb[0].mxu0
    %1830 = vdwg.mxu0
    %v1831 = vsel %vm355, %v1618, 0
    %v1833 = vsel %vm355, %v1620, 0
    %v1835 = vsel %vm355, %v1634, 0
    %v1837 = vsel %vm355, %v1636, 0
    %1839 = vmatprep.subr.mxu0 0.0
    %1840 = vmatpush1.xpose.msra.mxu0 %v1835
    %1841 = vmatprep.subr.mxu0 0.0
    %1842 = vmatpush1.xpose.msra.mxu0 %v1837
    %1843 = vmatprep.subr.mxu0 0.0
    %1844 = vmatpush1.xpose.msra.mxu0 0.0
    %1845 = vmatprep.subr.mxu0 0.0
    %1846 = vmatpush1.xpose.msra.mxu0 0.0
    %1847 = vmatprep.subr.mxu0 0.0
    %1848 = vmatpush1.xpose.msra.mxu0 0.0
    %1849 = vmatprep.subr.mxu0 0.0
    %1850 = vmatpush1.xpose.msra.mxu0 0.0
    %1851 = vmatprep.subr.mxu0 0.0
    %1852 = vmatpush1.xpose.msra.mxu0 0.0
    %1853 = vmatprep.subr.mxu0 0.0
    %1854 = vmatpush1.xpose.msra.mxu0 0.0
    %1855 = vmatprep.subr.mxu0 0.0
    %1856 = vmatpush1.xpose.msra.mxu0 0.0
    %1857 = vmatprep.subr.mxu0 0.0
    %1858 = vmatpush1.xpose.msra.mxu0 0.0
    %1859 = vmatprep.subr.mxu0 0.0
    %1860 = vmatpush1.xpose.msra.mxu0 0.0
    %1861 = vmatprep.subr.mxu0 0.0
    %1862 = vmatpush1.xpose.msra.mxu0 0.0
    %1863 = vmatprep.subr.mxu0 0.0
    %1864 = vmatpush1.xpose.msra.mxu0 0.0
    %1865 = vmatprep.subr.mxu0 0.0
    %1866 = vmatpush1.xpose.msra.mxu0 0.0
    %1867 = vmatprep.subr.mxu0 0.0
    %1868 = vmatpush1.xpose.msra.mxu0 0.0
    %1869 = vmatprep.subr.mxu0 0.0
    %1870 = vmatpush1.xpose.msra.mxu0 0.0
    %1871 = vmatprep.subr.mxu0 0.0
    %1872 = vmatpush1.xpose.msra.mxu0 0.0
    %1873 = vmatprep.subr.mxu0 0.0
    %1874 = vmatpush1.xpose.msra.mxu0 0.0
    %1875 = vmatprep.subr.mxu0 0.0
    %1876 = vmatpush1.xpose.msra.mxu0 0.0
    %1877 = vmatprep.subr.mxu0 0.0
    %1878 = vmatpush1.xpose.msra.mxu0 0.0
    %1879 = vmatprep.subr.mxu0 0.0
    %1880 = vmatpush1.xpose.msra.mxu0 0.0
    %1881 = vmatprep.subr.mxu0 0.0
    %1882 = vmatpush1.xpose.msra.mxu0 0.0
    %1883 = vmatprep.subr.mxu0 0.0
    %1884 = vmatpush1.xpose.msra.mxu0 0.0
    %1885 = vmatprep.subr.mxu0 0.0
    %1886 = vmatpush1.xpose.msra.mxu0 0.0
    %1887 = vmatprep.subr.mxu0 0.0
    %1888 = vmatpush1.xpose.msra.mxu0 0.0
    %1889 = vmatprep.subr.mxu0 0.0
    %1890 = vmatpush1.xpose.msra.mxu0 0.0
    %1891 = vmatprep.subr.mxu0 0.0
    %1892 = vmatpush1.xpose.msra.mxu0 0.0
    %1893 = vmatprep.subr.mxu0 0.0
    %1894 = vmatpush1.xpose.msra.mxu0 0.0
    %1895 = vmatprep.subr.mxu0 0.0
    %1896 = vmatpush1.xpose.msra.mxu0 0.0
    %1897 = vmatprep.subr.mxu0 0.0
    %1898 = vmatpush1.xpose.msra.mxu0 0.0
    %1899 = vmatprep.subr.mxu0 0.0
    %1900 = vmatpush1.xpose.msra.mxu0 0.0
    %1901 = vmatprep.subr.mxu0 0.0
    %1902 = vmatpush1.xpose.msra.mxu0 0.0
    %1903 = vmatprep.mubr.f32.mxu0 0.0
    %1904 = vmatmul.mubr.f32.gmra.mrb[0].mxu0 %v1831
    %v1905 = vpop.f32.mrb[0].mxu0
    %v1906 = vadd.f32 0.0, %v1905
    %v1907 = vpop.f32.mrb[0].mxu0
    %1908 = vmatprep.mubr.f32.mxu0 0.0
    %1909 = vmatmul.mubr.f32.gmra.mrb[0].mxu0 %v1833
    %v1910 = vpop.f32.mrb[0].mxu0
    %v1911 = vadd.f32 0.0, %v1910
    %v1912 = vpop.f32.mrb[0].mxu0
    %1913 = vdwg.mxu0
    %v1914 = vsel %vm355, %v1622, 0
    %v1916 = vsel %vm355, %v1624, 0
    %v1918 = vsel %vm355, %v1638, 0
    %v1920 = vsel %vm355, %v1640, 0
    %1922 = vmatprep.subr.mxu0 0.0
    %1923 = vmatpush1.xpose.msra.mxu0 %v1918
    %1924 = vmatprep.subr.mxu0 0.0
    %1925 = vmatpush1.xpose.msra.mxu0 %v1920
    %1926 = vmatprep.subr.mxu0 0.0
    %1927 = vmatpush1.xpose.msra.mxu0 0.0
    %1928 = vmatprep.subr.mxu0 0.0
    %1929 = vmatpush1.xpose.msra.mxu0 0.0
    %1930 = vmatprep.subr.mxu0 0.0
    %1931 = vmatpush1.xpose.msra.mxu0 0.0
    %1932 = vmatprep.subr.mxu0 0.0
    %1933 = vmatpush1.xpose.msra.mxu0 0.0
    %1934 = vmatprep.subr.mxu0 0.0
    %1935 = vmatpush1.xpose.msra.mxu0 0.0
    %1936 = vmatprep.subr.mxu0 0.0
    %1937 = vmatpush1.xpose.msra.mxu0 0.0
    %1938 = vmatprep.subr.mxu0 0.0
    %1939 = vmatpush1.xpose.msra.mxu0 0.0
    %1940 = vmatprep.subr.mxu0 0.0
    %1941 = vmatpush1.xpose.msra.mxu0 0.0
    %1942 = vmatprep.subr.mxu0 0.0
    %1943 = vmatpush1.xpose.msra.mxu0 0.0
    %1944 = vmatprep.subr.mxu0 0.0
    %1945 = vmatpush1.xpose.msra.mxu0 0.0
    %1946 = vmatprep.subr.mxu0 0.0
    %1947 = vmatpush1.xpose.msra.mxu0 0.0
    %1948 = vmatprep.subr.mxu0 0.0
    %1949 = vmatpush1.xpose.msra.mxu0 0.0
    %1950 = vmatprep.subr.mxu0 0.0
    %1951 = vmatpush1.xpose.msra.mxu0 0.0
    %1952 = vmatprep.subr.mxu0 0.0
    %1953 = vmatpush1.xpose.msra.mxu0 0.0
    %1954 = vmatprep.subr.mxu0 0.0
    %1955 = vmatpush1.xpose.msra.mxu0 0.0
    %1956 = vmatprep.subr.mxu0 0.0
    %1957 = vmatpush1.xpose.msra.mxu0 0.0
    %1958 = vmatprep.subr.mxu0 0.0
    %1959 = vmatpush1.xpose.msra.mxu0 0.0
    %1960 = vmatprep.subr.mxu0 0.0
    %1961 = vmatpush1.xpose.msra.mxu0 0.0
    %1962 = vmatprep.subr.mxu0 0.0
    %1963 = vmatpush1.xpose.msra.mxu0 0.0
    %1964 = vmatprep.subr.mxu0 0.0
    %1965 = vmatpush1.xpose.msra.mxu0 0.0
    %1966 = vmatprep.subr.mxu0 0.0
    %1967 = vmatpush1.xpose.msra.mxu0 0.0
    %1968 = vmatprep.subr.mxu0 0.0
    %1969 = vmatpush1.xpose.msra.mxu0 0.0
    %1970 = vmatprep.subr.mxu0 0.0
    %1971 = vmatpush1.xpose.msra.mxu0 0.0
    %1972 = vmatprep.subr.mxu0 0.0
    %1973 = vmatpush1.xpose.msra.mxu0 0.0
    %1974 = vmatprep.subr.mxu0 0.0
    %1975 = vmatpush1.xpose.msra.mxu0 0.0
    %1976 = vmatprep.subr.mxu0 0.0
    %1977 = vmatpush1.xpose.msra.mxu0 0.0
    %1978 = vmatprep.subr.mxu0 0.0
    %1979 = vmatpush1.xpose.msra.mxu0 0.0
    %1980 = vmatprep.subr.mxu0 0.0
    %1981 = vmatpush1.xpose.msra.mxu0 0.0
    %1982 = vmatprep.subr.mxu0 0.0
    %1983 = vmatpush1.xpose.msra.mxu0 0.0
    %1984 = vmatprep.subr.mxu0 0.0
    %1985 = vmatpush1.xpose.msra.mxu0 0.0
    %1986 = vmatprep.mubr.f32.mxu0 0.0
    %1987 = vmatmul.mubr.f32.gmra.mrb[0].mxu0 %v1914
    %v1988 = vpop.f32.mrb[0].mxu0
    %v1989 = vadd.f32 0.0, %v1988
    %v1990 = vpop.f32.mrb[0].mxu0
    %1991 = vmatprep.mubr.f32.mxu0 0.0
    %1992 = vmatmul.mubr.f32.gmra.mrb[0].mxu0 %v1916
    %v1993 = vpop.f32.mrb[0].mxu0
    %v1994 = vadd.f32 0.0, %v1993
    %v1995 = vpop.f32.mrb[0].mxu0
    %1996 = vdwg.mxu0
    %v1997 = vmul.f32 %v1740, 0.35355338
    %v1998 = vmul.f32 %v1745, 0.35355338
    %v1999 = vmul.f32 %v1823, 0.35355338
    %v2000 = vmul.f32 %v1828, 0.35355338
    %v2001 = vmul.f32 %v1906, 0.35355338
    %v2002 = vmul.f32 %v1911, 0.35355338
    %v2003 = vmul.f32 %v1989, 0.35355338
    %v2004 = vmul.f32 %v1994, 0.35355338
    %v2005 = vadd.f32 %v1997, %v168
    %v2006 = vadd.f32 %v1998, %v169
    %v2007 = vadd.f32 %v1999, %v168
    %v2008 = vadd.f32 %v2000, %v169
    %v2009 = vadd.f32 %v2001, %v168
    %v2010 = vadd.f32 %v2002, %v169
    %v2011 = vadd.f32 %v2003, %v168
    %v2012 = vadd.f32 %v2004, %v169
    %v2013 = vsel %vm704, %v2005, -inf
    %2014 = vmax.xlane.f32.xlu0 %v2013
    %v2015 = vpop.xlane.xlu0 %2014
    %v2016 = vsel %vm704, %v2006, -inf
    %2017 = vmax.xlane.f32.xlu0 %v2016
    %v2018 = vpop.xlane.xlu0 %2017
    %v2019 = vsel %vm704, %v2007, -inf
    %2020 = vmax.xlane.f32.xlu0 %v2019
    %v2021 = vpop.xlane.xlu0 %2020
    %v2022 = vsel %vm704, %v2008, -inf
    %2023 = vmax.xlane.f32.xlu0 %v2022
    %v2024 = vpop.xlane.xlu0 %2023
    %v2025 = vsel %vm704, %v2009, -inf
    %2026 = vmax.xlane.f32.xlu0 %v2025
    %v2027 = vpop.xlane.xlu0 %2026
    %v2028 = vsel %vm704, %v2010, -inf
    %2029 = vmax.xlane.f32.xlu0 %v2028
    %v2030 = vpop.xlane.xlu0 %2029
    %v2031 = vsel %vm704, %v2011, -inf
    %2032 = vmax.xlane.f32.xlu0 %v2031
    %v2033 = vpop.xlane.xlu0 %2032
    %v2034 = vsel %vm704, %v2012, -inf
    %2035 = vmax.xlane.f32.xlu0 %v2034
    %v2036 = vpop.xlane.xlu0 %2035
    %v2037 = vsub.f32 %v2005, %v2015
    %v2038 = vsub.f32 %v2006, %v2018
    %v2039 = vsub.f32 %v2007, %v2021
    %v2040 = vsub.f32 %v2008, %v2024
    %v2041 = vsub.f32 %v2009, %v2027
    %v2042 = vsub.f32 %v2010, %v2030
    %v2043 = vsub.f32 %v2011, %v2033
    %v2044 = vsub.f32 %v2012, %v2036
    %v2045 = vmul.f32 %v2037, 1.442695
    %v2046 = vpow.pop %v2045
    %v2047 = vmul.f32 %v2038, 1.442695
    %v2048 = vpow.pop %v2047
    %v2049 = vmul.f32 %v2039, 1.442695
    %v2050 = vpow.pop %v2049
    %v2051 = vmul.f32 %v2040, 1.442695
    %v2052 = vpow.pop %v2051
    %v2053 = vmul.f32 %v2041, 1.442695
    %v2054 = vpow.pop %v2053
    %v2055 = vmul.f32 %v2042, 1.442695
    %v2056 = vpow.pop %v2055
    %v2057 = vmul.f32 %v2043, 1.442695
    %v2058 = vpow.pop %v2057
    %v2059 = vmul.f32 %v2044, 1.442695
    %v2060 = vpow.pop %v2059
    %v2061 = vsel %vm704, %v2046, 0.0
    %2062 = vadd.xlane.f32.xlu0 %v2061
    %v2063 = vpop.xlane.xlu0 %2062
    %v2064 = vsel %vm704, %v2048, 0.0
    %2065 = vadd.xlane.f32.xlu0 %v2064
    %v2066 = vpop.xlane.xlu0 %2065
    %v2067 = vsel %vm704, %v2050, 0.0
    %2068 = vadd.xlane.f32.xlu0 %v2067
    %v2069 = vpop.xlane.xlu0 %2068
    %v2070 = vsel %vm704, %v2052, 0.0
    %2071 = vadd.xlane.f32.xlu0 %v2070
    %v2072 = vpop.xlane.xlu0 %2071
    %v2073 = vsel %vm704, %v2054, 0.0
    %2074 = vadd.xlane.f32.xlu0 %v2073
    %v2075 = vpop.xlane.xlu0 %2074
    %v2076 = vsel %vm704, %v2056, 0.0
    %2077 = vadd.xlane.f32.xlu0 %v2076
    %v2078 = vpop.xlane.xlu0 %2077
    %v2079 = vsel %vm704, %v2058, 0.0
    %2080 = vadd.xlane.f32.xlu0 %v2079
    %v2081 = vpop.xlane.xlu0 %2080
    %v2082 = vsel %vm704, %v2060, 0.0
    %2083 = vadd.xlane.f32.xlu0 %v2082
    %v2084 = vpop.xlane.xlu0 %2083
    %v2085 = vrcp.pop %v2063
    %v2086 = vrcp.pop %v2066
    %v2087 = vrcp.pop %v2069
    %v2088 = vrcp.pop %v2072
    %v2089 = vrcp.pop %v2075
    %v2090 = vrcp.pop %v2078
    %v2091 = vrcp.pop %v2081
    %v2092 = vrcp.pop %v2084
    %v2093 = vmul.f32 %v2046, %v2085
    %v2094 = vmul.f32 %v2048, %v2086
    %v2095 = vmul.f32 %v2050, %v2087
    %v2096 = vmul.f32 %v2052, %v2088
    %v2097 = vmul.f32 %v2054, %v2089
    %v2098 = vmul.f32 %v2056, %v2090
    %v2099 = vmul.f32 %v2058, %v2091
    %v2100 = vmul.f32 %v2060, %v2092
    %v2102 = vsel %vm704, %v2093, 0
    %v2105 = vsel %vm704, %v2094, 0
    %2107 = vmatprep.subr.mxu0 0.0
    %2108 = vmatpush1.msra.mxu0 %v1642
    %2109 = vmatprep.subr.mxu0 0.0
    %2110 = vmatpush1.msra.mxu0 %v1644
    %2111 = vmatprep.subr.mxu0 0.0
    %2112 = vmatpush1.msra.mxu0 0.0
    %2113 = vmatprep.subr.mxu0 0.0
    %2114 = vmatpush1.msra.mxu0 0.0
    %2115 = vmatprep.subr.mxu0 0.0
    %2116 = vmatpush1.msra.mxu0 0.0
    %2117 = vmatprep.subr.mxu0 0.0
    %2118 = vmatpush1.msra.mxu0 0.0
    %2119 = vmatprep.subr.mxu0 0.0
    %2120 = vmatpush1.msra.mxu0 0.0
    %2121 = vmatprep.subr.mxu0 0.0
    %2122 = vmatpush1.msra.mxu0 0.0
    %2123 = vmatprep.subr.mxu0 0.0
    %2124 = vmatpush1.msra.mxu0 0.0
    %2125 = vmatprep.subr.mxu0 0.0
    %2126 = vmatpush1.msra.mxu0 0.0
    %2127 = vmatprep.subr.mxu0 0.0
    %2128 = vmatpush1.msra.mxu0 0.0
    %2129 = vmatprep.subr.mxu0 0.0
    %2130 = vmatpush1.msra.mxu0 0.0
    %2131 = vmatprep.subr.mxu0 0.0
    %2132 = vmatpush1.msra.mxu0 0.0
    %2133 = vmatprep.subr.mxu0 0.0
    %2134 = vmatpush1.msra.mxu0 0.0
    %2135 = vmatprep.subr.mxu0 0.0
    %2136 = vmatpush1.msra.mxu0 0.0
    %2137 = vmatprep.subr.mxu0 0.0
    %2138 = vmatpush1.msra.mxu0 0.0
    %2139 = vmatprep.subr.mxu0 0.0
    %2140 = vmatpush1.msra.mxu0 0.0
    %2141 = vmatprep.subr.mxu0 0.0
    %2142 = vmatpush1.msra.mxu0 0.0
    %2143 = vmatprep.subr.mxu0 0.0
    %2144 = vmatpush1.msra.mxu0 0.0
    %2145 = vmatprep.subr.mxu0 0.0
    %2146 = vmatpush1.msra.mxu0 0.0
    %2147 = vmatprep.subr.mxu0 0.0
    %2148 = vmatpush1.msra.mxu0 0.0
    %2149 = vmatprep.subr.mxu0 0.0
    %2150 = vmatpush1.msra.mxu0 0.0
    %2151 = vmatprep.subr.mxu0 0.0
    %2152 = vmatpush1.msra.mxu0 0.0
    %2153 = vmatprep.subr.mxu0 0.0
    %2154 = vmatpush1.msra.mxu0 0.0
    %2155 = vmatprep.subr.mxu0 0.0
    %2156 = vmatpush1.msra.mxu0 0.0
    %2157 = vmatprep.subr.mxu0 0.0
    %2158 = vmatpush1.msra.mxu0 0.0
    %2159 = vmatprep.subr.mxu0 0.0
    %2160 = vmatpush1.msra.mxu0 0.0
    %2161 = vmatprep.subr.mxu0 0.0
    %2162 = vmatpush1.msra.mxu0 0.0
    %2163 = vmatprep.subr.mxu0 0.0
    %2164 = vmatpush1.msra.mxu0 0.0
    %2165 = vmatprep.subr.mxu0 0.0
    %2166 = vmatpush1.msra.mxu0 0.0
    %2167 = vmatprep.subr.mxu0 0.0
    %2168 = vmatpush1.msra.mxu0 0.0
    %2169 = vmatprep.subr.mxu0 0.0
    %2170 = vmatpush1.msra.mxu0 0.0
    %2171 = vmatprep.mubr.f32.mxu0 0.0
    %2172 = vmatmul.mubr.f32.gmra.mrb[0].mxu0 %v2102
    %v2173 = vpop.f32.mrb[0].mxu0
    %v2174 = vadd.f32 0.0, %v2173
    %v2175 = vpop.f32.mrb[0].mxu0
    %2176 = vmatprep.mubr.f32.mxu0 0.0
    %2177 = vmatmul.mubr.f32.gmra.mrb[0].mxu0 %v2105
    %v2178 = vpop.f32.mrb[0].mxu0
    %v2179 = vadd.f32 0.0, %v2178
    %v2180 = vpop.f32.mrb[0].mxu0
    %2181 = vdwg.mxu0
    %v2183 = vsel %vm704, %v2095, 0
    %v2186 = vsel %vm704, %v2096, 0
    %2188 = vmatprep.subr.mxu0 0.0
    %2189 = vmatpush1.msra.mxu0 %v1648
    %2190 = vmatprep.subr.mxu0 0.0
    %2191 = vmatpush1.msra.mxu0 %v1650
    %2192 = vmatprep.subr.mxu0 0.0
    %2193 = vmatpush1.msra.mxu0 0.0
    %2194 = vmatprep.subr.mxu0 0.0
    %2195 = vmatpush1.msra.mxu0 0.0
    %2196 = vmatprep.subr.mxu0 0.0
    %2197 = vmatpush1.msra.mxu0 0.0
    %2198 = vmatprep.subr.mxu0 0.0
    %2199 = vmatpush1.msra.mxu0 0.0
    %2200 = vmatprep.subr.mxu0 0.0
    %2201 = vmatpush1.msra.mxu0 0.0
    %2202 = vmatprep.subr.mxu0 0.0
    %2203 = vmatpush1.msra.mxu0 0.0
    %2204 = vmatprep.subr.mxu0 0.0
    %2205 = vmatpush1.msra.mxu0 0.0
    %2206 = vmatprep.subr.mxu0 0.0
    %2207 = vmatpush1.msra.mxu0 0.0
    %2208 = vmatprep.subr.mxu0 0.0
    %2209 = vmatpush1.msra.mxu0 0.0
    %2210 = vmatprep.subr.mxu0 0.0
    %2211 = vmatpush1.msra.mxu0 0.0
    %2212 = vmatprep.subr.mxu0 0.0
    %2213 = vmatpush1.msra.mxu0 0.0
    %2214 = vmatprep.subr.mxu0 0.0
    %2215 = vmatpush1.msra.mxu0 0.0
    %2216 = vmatprep.subr.mxu0 0.0
    %2217 = vmatpush1.msra.mxu0 0.0
    %2218 = vmatprep.subr.mxu0 0.0
    %2219 = vmatpush1.msra.mxu0 0.0
    %2220 = vmatprep.subr.mxu0 0.0
    %2221 = vmatpush1.msra.mxu0 0.0
    %2222 = vmatprep.subr.mxu0 0.0
    %2223 = vmatpush1.msra.mxu0 0.0
    %2224 = vmatprep.subr.mxu0 0.0
    %2225 = vmatpush1.msra.mxu0 0.0
    %2226 = vmatprep.subr.mxu0 0.0
    %2227 = vmatpush1.msra.mxu0 0.0
    %2228 = vmatprep.subr.mxu0 0.0
    %2229 = vmatpush1.msra.mxu0 0.0
    %2230 = vmatprep.subr.mxu0 0.0
    %2231 = vmatpush1.msra.mxu0 0.0
    %2232 = vmatprep.subr.mxu0 0.0
    %2233 = vmatpush1.msra.mxu0 0.0
    %2234 = vmatprep.subr.mxu0 0.0
    %2235 = vmatpush1.msra.mxu0 0.0
    %2236 = vmatprep.subr.mxu0 0.0
    %2237 = vmatpush1.msra.mxu0 0.0
    %2238 = vmatprep.subr.mxu0 0.0
    %2239 = vmatpush1.msra.mxu0 0.0
    %2240 = vmatprep.subr.mxu0 0.0
    %2241 = vmatpush1.msra.mxu0 0.0
    %2242 = vmatprep.subr.mxu0 0.0
    %2243 = vmatpush1.msra.mxu0 0.0
    %2244 = vmatprep.subr.mxu0 0.0
    %2245 = vmatpush1.msra.mxu0 0.0
    %2246 = vmatprep.subr.mxu0 0.0
    %2247 = vmatpush1.msra.mxu0 0.0
    %2248 = vmatprep.subr.mxu0 0.0
    %2249 = vmatpush1.msra.mxu0 0.0
    %2250 = vmatprep.subr.mxu0 0.0
    %2251 = vmatpush1.msra.mxu0 0.0
    %2252 = vmatprep.mubr.f32.mxu0 0.0
    %2253 = vmatmul.mubr.f32.gmra.mrb[0].mxu0 %v2183
    %v2254 = vpop.f32.mrb[0].mxu0
    %v2255 = vadd.f32 0.0, %v2254
    %v2256 = vpop.f32.mrb[0].mxu0
    %2257 = vmatprep.mubr.f32.mxu0 0.0
    %2258 = vmatmul.mubr.f32.gmra.mrb[0].mxu0 %v2186
    %v2259 = vpop.f32.mrb[0].mxu0
    %v2260 = vadd.f32 0.0, %v2259
    %v2261 = vpop.f32.mrb[0].mxu0
    %2262 = vdwg.mxu0
    %v2264 = vsel %vm704, %v2097, 0
    %v2267 = vsel %vm704, %v2098, 0
    %2269 = vmatprep.subr.mxu0 0.0
    %2270 = vmatpush1.msra.mxu0 %v1654
    %2271 = vmatprep.subr.mxu0 0.0
    %2272 = vmatpush1.msra.mxu0 %v1656
    %2273 = vmatprep.subr.mxu0 0.0
    %2274 = vmatpush1.msra.mxu0 0.0
    %2275 = vmatprep.subr.mxu0 0.0
    %2276 = vmatpush1.msra.mxu0 0.0
    %2277 = vmatprep.subr.mxu0 0.0
    %2278 = vmatpush1.msra.mxu0 0.0
    %2279 = vmatprep.subr.mxu0 0.0
    %2280 = vmatpush1.msra.mxu0 0.0
    %2281 = vmatprep.subr.mxu0 0.0
    %2282 = vmatpush1.msra.mxu0 0.0
    %2283 = vmatprep.subr.mxu0 0.0
    %2284 = vmatpush1.msra.mxu0 0.0
    %2285 = vmatprep.subr.mxu0 0.0
    %2286 = vmatpush1.msra.mxu0 0.0
    %2287 = vmatprep.subr.mxu0 0.0
    %2288 = vmatpush1.msra.mxu0 0.0
    %2289 = vmatprep.subr.mxu0 0.0
    %2290 = vmatpush1.msra.mxu0 0.0
    %2291 = vmatprep.subr.mxu0 0.0
    %2292 = vmatpush1.msra.mxu0 0.0
    %2293 = vmatprep.subr.mxu0 0.0
    %2294 = vmatpush1.msra.mxu0 0.0
    %2295 = vmatprep.subr.mxu0 0.0
    %2296 = vmatpush1.msra.mxu0 0.0
    %2297 = vmatprep.subr.mxu0 0.0
    %2298 = vmatpush1.msra.mxu0 0.0
    %2299 = vmatprep.subr.mxu0 0.0
    %2300 = vmatpush1.msra.mxu0 0.0
    %2301 = vmatprep.subr.mxu0 0.0
    %2302 = vmatpush1.msra.mxu0 0.0
    %2303 = vmatprep.subr.mxu0 0.0
    %2304 = vmatpush1.msra.mxu0 0.0
    %2305 = vmatprep.subr.mxu0 0.0
    %2306 = vmatpush1.msra.mxu0 0.0
    %2307 = vmatprep.subr.mxu0 0.0
    %2308 = vmatpush1.msra.mxu0 0.0
    %2309 = vmatprep.subr.mxu0 0.0
    %2310 = vmatpush1.msra.mxu0 0.0
    %2311 = vmatprep.subr.mxu0 0.0
    %2312 = vmatpush1.msra.mxu0 0.0
    %2313 = vmatprep.subr.mxu0 0.0
    %2314 = vmatpush1.msra.mxu0 0.0
    %2315 = vmatprep.subr.mxu0 0.0
    %2316 = vmatpush1.msra.mxu0 0.0
    %2317 = vmatprep.subr.mxu0 0.0
    %2318 = vmatpush1.msra.mxu0 0.0
    %2319 = vmatprep.subr.mxu0 0.0
    %2320 = vmatpush1.msra.mxu0 0.0
    %2321 = vmatprep.subr.mxu0 0.0
    %2322 = vmatpush1.msra.mxu0 0.0
    %2323 = vmatprep.subr.mxu0 0.0
    %2324 = vmatpush1.msra.mxu0 0.0
    %2325 = vmatprep.subr.mxu0 0.0
    %2326 = vmatpush1.msra.mxu0 0.0
    %2327 = vmatprep.subr.mxu0 0.0
    %2328 = vmatpush1.msra.mxu0 0.0
    %2329 = vmatprep.subr.mxu0 0.0
    %2330 = vmatpush1.msra.mxu0 0.0
    %2331 = vmatprep.subr.mxu0 0.0
    %2332 = vmatpush1.msra.mxu0 0.0
    %2333 = vmatprep.mubr.f32.mxu0 0.0
    %2334 = vmatmul.mubr.f32.gmra.mrb[0].mxu0 %v2264
    %v2335 = vpop.f32.mrb[0].mxu0
    %v2336 = vadd.f32 0.0, %v2335
    %v2337 = vpop.f32.mrb[0].mxu0
    %2338 = vmatprep.mubr.f32.mxu0 0.0
    %2339 = vmatmul.mubr.f32.gmra.mrb[0].mxu0 %v2267
    %v2340 = vpop.f32.mrb[0].mxu0
    %v2341 = vadd.f32 0.0, %v2340
    %v2342 = vpop.f32.mrb[0].mxu0
    %2343 = vdwg.mxu0
    %v2345 = vsel %vm704, %v2099, 0
    %v2348 = vsel %vm704, %v2100, 0
    %2350 = vmatprep.subr.mxu0 0.0
    %2351 = vmatpush1.msra.mxu0 %v1660
    %2352 = vmatprep.subr.mxu0 0.0
    %2353 = vmatpush1.msra.mxu0 %v1662
    %2354 = vmatprep.subr.mxu0 0.0
    %2355 = vmatpush1.msra.mxu0 0.0
    %2356 = vmatprep.subr.mxu0 0.0
    %2357 = vmatpush1.msra.mxu0 0.0
    %2358 = vmatprep.subr.mxu0 0.0
    %2359 = vmatpush1.msra.mxu0 0.0
    %2360 = vmatprep.subr.mxu0 0.0
    %2361 = vmatpush1.msra.mxu0 0.0
    %2362 = vmatprep.subr.mxu0 0.0
    %2363 = vmatpush1.msra.mxu0 0.0
    %2364 = vmatprep.subr.mxu0 0.0
    %2365 = vmatpush1.msra.mxu0 0.0
    %2366 = vmatprep.subr.mxu0 0.0
    %2367 = vmatpush1.msra.mxu0 0.0
    %2368 = vmatprep.subr.mxu0 0.0
    %2369 = vmatpush1.msra.mxu0 0.0
    %2370 = vmatprep.subr.mxu0 0.0
    %2371 = vmatpush1.msra.mxu0 0.0
    %2372 = vmatprep.subr.mxu0 0.0
    %2373 = vmatpush1.msra.mxu0 0.0
    %2374 = vmatprep.subr.mxu0 0.0
    %2375 = vmatpush1.msra.mxu0 0.0
    %2376 = vmatprep.subr.mxu0 0.0
    %2377 = vmatpush1.msra.mxu0 0.0
    %2378 = vmatprep.subr.mxu0 0.0
    %2379 = vmatpush1.msra.mxu0 0.0
    %2380 = vmatprep.subr.mxu0 0.0
    %2381 = vmatpush1.msra.mxu0 0.0
    %2382 = vmatprep.subr.mxu0 0.0
    %2383 = vmatpush1.msra.mxu0 0.0
    %2384 = vmatprep.subr.mxu0 0.0
    %2385 = vmatpush1.msra.mxu0 0.0
    %2386 = vmatprep.subr.mxu0 0.0
    %2387 = vmatpush1.msra.mxu0 0.0
    %2388 = vmatprep.subr.mxu0 0.0
    %2389 = vmatpush1.msra.mxu0 0.0
    %2390 = vmatprep.subr.mxu0 0.0
    %2391 = vmatpush1.msra.mxu0 0.0
    %2392 = vmatprep.subr.mxu0 0.0
    %2393 = vmatpush1.msra.mxu0 0.0
    %2394 = vmatprep.subr.mxu0 0.0
    %2395 = vmatpush1.msra.mxu0 0.0
    %2396 = vmatprep.subr.mxu0 0.0
    %2397 = vmatpush1.msra.mxu0 0.0
    %2398 = vmatprep.subr.mxu0 0.0
    %2399 = vmatpush1.msra.mxu0 0.0
    %2400 = vmatprep.subr.mxu0 0.0
    %2401 = vmatpush1.msra.mxu0 0.0
    %2402 = vmatprep.subr.mxu0 0.0
    %2403 = vmatpush1.msra.mxu0 0.0
    %2404 = vmatprep.subr.mxu0 0.0
    %2405 = vmatpush1.msra.mxu0 0.0
    %2406 = vmatprep.subr.mxu0 0.0
    %2407 = vmatpush1.msra.mxu0 0.0
    %2408 = vmatprep.subr.mxu0 0.0
    %2409 = vmatpush1.msra.mxu0 0.0
    %2410 = vmatprep.subr.mxu0 0.0
    %2411 = vmatpush1.msra.mxu0 0.0
    %2412 = vmatprep.subr.mxu0 0.0
    %2413 = vmatpush1.msra.mxu0 0.0
    %2414 = vmatprep.mubr.f32.mxu0 0.0
    %2415 = vmatmul.mubr.f32.gmra.mrb[0].mxu0 %v2345
    %v2416 = vpop.f32.mrb[0].mxu0
    %v2417 = vadd.f32 0.0, %v2416
    %v2418 = vpop.f32.mrb[0].mxu0
    %2419 = vmatprep.mubr.f32.mxu0 0.0
    %2420 = vmatmul.mubr.f32.gmra.mrb[0].mxu0 %v2348
    %v2421 = vpop.f32.mrb[0].mxu0
    %v2422 = vadd.f32 0.0, %v2421
    %v2423 = vpop.f32.mrb[0].mxu0
    %2424 = vdwg.mxu0
    %2427 = vrot.lane.b32.xlu0 %v2255, 8
    %v2428 = vpop.permute.xlu0 %2427
    %2429 = vrot.lane.b32.xlu0 %v2260, 8
    %v2430 = vpop.permute.xlu0 %2429
    %2435 = vrot.lane.b32.xlu0 %v2336, 16
    %v2436 = vpop.permute.xlu0 %2435
    %2437 = vrot.lane.b32.xlu0 %v2341, 16
    %v2438 = vpop.permute.xlu0 %2437
    %2443 = vrot.lane.b32.xlu0 %v2417, 24
    %v2444 = vpop.permute.xlu0 %2443
    %2445 = vrot.lane.b32.xlu0 %v2422, 24
    %v2446 = vpop.permute.xlu0 %2445
    %v2449 = vsel %vm355, %v2174, %v2428
    %v2450 = vsel %vm355, %v2179, %v2430
    %v2451 = vsel %vm704, %v2449, %v2436
    %v2452 = vsel %vm704, %v2450, %v2438
    %v2453 = vsel %vm1145, %v2451, %v2444
    %v2454 = vsel %vm1145, %v2452, %v2446
    %s2455 = scalar_lea.vmem %s5, 32
    %v2456 = vld [vmem:[%s2455] sm:$0xff]
    %v2457 = vld [vmem:[%s2455 + $0x8] sm:$0xff]
    %v2458 = vld [vmem:[%s2455 + $0x10] sm:$0xff]
    %v2459 = vld [vmem:[%s2455 + $0x18] sm:$0xff]
    %s2460 = scalar_lea.vmem [#allocation9], 1
    %v2461 = vld [vmem:[%s2460] sm:$0x1]
    %v2463 = vlaneseq
    %v2464 = vshrl.u32 %v2463, 7
    %v2465 = vsub.s32 0, %v2464
    %v2466 = vrot.slane %v2461, %v2465
    %v2469 = vsel %vm172, %v2453, 0
    %v2472 = vsel %vm172, %v2454, 0
    %2474 = vmatprep.subr.mxu0 0.0
    %2475 = vmatpush1.msra.mxu0 %v2456
    %2476 = vmatprep.subr.mxu0 0.0
    %2477 = vmatpush1.msra.mxu0 %v2457
    %2478 = vmatprep.subr.mxu0 0.0
    %2479 = vmatpush1.msra.mxu0 %v2458
    %2480 = vmatprep.subr.mxu0 0.0
    %2481 = vmatpush1.msra.mxu0 %v2459
    %2482 = vmatprep.subr.mxu0 0.0
    %2483 = vmatpush1.msra.mxu0 0.0
    %2484 = vmatprep.subr.mxu0 0.0
    %2485 = vmatpush1.msra.mxu0 0.0
    %2486 = vmatprep.subr.mxu0 0.0
    %2487 = vmatpush1.msra.mxu0 0.0
    %2488 = vmatprep.subr.mxu0 0.0
    %2489 = vmatpush1.msra.mxu0 0.0
    %2490 = vmatprep.subr.mxu0 0.0
    %2491 = vmatpush1.msra.mxu0 0.0
    %2492 = vmatprep.subr.mxu0 0.0
    %2493 = vmatpush1.msra.mxu0 0.0
    %2494 = vmatprep.subr.mxu0 0.0
    %2495 = vmatpush1.msra.mxu0 0.0
    %2496 = vmatprep.subr.mxu0 0.0
    %2497 = vmatpush1.msra.mxu0 0.0
    %2498 = vmatprep.subr.mxu0 0.0
    %2499 = vmatpush1.msra.mxu0 0.0
    %2500 = vmatprep.subr.mxu0 0.0
    %2501 = vmatpush1.msra.mxu0 0.0
    %2502 = vmatprep.subr.mxu0 0.0
    %2503 = vmatpush1.msra.mxu0 0.0
    %2504 = vmatprep.subr.mxu0 0.0
    %2505 = vmatpush1.msra.mxu0 0.0
    %2506 = vmatprep.subr.mxu0 0.0
    %2507 = vmatpush1.msra.mxu0 0.0
    %2508 = vmatprep.subr.mxu0 0.0
    %2509 = vmatpush1.msra.mxu0 0.0
    %2510 = vmatprep.subr.mxu0 0.0
    %2511 = vmatpush1.msra.mxu0 0.0
    %2512 = vmatprep.subr.mxu0 0.0
    %2513 = vmatpush1.msra.mxu0 0.0
    %2514 = vmatprep.subr.mxu0 0.0
    %2515 = vmatpush1.msra.mxu0 0.0
    %2516 = vmatprep.subr.mxu0 0.0
    %2517 = vmatpush1.msra.mxu0 0.0
    %2518 = vmatprep.subr.mxu0 0.0
    %2519 = vmatpush1.msra.mxu0 0.0
    %2520 = vmatprep.subr.mxu0 0.0
    %2521 = vmatpush1.msra.mxu0 0.0
    %2522 = vmatprep.subr.mxu0 0.0
    %2523 = vmatpush1.msra.mxu0 0.0
    %2524 = vmatprep.subr.mxu0 0.0
    %2525 = vmatpush1.msra.mxu0 0.0
    %2526 = vmatprep.subr.mxu0 0.0
    %2527 = vmatpush1.msra.mxu0 0.0
    %2528 = vmatprep.subr.mxu0 0.0
    %2529 = vmatpush1.msra.mxu0 0.0
    %2530 = vmatprep.subr.mxu0 0.0
    %2531 = vmatpush1.msra.mxu0 0.0
    %2532 = vmatprep.subr.mxu0 0.0
    %2533 = vmatpush1.msra.mxu0 0.0
    %2534 = vmatprep.subr.mxu0 0.0
    %2535 = vmatpush1.msra.mxu0 0.0
    %2536 = vmatprep.subr.mxu0 0.0
    %2537 = vmatpush1.msra.mxu0 0.0
    %2538 = vmatprep.mubr.f32.mxu0 0.0
    %2539 = vmatmul.mubr.f32.gmra.mrb[0].mxu0 %v2469
    %v2540 = vpop.f32.mrb[0].mxu0
    %v2541 = vadd.f32 %v2466, %v2540
    %v2542 = vpop.f32.mrb[0].mxu0
    %2543 = vmatprep.mubr.f32.mxu0 0.0
    %2544 = vmatmul.mubr.f32.gmra.mrb[0].mxu0 %v2472
    %v2545 = vpop.f32.mrb[0].mxu0
    %v2546 = vadd.f32 %v2466, %v2545
    %v2547 = vpop.f32.mrb[0].mxu0
    %2548 = vdwg.mxu0
    %v2549 = vadd.f32 %v2541, %v1477
    %v2550 = vadd.f32 %v2546, %v1478
    %s2551 = scalar_lea.vmem [#allocation11], 1
    %v2552 = vld [vmem:[%s2551] sm:$0x1]
    %s2553 = scalar_lea.vmem [#allocation12], 1
    %v2554 = vld [vmem:[%s2553] sm:$0x1]
    %v2555 = vsel %vm172, %v2549, 0.0
    %2556 = vadd.xlane.f32.xlu0 %v2555
    %v2557 = vpop.xlane.xlu0 %2556
    %v2558 = vsel %vm172, %v2550, 0.0
    %2559 = vadd.xlane.f32.xlu0 %v2558
    %v2560 = vpop.xlane.xlu0 %2559
    %v2561 = vmul.f32 %v2557, %v179
    %v2562 = vmul.f32 %v2560, %v179
    %v2563 = vsub.f32 %v2549, %v2561
    %v2564 = vsub.f32 %v2550, %v2562
    %v2565 = vmul.f32 %v2563, %v2563
    %v2566 = vmul.f32 %v2564, %v2564
    %v2567 = vsel %vm172, %v2565, 0.0
    %2568 = vadd.xlane.f32.xlu0 %v2567
    %v2569 = vpop.xlane.xlu0 %2568
    %v2570 = vsel %vm172, %v2566, 0.0
    %2571 = vadd.xlane.f32.xlu0 %v2570
    %v2572 = vpop.xlane.xlu0 %2571
    %v2573 = vmul.f32 %v2569, %v179
    %v2574 = vmul.f32 %v2572, %v179
    %v2575 = vadd.f32 %v2573, 1e-05
    %v2576 = vadd.f32 %v2574, 1e-05
    %v2577 = vrsqrt.pop %v2575
    %v2578 = vrsqrt.pop %v2576
    %v2579 = vmul.f32 %v2563, %v2577
    %v2580 = vmul.f32 %v2564, %v2578
    %v2582 = vlaneseq
    %v2583 = vshrl.u32 %v2582, 7
    %v2584 = vsub.s32 0, %v2583
    %v2585 = vrot.slane %v2552, %v2584
    %v2587 = vmul.f32 %v2579, %v2585
    %v2588 = vmul.f32 %v2580, %v2585
    %v2590 = vlaneseq
    %v2591 = vshrl.u32 %v2590, 7
    %v2592 = vsub.s32 0, %v2591
    %v2593 = vrot.slane %v2554, %v2592
    %v2595 = vadd.f32 %v2587, %v2593
    %v2596 = vadd.f32 %v2588, %v2593
    %s2597 = scalar_lea.vmem %s9, 32
    %v2598 = vld [vmem:[%s2597] sm:$0xff]
    %v2599 = vld [vmem:[%s2597 + $0x8] sm:$0xff]
    %v2600 = vld [vmem:[%s2597 + $0x10] sm:$0xff]
    %v2601 = vld [vmem:[%s2597 + $0x18] sm:$0xff]
    %s2602 = scalar_lea.vmem %s10, 1
    %v2603 = vld [vmem:[%s2602] sm:$0x1]
    %v2605 = vlaneseq
    %v2606 = vshrl.u32 %v2605, 7
    %v2607 = vsub.s32 0, %v2606
    %v2608 = vrot.slane %v2603, %v2607
    %v2611 = vsel %vm172, %v2595, 0
    %v2614 = vsel %vm172, %v2596, 0
    %2616 = vmatprep.subr.mxu0 0.0
    %2617 = vmatpush1.msra.mxu0 %v2598
    %2618 = vmatprep.subr.mxu0 0.0
    %2619 = vmatpush1.msra.mxu0 %v2599
    %2620 = vmatprep.subr.mxu0 0.0
    %2621 = vmatpush1.msra.mxu0 %v2600
    %2622 = vmatprep.subr.mxu0 0.0
    %2623 = vmatpush1.msra.mxu0 %v2601
    %2624 = vmatprep.subr.mxu0 0.0
    %2625 = vmatpush1.msra.mxu0 0.0
    %2626 = vmatprep.subr.mxu0 0.0
    %2627 = vmatpush1.msra.mxu0 0.0
    %2628 = vmatprep.subr.mxu0 0.0
    %2629 = vmatpush1.msra.mxu0 0.0
    %2630 = vmatprep.subr.mxu0 0.0
    %2631 = vmatpush1.msra.mxu0 0.0
    %2632 = vmatprep.subr.mxu0 0.0
    %2633 = vmatpush1.msra.mxu0 0.0
    %2634 = vmatprep.subr.mxu0 0.0
    %2635 = vmatpush1.msra.mxu0 0.0
    %2636 = vmatprep.subr.mxu0 0.0
    %2637 = vmatpush1.msra.mxu0 0.0
    %2638 = vmatprep.subr.mxu0 0.0
    %2639 = vmatpush1.msra.mxu0 0.0
    %2640 = vmatprep.subr.mxu0 0.0
    %2641 = vmatpush1.msra.mxu0 0.0
    %2642 = vmatprep.subr.mxu0 0.0
    %2643 = vmatpush1.msra.mxu0 0.0
    %2644 = vmatprep.subr.mxu0 0.0
    %2645 = vmatpush1.msra.mxu0 0.0
    %2646 = vmatprep.subr.mxu0 0.0
    %2647 = vmatpush1.msra.mxu0 0.0
    %2648 = vmatprep.subr.mxu0 0.0
    %2649 = vmatpush1.msra.mxu0 0.0
    %2650 = vmatprep.subr.mxu0 0.0
    %2651 = vmatpush1.msra.mxu0 0.0
    %2652 = vmatprep.subr.mxu0 0.0
    %2653 = vmatpush1.msra.mxu0 0.0
    %2654 = vmatprep.subr.mxu0 0.0
    %2655 = vmatpush1.msra.mxu0 0.0
    %2656 = vmatprep.subr.mxu0 0.0
    %2657 = vmatpush1.msra.mxu0 0.0
    %2658 = vmatprep.subr.mxu0 0.0
    %2659 = vmatpush1.msra.mxu0 0.0
    %2660 = vmatprep.subr.mxu0 0.0
    %2661 = vmatpush1.msra.mxu0 0.0
    %2662 = vmatprep.subr.mxu0 0.0
    %2663 = vmatpush1.msra.mxu0 0.0
    %2664 = vmatprep.subr.mxu0 0.0
    %2665 = vmatpush1.msra.mxu0 0.0
    %2666 = vmatprep.subr.mxu0 0.0
    %2667 = vmatpush1.msra.mxu0 0.0
    %2668 = vmatprep.subr.mxu0 0.0
    %2669 = vmatpush1.msra.mxu0 0.0
    %2670 = vmatprep.subr.mxu0 0.0
    %2671 = vmatpush1.msra.mxu0 0.0
    %2672 = vmatprep.subr.mxu0 0.0
    %2673 = vmatpush1.msra.mxu0 0.0
    %2674 = vmatprep.subr.mxu0 0.0
    %2675 = vmatpush1.msra.mxu0 0.0
    %2676 = vmatprep.subr.mxu0 0.0
    %2677 = vmatpush1.msra.mxu0 0.0
    %2678 = vmatprep.subr.mxu0 0.0
    %2679 = vmatpush1.msra.mxu0 0.0
    %2680 = vmatprep.mubr.f32.mxu0 0.0
    %2681 = vmatmul.mubr.f32.gmra.mrb[0].mxu0 %v2611
    %v2682 = vpop.f32.mrb[0].mxu0
    %v2683 = vadd.f32 %v2608, %v2682
    %v2684 = vpop.f32.mrb[0].mxu0
    %2685 = vmatprep.mubr.f32.mxu0 0.0
    %2686 = vmatmul.mubr.f32.gmra.mrb[0].mxu0 %v2614
    %v2687 = vpop.f32.mrb[0].mxu0
    %v2688 = vadd.f32 %v2608, %v2687
    %v2689 = vpop.f32.mrb[0].mxu0
    %2690 = vdwg.mxu0
    %v2691 = vmax.f32 %v2683, 0.0
    %v2692 = vmax.f32 %v2688, 0.0
    %s2693 = scalar_lea.vmem %s11, 64
    %v2694 = vld [vmem:[%s2693] sm:$0xff]
    %v2695 = vld [vmem:[%s2693 + $0x8] sm:$0xff]
    %v2696 = vld [vmem:[%s2693 + $0x10] sm:$0xff]
    %v2697 = vld [vmem:[%s2693 + $0x18] sm:$0xff]
    %v2698 = vld [vmem:[%s2693 + $0x20] sm:$0xff]
    %v2699 = vld [vmem:[%s2693 + $0x28] sm:$0xff]
    %v2700 = vld [vmem:[%s2693 + $0x30] sm:$0xff]
    %v2701 = vld [vmem:[%s2693 + $0x38] sm:$0xff]
    %s2702 = scalar_lea.vmem %s12, 1
    %v2703 = vld [vmem:[%s2702] sm:$0x1]
    %v2705 = vlaneseq
    %v2706 = vshrl.u32 %v2705, 7
    %v2707 = vsub.s32 0, %v2706
    %v2708 = vrot.slane %v2703, %v2707
    %v2711 = vsel %vm1395, %v2691, 0
    %v2714 = vsel %vm1395, %v2692, 0
    %2716 = vmatprep.subr.mxu0 0.0
    %2717 = vmatpush1.msra.mxu0 %v2694
    %2718 = vmatprep.subr.mxu0 0.0
    %2719 = vmatpush1.msra.mxu0 %v2695
    %2720 = vmatprep.subr.mxu0 0.0
    %2721 = vmatpush1.msra.mxu0 %v2696
    %2722 = vmatprep.subr.mxu0 0.0
    %2723 = vmatpush1.msra.mxu0 %v2697
    %2724 = vmatprep.subr.mxu0 0.0
    %2725 = vmatpush1.msra.mxu0 %v2698
    %2726 = vmatprep.subr.mxu0 0.0
    %2727 = vmatpush1.msra.mxu0 %v2699
    %2728 = vmatprep.subr.mxu0 0.0
    %2729 = vmatpush1.msra.mxu0 %v2700
    %2730 = vmatprep.subr.mxu0 0.0
    %2731 = vmatpush1.msra.mxu0 %v2701
    %2732 = vmatprep.subr.mxu0 0.0
    %2733 = vmatpush1.msra.mxu0 0.0
    %2734 = vmatprep.subr.mxu0 0.0
    %2735 = vmatpush1.msra.mxu0 0.0
    %2736 = vmatprep.subr.mxu0 0.0
    %2737 = vmatpush1.msra.mxu0 0.0
    %2738 = vmatprep.subr.mxu0 0.0
    %2739 = vmatpush1.msra.mxu0 0.0
    %2740 = vmatprep.subr.mxu0 0.0
    %2741 = vmatpush1.msra.mxu0 0.0
    %2742 = vmatprep.subr.mxu0 0.0
    %2743 = vmatpush1.msra.mxu0 0.0
    %2744 = vmatprep.subr.mxu0 0.0
    %2745 = vmatpush1.msra.mxu0 0.0
    %2746 = vmatprep.subr.mxu0 0.0
    %2747 = vmatpush1.msra.mxu0 0.0
    %2748 = vmatprep.subr.mxu0 0.0
    %2749 = vmatpush1.msra.mxu0 0.0
    %2750 = vmatprep.subr.mxu0 0.0
    %2751 = vmatpush1.msra.mxu0 0.0
    %2752 = vmatprep.subr.mxu0 0.0
    %2753 = vmatpush1.msra.mxu0 0.0
    %2754 = vmatprep.subr.mxu0 0.0
    %2755 = vmatpush1.msra.mxu0 0.0
    %2756 = vmatprep.subr.mxu0 0.0
    %2757 = vmatpush1.msra.mxu0 0.0
    %2758 = vmatprep.subr.mxu0 0.0
    %2759 = vmatpush1.msra.mxu0 0.0
    %2760 = vmatprep.subr.mxu0 0.0
    %2761 = vmatpush1.msra.mxu0 0.0
    %2762 = vmatprep.subr.mxu0 0.0
    %2763 = vmatpush1.msra.mxu0 0.0
    %2764 = vmatprep.subr.mxu0 0.0
    %2765 = vmatpush1.msra.mxu0 0.0
    %2766 = vmatprep.subr.mxu0 0.0
    %2767 = vmatpush1.msra.mxu0 0.0
    %2768 = vmatprep.subr.mxu0 0.0
    %2769 = vmatpush1.msra.mxu0 0.0
    %2770 = vmatprep.subr.mxu0 0.0
    %2771 = vmatpush1.msra.mxu0 0.0
    %2772 = vmatprep.subr.mxu0 0.0
    %2773 = vmatpush1.msra.mxu0 0.0
    %2774 = vmatprep.subr.mxu0 0.0
    %2775 = vmatpush1.msra.mxu0 0.0
    %2776 = vmatprep.subr.mxu0 0.0
    %2777 = vmatpush1.msra.mxu0 0.0
    %2778 = vmatprep.subr.mxu0 0.0
    %2779 = vmatpush1.msra.mxu0 0.0
    %2780 = vmatprep.mubr.f32.mxu0 0.0
    %2781 = vmatmul.mubr.f32.gmra.mrb[0].mxu0 %v2711
    %v2782 = vpop.f32.mrb[0].mxu0
    %v2783 = vadd.f32 %v2708, %v2782
    %v2784 = vpop.f32.mrb[0].mxu0
    %2785 = vmatprep.mubr.f32.mxu0 0.0
    %2786 = vmatmul.mubr.f32.gmra.mrb[0].mxu0 %v2714
    %v2787 = vpop.f32.mrb[0].mxu0
    %v2788 = vadd.f32 %v2708, %v2787
    %v2789 = vpop.f32.mrb[0].mxu0
    %2790 = vdwg.mxu0
    %v2791 = vadd.f32 %v2783, %v2549
    %v2792 = vadd.f32 %v2788, %v2550
    %v2793 = vld [vmem:[%s13] sm:$0xff]
    %v2794 = vld [vmem:[%s13 + $0x8] sm:$0xff]
    %v2795 = vld [vmem:[%s13 + $0x10] sm:$0xff]
    %v2796 = vld [vmem:[%s13 + $0x18] sm:$0xff]
    %v2798 = vsel %vm172, %v2791, 0
    %v2801 = vsel %vm172, %v2792, 0
    %2803 = vmatprep.subr.mxu0 0.0
    %2804 = vmatpush1.msra.mxu0 %v2793
    %2805 = vmatprep.subr.mxu0 0.0
    %2806 = vmatpush1.msra.mxu0 %v2794
    %2807 = vmatprep.subr.mxu0 0.0
    %2808 = vmatpush1.msra.mxu0 %v2795
    %2809 = vmatprep.subr.mxu0 0.0
    %2810 = vmatpush1.msra.mxu0 %v2796
    %2811 = vmatprep.subr.mxu0 0.0
    %2812 = vmatpush1.msra.mxu0 0.0
    %2813 = vmatprep.subr.mxu0 0.0
    %2814 = vmatpush1.msra.mxu0 0.0
    %2815 = vmatprep.subr.mxu0 0.0
    %2816 = vmatpush1.msra.mxu0 0.0
    %2817 = vmatprep.subr.mxu0 0.0
    %2818 = vmatpush1.msra.mxu0 0.0
    %2819 = vmatprep.subr.mxu0 0.0
    %2820 = vmatpush1.msra.mxu0 0.0
    %2821 = vmatprep.subr.mxu0 0.0
    %2822 = vmatpush1.msra.mxu0 0.0
    %2823 = vmatprep.subr.mxu0 0.0
    %2824 = vmatpush1.msra.mxu0 0.0
    %2825 = vmatprep.subr.mxu0 0.0
    %2826 = vmatpush1.msra.mxu0 0.0
    %2827 = vmatprep.subr.mxu0 0.0
    %2828 = vmatpush1.msra.mxu0 0.0
    %2829 = vmatprep.subr.mxu0 0.0
    %2830 = vmatpush1.msra.mxu0 0.0
    %2831 = vmatprep.subr.mxu0 0.0
    %2832 = vmatpush1.msra.mxu0 0.0
    %2833 = vmatprep.subr.mxu0 0.0
    %2834 = vmatpush1.msra.mxu0 0.0
    %2835 = vmatprep.subr.mxu0 0.0
    %2836 = vmatpush1.msra.mxu0 0.0
    %2837 = vmatprep.subr.mxu0 0.0
    %2838 = vmatpush1.msra.mxu0 0.0
    %2839 = vmatprep.subr.mxu0 0.0
    %2840 = vmatpush1.msra.mxu0 0.0
    %2841 = vmatprep.subr.mxu0 0.0
    %2842 = vmatpush1.msra.mxu0 0.0
    %2843 = vmatprep.subr.mxu0 0.0
    %2844 = vmatpush1.msra.mxu0 0.0
    %2845 = vmatprep.subr.mxu0 0.0
    %2846 = vmatpush1.msra.mxu0 0.0
    %2847 = vmatprep.subr.mxu0 0.0
    %2848 = vmatpush1.msra.mxu0 0.0
    %2849 = vmatprep.subr.mxu0 0.0
    %2850 = vmatpush1.msra.mxu0 0.0
    %2851 = vmatprep.subr.mxu0 0.0
    %2852 = vmatpush1.msra.mxu0 0.0
    %2853 = vmatprep.subr.mxu0 0.0
    %2854 = vmatpush1.msra.mxu0 0.0
    %2855 = vmatprep.subr.mxu0 0.0
    %2856 = vmatpush1.msra.mxu0 0.0
    %2857 = vmatprep.subr.mxu0 0.0
    %2858 = vmatpush1.msra.mxu0 0.0
    %2859 = vmatprep.subr.mxu0 0.0
    %2860 = vmatpush1.msra.mxu0 0.0
    %2861 = vmatprep.subr.mxu0 0.0
    %2862 = vmatpush1.msra.mxu0 0.0
    %2863 = vmatprep.subr.mxu0 0.0
    %2864 = vmatpush1.msra.mxu0 0.0
    %2865 = vmatprep.subr.mxu0 0.0
    %2866 = vmatpush1.msra.mxu0 0.0
    %2867 = vmatprep.mubr.f32.mxu0 0.0
    %2868 = vmatmul.mubr.f32.gmra.mrb[0].mxu0 %v2798
    %v2869 = vpop.f32.mrb[0].mxu0
    %v2870 = vadd.f32 0.0, %v2869
    %v2871 = vpop.f32.mrb[0].mxu0
    %2872 = vmatprep.mubr.f32.mxu0 0.0
    %2873 = vmatmul.mubr.f32.gmra.mrb[0].mxu0 %v2801
    %v2874 = vpop.f32.mrb[0].mxu0
    %v2875 = vadd.f32 0.0, %v2874
    %v2876 = vpop.f32.mrb[0].mxu0
    %2877 = vdwg.mxu0
    %v2878 = vlaneseq
    %v2879 = vand.u32 %v2878, 127
    %vm2880 = vcmp.lt.s32.totalorder %v2879, 64
    %v2881 = vsel %vm2880, %v2870, -1e+09
    %v2882 = vsel %vm2880, %v2875, -1e+09
    %2883 = vmax.xlane.f32.xlu0 %v2881
    %v2884 = vpop.xlane.xlu0 %2883
    %2885 = vmax.xlane.f32.xlu0 %v2882
    %v2886 = vpop.xlane.xlu0 %2885
    %v2887 = vsub.f32 %v2881, %v2884
    %v2888 = vsub.f32 %v2882, %v2886
    %v2889 = vmul.f32 %v2887, 1.442695
    %v2890 = vpow.pop %v2889
    %v2891 = vmul.f32 %v2888, 1.442695
    %v2892 = vpow.pop %v2891
    %2893 = vadd.xlane.f32.xlu0 %v2890
    %v2894 = vpop.xlane.xlu0 %2893
    %2895 = vadd.xlane.f32.xlu0 %v2892
    %v2896 = vpop.xlane.xlu0 %2895
    %v2897 = vrcp.pop %v2894
    %v2898 = vmul.f32 %v2890, %v2897
    %v2899 = vrcp.pop %v2896
    %v2900 = vmul.f32 %v2892, %v2899
    %2901 = vst [vmem:[#allocation15] sm:$0xff] %v2898
    %2902 = vst [vmem:[#allocation15 + $0x8] sm:$0xff] %v2900
    %v2903 = vld [vmem:[#allocation14] sm:$0xff]
    %v2904 = vld [vmem:[#allocation14 + $0x8] sm:$0xff]
    %v2905 = vld [vmem:[#allocation14 + $0x10] sm:$0xff]
    %v2906 = vld [vmem:[#allocation14 + $0x18] sm:$0xff]
    %v2907 = vld [vmem:[%s15] sm:$0x1]
    %v2909 = vlaneseq
    %v2910 = vshrl.u32 %v2909, 7
    %v2911 = vsub.s32 0, %v2910
    %v2912 = vrot.slane %v2907, %v2911
    %2914 = vmatprep.subr.mxu0 0.0
    %2915 = vmatpush1.msra.mxu0 %v2903
    %2916 = vmatprep.subr.mxu0 0.0
    %2917 = vmatpush1.msra.mxu0 %v2904
    %2918 = vmatprep.subr.mxu0 0.0
    %2919 = vmatpush1.msra.mxu0 %v2905
    %2920 = vmatprep.subr.mxu0 0.0
    %2921 = vmatpush1.msra.mxu0 %v2906
    %2922 = vmatprep.subr.mxu0 0.0
    %2923 = vmatpush1.msra.mxu0 0.0
    %2924 = vmatprep.subr.mxu0 0.0
    %2925 = vmatpush1.msra.mxu0 0.0
    %2926 = vmatprep.subr.mxu0 0.0
    %2927 = vmatpush1.msra.mxu0 0.0
    %2928 = vmatprep.subr.mxu0 0.0
    %2929 = vmatpush1.msra.mxu0 0.0
    %2930 = vmatprep.subr.mxu0 0.0
    %2931 = vmatpush1.msra.mxu0 0.0
    %2932 = vmatprep.subr.mxu0 0.0
    %2933 = vmatpush1.msra.mxu0 0.0
    %2934 = vmatprep.subr.mxu0 0.0
    %2935 = vmatpush1.msra.mxu0 0.0
    %2936 = vmatprep.subr.mxu0 0.0
    %2937 = vmatpush1.msra.mxu0 0.0
    %2938 = vmatprep.subr.mxu0 0.0
    %2939 = vmatpush1.msra.mxu0 0.0
    %2940 = vmatprep.subr.mxu0 0.0
    %2941 = vmatpush1.msra.mxu0 0.0
    %2942 = vmatprep.subr.mxu0 0.0
    %2943 = vmatpush1.msra.mxu0 0.0
    %2944 = vmatprep.subr.mxu0 0.0
    %2945 = vmatpush1.msra.mxu0 0.0
    %2946 = vmatprep.subr.mxu0 0.0
    %2947 = vmatpush1.msra.mxu0 0.0
    %2948 = vmatprep.subr.mxu0 0.0
    %2949 = vmatpush1.msra.mxu0 0.0
    %2950 = vmatprep.subr.mxu0 0.0
    %2951 = vmatpush1.msra.mxu0 0.0
    %2952 = vmatprep.subr.mxu0 0.0
    %2953 = vmatpush1.msra.mxu0 0.0
    %2954 = vmatprep.subr.mxu0 0.0
    %2955 = vmatpush1.msra.mxu0 0.0
    %2956 = vmatprep.subr.mxu0 0.0
    %2957 = vmatpush1.msra.mxu0 0.0
    %2958 = vmatprep.subr.mxu0 0.0
    %2959 = vmatpush1.msra.mxu0 0.0
    %2960 = vmatprep.subr.mxu0 0.0
    %2961 = vmatpush1.msra.mxu0 0.0
    %2962 = vmatprep.subr.mxu0 0.0
    %2963 = vmatpush1.msra.mxu0 0.0
    %2964 = vmatprep.subr.mxu0 0.0
    %2965 = vmatpush1.msra.mxu0 0.0
    %2966 = vmatprep.subr.mxu0 0.0
    %2967 = vmatpush1.msra.mxu0 0.0
    %2968 = vmatprep.subr.mxu0 0.0
    %2969 = vmatpush1.msra.mxu0 0.0
    %2970 = vmatprep.subr.mxu0 0.0
    %2971 = vmatpush1.msra.mxu0 0.0
    %2972 = vmatprep.subr.mxu0 0.0
    %2973 = vmatpush1.msra.mxu0 0.0
    %2974 = vmatprep.subr.mxu0 0.0
    %2975 = vmatpush1.msra.mxu0 0.0
    %2976 = vmatprep.subr.mxu0 0.0
    %2977 = vmatpush1.msra.mxu0 0.0
    %2978 = vmatprep.mubr.f32.mxu0 0.0
    %2979 = vmatmul.mubr.f32.gmra.mrb[0].mxu0 %v2798
    %v2980 = vpop.f32.mrb[0].mxu0
    %v2981 = vadd.f32 %v2912, %v2980
    %v2982 = vpop.f32.mrb[0].mxu0
    %2983 = vmatprep.mubr.f32.mxu0 0.0
    %2984 = vmatmul.mubr.f32.gmra.mrb[0].mxu0 %v2801
    %v2985 = vpop.f32.mrb[0].mxu0
    %v2986 = vadd.f32 %v2912, %v2985
    %v2987 = vpop.f32.mrb[0].mxu0
    %2988 = vdwg.mxu0
    %v2989 = vmax.f32 %v2981, 0.0
    %v2990 = vmax.f32 %v2986, 0.0
    %v2991 = vld [vmem:[%s16] sm:$0x1]
    %v2992 = vld [vmem:[%s17] sm:$0x1]
    %v2993 = vsel %vm172, %v2989, 0.0
    %2994 = vadd.xlane.f32.xlu0 %v2993
    %v2995 = vpop.xlane.xlu0 %2994
    %v2996 = vsel %vm172, %v2990, 0.0
    %2997 = vadd.xlane.f32.xlu0 %v2996
    %v2998 = vpop.xlane.xlu0 %2997
    %v2999 = vmul.f32 %v2995, %v179
    %v3000 = vmul.f32 %v2998, %v179
    %v3001 = vsub.f32 %v2989, %v2999
    %v3002 = vsub.f32 %v2990, %v3000
    %v3003 = vmul.f32 %v3001, %v3001
    %v3004 = vmul.f32 %v3002, %v3002
    %v3005 = vsel %vm172, %v3003, 0.0
    %3006 = vadd.xlane.f32.xlu0 %v3005
    %v3007 = vpop.xlane.xlu0 %3006
    %v3008 = vsel %vm172, %v3004, 0.0
    %3009 = vadd.xlane.f32.xlu0 %v3008
    %v3010 = vpop.xlane.xlu0 %3009
    %v3011 = vmul.f32 %v3007, %v179
    %v3012 = vmul.f32 %v3010, %v179
    %v3013 = vadd.f32 %v3011, 1e-05
    %v3014 = vadd.f32 %v3012, 1e-05
    %v3015 = vrsqrt.pop %v3013
    %v3016 = vrsqrt.pop %v3014
    %v3017 = vmul.f32 %v3001, %v3015
    %v3018 = vmul.f32 %v3002, %v3016
    %v3020 = vlaneseq
    %v3021 = vshrl.u32 %v3020, 7
    %v3022 = vsub.s32 0, %v3021
    %v3023 = vrot.slane %v2991, %v3022
    %v3025 = vmul.f32 %v3017, %v3023
    %v3026 = vmul.f32 %v3018, %v3023
    %v3028 = vlaneseq
    %v3029 = vshrl.u32 %v3028, 7
    %v3030 = vsub.s32 0, %v3029
    %v3031 = vrot.slane %v2992, %v3030
    %v3033 = vadd.f32 %v3025, %v3031
    %v3034 = vadd.f32 %v3026, %v3031
    %v3035 = vld [vmem:[%s18] sm:$0x1]
    %v3036 = vld [vmem:[#allocation2] sm:$0x1]
    %3038 = vset.pattern.permute.xlu0 0
    %3039 = vperm.xlu0 %3038, %v3036
    %v3040 = vpop.permute.xlu0 %3039
    %v3042 = vlaneseq
    %v3043 = vshrl.u32 %v3042, 7
    %v3044 = vsub.s32 0, %v3043
    %v3045 = vrot.slane %v3040, %v3044
    %v3047 = vsel %vm172, %v3035, 0
    %v3050 = vsel %vm172, %v3033, 0
    %v3053 = vsel %vm172, %v3034, 0
    %3055 = vmatprep.subr.mxu0 0.0
    %3056 = vmatpush1.xpose.msra.mxu0 %v3050
    %3057 = vmatprep.subr.mxu0 0.0
    %3058 = vmatpush1.xpose.msra.mxu0 %v3053
    %3059 = vmatprep.subr.mxu0 0.0
    %3060 = vmatpush1.xpose.msra.mxu0 0.0
    %3061 = vmatprep.subr.mxu0 0.0
    %3062 = vmatpush1.xpose.msra.mxu0 0.0
    %3063 = vmatprep.subr.mxu0 0.0
    %3064 = vmatpush1.xpose.msra.mxu0 0.0
    %3065 = vmatprep.subr.mxu0 0.0
    %3066 = vmatpush1.xpose.msra.mxu0 0.0
    %3067 = vmatprep.subr.mxu0 0.0
    %3068 = vmatpush1.xpose.msra.mxu0 0.0
    %3069 = vmatprep.subr.mxu0 0.0
    %3070 = vmatpush1.xpose.msra.mxu0 0.0
    %3071 = vmatprep.subr.mxu0 0.0
    %3072 = vmatpush1.xpose.msra.mxu0 0.0
    %3073 = vmatprep.subr.mxu0 0.0
    %3074 = vmatpush1.xpose.msra.mxu0 0.0
    %3075 = vmatprep.subr.mxu0 0.0
    %3076 = vmatpush1.xpose.msra.mxu0 0.0
    %3077 = vmatprep.subr.mxu0 0.0
    %3078 = vmatpush1.xpose.msra.mxu0 0.0
    %3079 = vmatprep.subr.mxu0 0.0
    %3080 = vmatpush1.xpose.msra.mxu0 0.0
    %3081 = vmatprep.subr.mxu0 0.0
    %3082 = vmatpush1.xpose.msra.mxu0 0.0
    %3083 = vmatprep.subr.mxu0 0.0
    %3084 = vmatpush1.xpose.msra.mxu0 0.0
    %3085 = vmatprep.subr.mxu0 0.0
    %3086 = vmatpush1.xpose.msra.mxu0 0.0
    %3087 = vmatprep.subr.mxu0 0.0
    %3088 = vmatpush1.xpose.msra.mxu0 0.0
    %3089 = vmatprep.subr.mxu0 0.0
    %3090 = vmatpush1.xpose.msra.mxu0 0.0
    %3091 = vmatprep.subr.mxu0 0.0
    %3092 = vmatpush1.xpose.msra.mxu0 0.0
    %3093 = vmatprep.subr.mxu0 0.0
    %3094 = vmatpush1.xpose.msra.mxu0 0.0
    %3095 = vmatprep.subr.mxu0 0.0
    %3096 = vmatpush1.xpose.msra.mxu0 0.0
    %3097 = vmatprep.subr.mxu0 0.0
    %3098 = vmatpush1.xpose.msra.mxu0 0.0
    %3099 = vmatprep.subr.mxu0 0.0
    %3100 = vmatpush1.xpose.msra.mxu0 0.0
    %3101 = vmatprep.subr.mxu0 0.0
    %3102 = vmatpush1.xpose.msra.mxu0 0.0
    %3103 = vmatprep.subr.mxu0 0.0
    %3104 = vmatpush1.xpose.msra.mxu0 0.0
    %3105 = vmatprep.subr.mxu0 0.0
    %3106 = vmatpush1.xpose.msra.mxu0 0.0
    %3107 = vmatprep.subr.mxu0 0.0
    %3108 = vmatpush1.xpose.msra.mxu0 0.0
    %3109 = vmatprep.subr.mxu0 0.0
    %3110 = vmatpush1.xpose.msra.mxu0 0.0
    %3111 = vmatprep.subr.mxu0 0.0
    %3112 = vmatpush1.xpose.msra.mxu0 0.0
    %3113 = vmatprep.subr.mxu0 0.0
    %3114 = vmatpush1.xpose.msra.mxu0 0.0
    %3115 = vmatprep.subr.mxu0 0.0
    %3116 = vmatpush1.xpose.msra.mxu0 0.0
    %3117 = vmatprep.subr.mxu0 0.0
    %3118 = vmatpush1.xpose.msra.mxu0 0.0
    %3119 = vmatprep.mubr.f32.mxu0 0.0
    %3120 = vmatmul.mubr.f32.gmra.mrb[0].mxu0 %v3047
    %v3121 = vpop.f32.mrb[0].mxu0
    %v3122 = vadd.f32 %v3045, %v3121
    %v3123 = vpop.f32.mrb[0].mxu0
    %3124 = vdwg.mxu0
    %v3125 = vtanh.pop %v3122
    %vm3126 = vcmask 122880
    %3127 = vst.msk [vmem:[#allocation16] sm:$0x1] %vm3126, %v3125
    // Predicated region
    $region110: #{tpu_custom_call.1} parent=1 // pred_check
      _
    $region111: #{tpu_custom_call.1} parent=1 // pred_check_branch
      %3129 = sbr.rel (0) target = $region113
    $region112: #{tpu_custom_call.1} parent=1 // pred_region
      %s3131 = ssub.s32 256, 256
      %3132 = vsyncadd [#allocation5], %s3131
      %s3133 = sshll.u32 [#allocation15], 4
      %s3134 = int_to_ptr.vmem [resolvable:$true] %s3133
      %3139 = dma.vmem_to_hbm [thread:$0]  %s3134, 256, %s20, [#allocation5], 128, 128, 8
    $region113: #{tpu_custom_call.1} parent=1 // pred_fallthru
      _
    // Predicated region
    $region114: #{tpu_custom_call.1} parent=1 // pred_check
      _
    $region115: #{tpu_custom_call.1} parent=1 // pred_check_branch
      %3141 = sbr.rel (0) target = $region117
    $region116: #{tpu_custom_call.1} parent=1 // pred_region
      %s3143 = ssub.s32 16, 16
      %3144 = vsyncadd [#allocation17], %s3143
      %s3146 = sshll.u32 [#allocation16], 4
      %s3147 = int_to_ptr.vmem [resolvable:$true] %s3146
      %3149 = dma.vmem_to_hbm [thread:$0]  %s3147, 16, %s21, [#allocation17]
    $region117: #{tpu_custom_call.1} parent=1 // pred_fallthru
      _
    // Predicated region
    $region118: #{tpu_custom_call.1} parent=1 // pred_check
      _
    $region119: #{tpu_custom_call.1} parent=1 // pred_check_branch
      %3151 = sbr.rel (0) target = $region121
    $region120: #{tpu_custom_call.1} parent=1 // pred_region
      %3152 = dma.done [#allocation5], 256
    $region121: #{tpu_custom_call.1} parent=1 // pred_fallthru
      _
    // Predicated region
    $region122: #{tpu_custom_call.1} parent=1 // pred_check
      _
    $region123: #{tpu_custom_call.1} parent=1 // pred_check_branch
      %3154 = sbr.rel (0) target = $region125
    $region124: #{tpu_custom_call.1} parent=1 // pred_region
      %3155 = dma.done [#allocation17], 16
    $region125: #{tpu_custom_call.1} parent=1 // pred_fallthru
      _
    %3156 = vsyncpa [#allocation4], 1
    %3157 = vsyncpa [#allocation7], 1
    %3158 = vsyncpa [#allocation10], 1
    %3159 = vsyncpa [#allocation13], 1
    %3160 = vsyncpa [#allocation5], 1
    %3161 = vsyncpa [#allocation17], 1

</llo_original>
